<compile_context>
chip_gen: v6e
topology: v6e:2x2x1
jax: 0.10.0
libtpu: 0.0.40
codegen_flags: <defaults>
</compile_context>

<pallas_src>
import functools

import jax
import jax.numpy as jnp
from jax.experimental import pallas as pl
from jax.experimental.pallas import tpu as pltpu

KERNEL_SET = (2, 3, 6, 7)   # DilatedInception temporal kernel sizes
MAX_K = 7                   # max kernel size
EPS = 1e-5                  # LayerNorm eps


# ----------------------------------------------------------------------------
# Kernel
# ----------------------------------------------------------------------------
def _make_net_kernel(dilations, n_nodes, batch_block, eps, matmul_dtype, ew_dtype):
    """Builds the per-batch-group fused forward kernel."""
    N = n_nodes
    Bb = batch_block
    G = Bb * N              # lanes per timestep (batch-major, node-minor)

    def kernel(x_ref, bid_ref, ws_ref, bs_ref, wfg_ref, bfg_ref, wr_ref, br_ref,
               we1_ref, be1_ref, we2_ref, be2_ref, out_ref, stack_ref):
        # x_ref block: (1, D_in, T0*G) -- Bb batch elements, lane-dense.
        _, D_in, TG0 = x_ref.shape
        C = ws_ref.shape[0]
        T = TG0 // G

        # ---- start_conv: 1x1 channel mixing.
        x = x_ref[0]                                        # (D_in, T*G)
        if D_in > 1:
            cur = jnp.dot(ws_ref[...].astype(matmul_dtype),
                          x.astype(matmul_dtype),
                          preferred_element_type=jnp.float32) + bs_ref[...]
        else:
            cur = ws_ref[:, 0:1] * x[0:1, :] + bs_ref[...]  # (C, T*G)

        # ---- temporal conv layers (fused filter/gate inception + residual + LN)
        for li, d in enumerate(dilations):
            T_out = T - (MAX_K - 1) * d
            L = T_out * G

            # Build the stacked (7C, L) operand directly in VMEM scratch:
            # one slice-store per tap (static offsets), no concatenate temp.
            cur_mm = cur.astype(matmul_dtype)
            for j in range(MAX_K):
                off = j * d * G
                stack_ref[j * C:(j + 1) * C, :L] = cur_mm[:, off:off + L]

            # One MXU matmul produces filter AND gate for all nodes/steps/batches.
            fg = jnp.dot(wfg_ref[li], stack_ref[:, :L],
                         preferred_element_type=jnp.float32)
            fg = fg + bfg_ref[li]                           # (2C, L)
            fgc = fg.astype(ew_dtype)                       # bf16 EUP on v6e/v7x
            filt = jnp.tanh(fgc[:C])
            gate = jax.nn.sigmoid(fgc[C:])
            act = (filt * gate).astype(matmul_dtype)
            # TODO(synk): F.dropout omitted (eval-mode identity; RNG dropout has
            # no deterministic forward semantics to reproduce here).

            res = jnp.dot(wr_ref[li], act,
                          preferred_element_type=jnp.float32) + br_ref[li]
            xln = res + cur[:, (T - T_out) * G:]            # residual (last T_out)

            # LayerNorm over (C, N, T_out) PER batch element, affine=False.
            # Channel sums keep the lane axis live (no whole-array scalar reduce);
            # per-batch segmentation via the precomputed lane batch-id row.
            inv_cnt = 1.0 / float(C * N * T_out)
            row_s = jnp.sum(xln, axis=0, keepdims=True)         # (1, L)
            row_ss = jnp.sum(xln * xln, axis=0, keepdims=True)  # (1, L)
            bid = bid_ref[:, :L]                                # (1, L) int32
            mean_lane = jnp.zeros((1, L), jnp.float32)
            ex2_lane = jnp.zeros((1, L), jnp.float32)
            for b in range(Bb):                                 # Bb is small, static
                m = bid == b
                s_b = jnp.sum(jnp.where(m, row_s, 0.0))
                ss_b = jnp.sum(jnp.where(m, row_ss, 0.0))
                mean_lane = jnp.where(m, s_b * inv_cnt, mean_lane)
                ex2_lane = jnp.where(m, ss_b * inv_cnt, ex2_lane)
            var_lane = jnp.maximum(ex2_lane - mean_lane * mean_lane, 0.0)
            inv_lane = jax.lax.rsqrt(var_lane + eps)
            cur = (xln - mean_lane) * inv_lane                  # (C, L) f32
            T = T_out

        # ---- end convs: relu(1x1) then 1x1 to seq_out channels.
        h = jnp.dot(we1_ref[...], cur.astype(matmul_dtype),
                    preferred_element_type=jnp.float32) + be1_ref[...]
        h = jnp.maximum(h, 0.0)
        o = jnp.dot(we2_ref[...], h.astype(matmul_dtype),
                    preferred_element_type=jnp.float32) + be2_ref[...]
        out_ref[0] = o.astype(out_ref.dtype)                    # single block store

    return kernel


# ----------------------------------------------------------------------------
# Deterministic synthetic parameter initialization (shapes from Net.__init__)
# ----------------------------------------------------------------------------
def init_net_params(key, *, in_dim, middle_channel, seq_out, layers):
    C = middle_channel
    branch_c = C // len(KERNEL_SET)
    keys = iter(jax.random.split(key, 256))
    scale = 0.1

    def rnd(shape):
        return scale * jax.random.normal(next(keys), shape, jnp.float32)

    def inception_flat():
        # Flattened (C, 7*C) weight whose column block j*C:(j+1)*C is the tap-j
        # (C_out x C_in) matrix.  Left-padding each branch's taps to length 7
        # reproduces DilatedInception's "truncate to the last T-(7-1)*d steps".
        w_b, b_b = [], []
        for k in KERNEL_SET:
            w = rnd((branch_c, C, k))
            w = jnp.pad(w, ((0, 0), (0, 0), (MAX_K - k, 0)))
            w_b.append(w)
            b_b.append(rnd((branch_c,)))
        w_full = jnp.concatenate(w_b, axis=0)                       # (C, C, 7)
        w_flat = jnp.transpose(w_full, (0, 2, 1)).reshape(C, MAX_K * C)
        b_full = jnp.concatenate(b_b, axis=0).reshape(C, 1)
        return w_flat, b_full                                       # (C,7C),(C,1)

    wfg, bfg, wr, br = [], [], [], []
    ws = rnd((C, in_dim))
    bs = rnd((C, 1))
    for _ in range(layers):
        wf_flat, bf_col = inception_flat()
        wg_flat, bg_col = inception_flat()
        wfg.append(jnp.concatenate([wf_flat, wg_flat], axis=0))     # (2C, 7C)
        bfg.append(jnp.concatenate([bf_col, bg_col], axis=0))       # (2C, 1)
        wr.append(rnd((C, C)))
        br.append(rnd((C, 1)))

    return dict(
        ws=ws, bs=bs,
        wfg=jnp.stack(wfg), bfg=jnp.stack(bfg),      # (L,2C,7C), (L,2C,1)
        wr=jnp.stack(wr), br=jnp.stack(br),          # (L,C,C),   (L,C,1)
        we1=rnd((C, C)), be1=rnd((C, 1)),
        we2=rnd((seq_out, C)), be2=rnd((seq_out, 1)),
    )


# ----------------------------------------------------------------------------
# Wrapper (glue: padding, layout transpose, pallas_call setup)
# ----------------------------------------------------------------------------
def net_forward(x, params, *, layers=3, dilation_exponential=2,
                batch_block=None, matmul_dtype=jnp.bfloat16,
                ew_dtype=jnp.bfloat16):
    # ew_dtype: transcendental/elementwise dtype.  bf16 is right for v6e/v7x
    # (native bf16 EUP/VPU); pass jnp.float32 on v5e to avoid convert churn.
    B, D_in, N, P = x.shape
    dilations = [dilation_exponential ** i for i in range(layers)]
    if dilation_exponential > 1:
        max_rf = int(1 + (MAX_K - 1) * (dilation_exponential ** layers - 1)
                     / (dilation_exponential - 1))
    else:
        max_rf = layers * (MAX_K - 1) + 1
    if P < max_rf:                                     # F.pad(input, (rf-P,0,0,0))
        x = jnp.pad(x, ((0, 0), (0, 0), (0, 0), (max_rf - P, 0)))
    T0 = x.shape[-1]
    C = params["ws"].shape[0]
    S_out = params["we2"].shape[0]

    # ---- batch folding: Bb batch elements per grid step, folded into lanes.
    if batch_block is None:
        batch_block = min(B, 8)
        while B % batch_block:
            batch_block -= 1
    Bb = batch_block
    assert B % Bb == 0
    n_groups = B // Bb
    G = Bb * N

    # Per-layer output time extents.
    t_outs = []
    T = T0
    for d in dilations:
        T = T - (MAX_K - 1) * d
        t_outs.append(T)
    T_f = t_outs[-1]
    L_max = t_outs[0] * G                              # largest stacked free dim

    # Lane-dense layout: (B, D_in, N, T0) -> (groups, D_in, T0*Bb*N),
    # lane = t*G + b_local*N + n   (time-major, batch, node-minor).
    xk = jnp.transpose(x.reshape(n_groups, Bb, D_in, N, T0), (0, 2, 4, 1, 3))
    xk = xk.reshape(n_groups, D_in, T0 * G).astype(jnp.float32)

    # Lane batch-id row (periodic with period G) used for per-batch LayerNorm.
    lane = jnp.arange(T0 * G, dtype=jnp.int32)
    bid = ((lane % G) // N).reshape(1, T0 * G)

    f32 = lambda a: a.astype(jnp.float32)
    mmd = lambda a: a.astype(matmul_dtype)
    weights = [
        f32(params["ws"]), f32(params["bs"]),
        mmd(params["wfg"]), f32(params["bfg"]),
        mmd(params["wr"]), f32(params["br"]),
        mmd(params["we1"]), f32(params["be1"]),
        mmd(params["we2"]), f32(params["be2"]),
    ]

    in_specs = [pl.BlockSpec((1, D_in, T0 * G), lambda g: (g, 0, 0)),
                pl.BlockSpec((1, T0 * G), lambda g: (0, 0))]
    for w in weights:
        in_specs.append(
            pl.BlockSpec(w.shape, functools.partial(lambda g, nd: (0,) * nd,
                                                    nd=w.ndim)))

    # Advisory cost estimate so XLA schedules surrounding reshapes sensibly.
    flops = 0
    trans = 0
    T = T0
    for d in dilations:
        T_out = T - (MAX_K - 1) * d
        flops += 2 * (2 * C) * (MAX_K * C) * (T_out * G) * n_groups   # inception
        flops += 2 * C * C * (T_out * G) * n_groups                   # residual 1x1
        trans += 2 * C * (T_out * G) * n_groups                       # tanh+sigmoid
        T = T_out
    flops += (2 * C * C + 2 * S_out * C) * (T_f * G) * n_groups       # end convs
    bytes_accessed = (int(xk.size) * 4
                      + sum(int(w.size) * w.dtype.itemsize for w in weights)
                      + n_groups * S_out * T_f * G * 4)

    # Resident weights + per-group activations + stack scratch are ~hundreds of
    # KiB here; vmem_limit_bytes is set explicitly and should be re-derived if
    # C / layers / T0 / batch_block grow (v7x has only 64 MiB physical VMEM).
    out = pl.pallas_call(
        _make_net_kernel(tuple(dilations), N, Bb, EPS, matmul_dtype, ew_dtype),
        grid=(n_groups,),
        in_specs=in_specs,
        out_specs=pl.BlockSpec((1, S_out, T_f * G), lambda g: (g, 0, 0)),
        out_shape=jax.ShapeDtypeStruct((n_groups, S_out, T_f * G), jnp.float32),
        scratch_shapes=[pltpu.VMEM((MAX_K * C, L_max), matmul_dtype)],
        compiler_params=pltpu.CompilerParams(
            dimension_semantics=("parallel",),
            vmem_limit_bytes=32 * 1024 * 1024),
        cost_estimate=pl.CostEstimate(flops=int(flops),
                                      transcendentals=int(trans),
                                      bytes_accessed=int(bytes_accessed)),
    )(xk, bid, *weights)

    # Back to the PyTorch output layout: (B, seq_out, N, T_final)
    out = out.reshape(n_groups, S_out, T_f, Bb, N)
    return jnp.transpose(out, (0, 3, 1, 4, 2)).reshape(B, S_out, N, T_f)


# ----------------------------------------------------------------------------
if __name__ == "__main__":
    key = jax.random.PRNGKey(0)
    kp, kx = jax.random.split(key)

    # Net(input_node=4, seq_len=8, in_dim=1, embed_dim=32, middle_channel=32,
    #     seq_out=1, dilation_exponential=2, layers=3)
    B, in_dim, N, P = 2, 1, 4, 8
    C, S_out, L = 32, 1, 3

    params = init_net_params(kp, in_dim=in_dim, middle_channel=C,
                             seq_out=S_out, layers=L)
    x = jax.random.normal(kx, (B, in_dim, N, P), jnp.float32)

    y = net_forward(x, params, layers=L, dilation_exponential=2)
    jax.block_until_ready(y)
    assert y.shape == (B, S_out, N, 1), y.shape
    print("KERNEL_OK")
</pallas_src>

<mosaic_0001>
module attributes {stable_mosaic.version = 11 : i64} {
  func.func @kernel(%arg0: i32, %arg1: memref<1x1x344xf32, #tpu.memory_space<vmem>>, %arg2: memref<1x344xi32, #tpu.memory_space<vmem>>, %arg3: memref<32x1xf32, #tpu.memory_space<vmem>>, %arg4: memref<32x1xf32, #tpu.memory_space<vmem>>, %arg5: memref<3x64x224xbf16, #tpu.memory_space<vmem>>, %arg6: memref<3x64x1xf32, #tpu.memory_space<vmem>>, %arg7: memref<3x32x32xbf16, #tpu.memory_space<vmem>>, %arg8: memref<3x32x1xf32, #tpu.memory_space<vmem>>, %arg9: memref<32x32xbf16, #tpu.memory_space<vmem>>, %arg10: memref<32x1xf32, #tpu.memory_space<vmem>>, %arg11: memref<1x32xbf16, #tpu.memory_space<vmem>>, %arg12: memref<1x1xf32, #tpu.memory_space<vmem>>, %arg13: memref<1x1x8xf32, #tpu.memory_space<vmem>>, %arg14: memref<224x296xbf16, #tpu.memory_space<vmem>>) attributes {dimension_semantics = [#tpu.dimension_semantics<parallel>], iteration_bounds = array<i64: 1>, scalar_prefetch = 0 : i64, scratch_operands = 1 : i64, tpu.core_type = #tpu.core_type<tc>, window_params = [{transform_indices = @transform_0, window_bounds = array<i64: 1, 1, 344>}, {pipeline_mode = #tpu.pipeline_mode<synchronous>, transform_indices = @transform_1, window_bounds = array<i64: 1, 344>}, {pipeline_mode = #tpu.pipeline_mode<synchronous>, transform_indices = @transform_2, window_bounds = array<i64: 32, 1>}, {pipeline_mode = #tpu.pipeline_mode<synchronous>, transform_indices = @transform_3, window_bounds = array<i64: 32, 1>}, {pipeline_mode = #tpu.pipeline_mode<synchronous>, transform_indices = @transform_4, window_bounds = array<i64: 3, 64, 224>}, {pipeline_mode = #tpu.pipeline_mode<synchronous>, transform_indices = @transform_5, window_bounds = array<i64: 3, 64, 1>}, {pipeline_mode = #tpu.pipeline_mode<synchronous>, transform_indices = @transform_6, window_bounds = array<i64: 3, 32, 32>}, {pipeline_mode = #tpu.pipeline_mode<synchronous>, transform_indices = @transform_7, window_bounds = array<i64: 3, 32, 1>}, {pipeline_mode = #tpu.pipeline_mode<synchronous>, transform_indices = @transform_8, window_bounds = array<i64: 32, 32>}, {pipeline_mode = #tpu.pipeline_mode<synchronous>, transform_indices = @transform_9, window_bounds = array<i64: 32, 1>}, {pipeline_mode = #tpu.pipeline_mode<synchronous>, transform_indices = @transform_10, window_bounds = array<i64: 1, 32>}, {pipeline_mode = #tpu.pipeline_mode<synchronous>, transform_indices = @transform_11, window_bounds = array<i64: 1, 1>}, {transform_indices = @transform_12, window_bounds = array<i64: 1, 1, 8>}]} {
    %c0 = arith.constant 0 : index
    %c0_0 = arith.constant 0 : index
    %c0_1 = arith.constant 0 : index
    %0 = vector.load %arg1[%c0, %c0_0, %c0_1] : memref<1x1x344xf32, #tpu.memory_space<vmem>>, vector<1x1x344xf32>
    %1 = vector.shape_cast %0 : vector<1x1x344xf32> to vector<1x344xf32>
    %c0_2 = arith.constant 0 : index
    %c0_3 = arith.constant 0 : index
    %2 = vector.load %arg3[%c0_2, %c0_3] : memref<32x1xf32, #tpu.memory_space<vmem>>, vector<32x1xf32>
    %3 = vector.broadcast %2 : vector<32x1xf32> to vector<32x344xf32>
    %4 = vector.broadcast %1 : vector<1x344xf32> to vector<32x344xf32>
    %5 = arith.mulf %3, %4 : vector<32x344xf32>
    %c0_4 = arith.constant 0 : index
    %c0_5 = arith.constant 0 : index
    %6 = vector.load %arg4[%c0_4, %c0_5] : memref<32x1xf32, #tpu.memory_space<vmem>>, vector<32x1xf32>
    %7 = vector.broadcast %6 : vector<32x1xf32> to vector<32x344xf32>
    %8 = arith.addf %5, %7 : vector<32x344xf32>
    %9 = arith.truncf %8 : vector<32x344xf32> to vector<32x344xbf16>
    %10 = vector.extract_strided_slice %9 {offsets = [0, 0], sizes = [32, 296], strides = [1, 1]} : vector<32x344xbf16> to vector<32x296xbf16>
    %c0_6 = arith.constant 0 : index
    %c0_7 = arith.constant 0 : index
    %11 = vector.load %arg14[%c0_6, %c0_7] : memref<224x296xbf16, #tpu.memory_space<vmem>>, vector<32x296xbf16>
    tpu.vector_store %arg14[%c0_6, %c0_7], %10 {strides = array<i32>} : memref<224x296xbf16, #tpu.memory_space<vmem>>, vector<32x296xbf16>,
    %12 = vector.extract_strided_slice %9 {offsets = [0, 8], sizes = [32, 296], strides = [1, 1]} : vector<32x344xbf16> to vector<32x296xbf16>
    %c32 = arith.constant 32 : index
    %c0_8 = arith.constant 0 : index
    %13 = vector.load %arg14[%c32, %c0_8] : memref<224x296xbf16, #tpu.memory_space<vmem>>, vector<32x296xbf16>
    tpu.vector_store %arg14[%c32, %c0_8], %12 {strides = array<i32>} : memref<224x296xbf16, #tpu.memory_space<vmem>>, vector<32x296xbf16>,
    %14 = vector.extract_strided_slice %9 {offsets = [0, 16], sizes = [32, 296], strides = [1, 1]} : vector<32x344xbf16> to vector<32x296xbf16>
    %c64 = arith.constant 64 : index
    %c0_9 = arith.constant 0 : index
    %15 = vector.load %arg14[%c64, %c0_9] : memref<224x296xbf16, #tpu.memory_space<vmem>>, vector<32x296xbf16>
    tpu.vector_store %arg14[%c64, %c0_9], %14 {strides = array<i32>} : memref<224x296xbf16, #tpu.memory_space<vmem>>, vector<32x296xbf16>,
    %16 = vector.extract_strided_slice %9 {offsets = [0, 24], sizes = [32, 296], strides = [1, 1]} : vector<32x344xbf16> to vector<32x296xbf16>
    %c96 = arith.constant 96 : index
    %c0_10 = arith.constant 0 : index
    %17 = vector.load %arg14[%c96, %c0_10] : memref<224x296xbf16, #tpu.memory_space<vmem>>, vector<32x296xbf16>
    tpu.vector_store %arg14[%c96, %c0_10], %16 {strides = array<i32>} : memref<224x296xbf16, #tpu.memory_space<vmem>>, vector<32x296xbf16>,
    %18 = vector.extract_strided_slice %9 {offsets = [0, 32], sizes = [32, 296], strides = [1, 1]} : vector<32x344xbf16> to vector<32x296xbf16>
    %c128 = arith.constant 128 : index
    %c0_11 = arith.constant 0 : index
    %19 = vector.load %arg14[%c128, %c0_11] : memref<224x296xbf16, #tpu.memory_space<vmem>>, vector<32x296xbf16>
    tpu.vector_store %arg14[%c128, %c0_11], %18 {strides = array<i32>} : memref<224x296xbf16, #tpu.memory_space<vmem>>, vector<32x296xbf16>,
    %20 = vector.extract_strided_slice %9 {offsets = [0, 40], sizes = [32, 296], strides = [1, 1]} : vector<32x344xbf16> to vector<32x296xbf16>
    %c160 = arith.constant 160 : index
    %c0_12 = arith.constant 0 : index
    %21 = vector.load %arg14[%c160, %c0_12] : memref<224x296xbf16, #tpu.memory_space<vmem>>, vector<32x296xbf16>
    tpu.vector_store %arg14[%c160, %c0_12], %20 {strides = array<i32>} : memref<224x296xbf16, #tpu.memory_space<vmem>>, vector<32x296xbf16>,
    %22 = vector.extract_strided_slice %9 {offsets = [0, 48], sizes = [32, 296], strides = [1, 1]} : vector<32x344xbf16> to vector<32x296xbf16>
    %c192 = arith.constant 192 : index
    %c0_13 = arith.constant 0 : index
    %23 = vector.load %arg14[%c192, %c0_13] : memref<224x296xbf16, #tpu.memory_space<vmem>>, vector<32x296xbf16>
    tpu.vector_store %arg14[%c192, %c0_13], %22 {strides = array<i32>} : memref<224x296xbf16, #tpu.memory_space<vmem>>, vector<32x296xbf16>,
    %c0_14 = arith.constant 0 : index
    %c0_15 = arith.constant 0 : index
    %c0_16 = arith.constant 0 : index
    %24 = vector.load %arg5[%c0_14, %c0_15, %c0_16] : memref<3x64x224xbf16, #tpu.memory_space<vmem>>, vector<1x64x224xbf16>
    %25 = vector.shape_cast %24 : vector<1x64x224xbf16> to vector<64x224xbf16>
    %c0_17 = arith.constant 0 : index
    %c0_18 = arith.constant 0 : index
    %26 = vector.load %arg14[%c0_17, %c0_18] : memref<224x296xbf16, #tpu.memory_space<vmem>>, vector<224x296xbf16>
    %cst = arith.constant dense<0.000000e+00> : vector<64x296xf32>
    %27 = tpu.matmul %25, %26, %cst {dimension_numbers = #tpu.dot_dimension_numbers<[1], [0], [0], [1], [0, 0, 1, 1], [], []>} : vector<64x224xbf16>, vector<224x296xbf16>, vector<64x296xf32> -> vector<64x296xf32>
    %c0_19 = arith.constant 0 : index
    %c0_20 = arith.constant 0 : index
    %c0_21 = arith.constant 0 : index
    %28 = vector.load %arg6[%c0_19, %c0_20, %c0_21] : memref<3x64x1xf32, #tpu.memory_space<vmem>>, vector<1x64x1xf32>
    %29 = vector.shape_cast %28 : vector<1x64x1xf32> to vector<64x1xf32>
    %30 = vector.broadcast %29 : vector<64x1xf32> to vector<64x296xf32>
    %31 = arith.addf %27, %30 : vector<64x296xf32>
    %32 = arith.truncf %31 : vector<64x296xf32> to vector<64x296xbf16>
    %33 = vector.extract_strided_slice %32 {offsets = [0, 0], sizes = [32, 296], strides = [1, 1]} : vector<64x296xbf16> to vector<32x296xbf16>
    %34 = math.tanh %33 : vector<32x296xbf16>
    %35 = vector.extract_strided_slice %32 {offsets = [32, 0], sizes = [32, 296], strides = [1, 1]} : vector<64x296xbf16> to vector<32x296xbf16>
    %36 = arith.negf %35 : vector<32x296xbf16>
    %37 = math.exp %36 : vector<32x296xbf16>
    %cst_22 = arith.constant 1.000000e+00 : bf16
    %38 = vector.broadcast %cst_22 : bf16 to vector<32x296xbf16>
    %39 = arith.addf %38, %37 : vector<32x296xbf16>
    %40 = arith.divf %38, %39 : vector<32x296xbf16>
    %41 = arith.mulf %34, %40 : vector<32x296xbf16>
    %c0_23 = arith.constant 0 : index
    %c0_24 = arith.constant 0 : index
    %c0_25 = arith.constant 0 : index
    %42 = vector.load %arg7[%c0_23, %c0_24, %c0_25] : memref<3x32x32xbf16, #tpu.memory_space<vmem>>, vector<1x32x32xbf16>
    %43 = vector.shape_cast %42 : vector<1x32x32xbf16> to vector<32x32xbf16>
    %cst_26 = arith.constant dense<0.000000e+00> : vector<32x296xf32>
    %44 = tpu.matmul %43, %41, %cst_26 {dimension_numbers = #tpu.dot_dimension_numbers<[1], [0], [0], [1], [0, 0, 1, 1], [], []>} : vector<32x32xbf16>, vector<32x296xbf16>, vector<32x296xf32> -> vector<32x296xf32>
    %c0_27 = arith.constant 0 : index
    %c0_28 = arith.constant 0 : index
    %c0_29 = arith.constant 0 : index
    %45 = vector.load %arg8[%c0_27, %c0_28, %c0_29] : memref<3x32x1xf32, #tpu.memory_space<vmem>>, vector<1x32x1xf32>
    %46 = vector.shape_cast %45 : vector<1x32x1xf32> to vector<32x1xf32>
    %47 = vector.broadcast %46 : vector<32x1xf32> to vector<32x296xf32>
    %48 = arith.addf %44, %47 : vector<32x296xf32>
    %49 = vector.extract_strided_slice %8 {offsets = [0, 48], sizes = [32, 296], strides = [1, 1]} : vector<32x344xf32> to vector<32x296xf32>
    %50 = arith.addf %48, %49 : vector<32x296xf32>
    %cst_30 = arith.constant dense<0.000000e+00> : vector<296xf32>
    %51 = vector.multi_reduction <add>, %50, %cst_30 [0] : vector<32x296xf32> to vector<296xf32>
    %52 = vector.shape_cast %51 : vector<296xf32> to vector<1x296xf32>
    %53 = arith.mulf %50, %50 : vector<32x296xf32>
    %cst_31 = arith.constant dense<0.000000e+00> : vector<296xf32>
    %54 = vector.multi_reduction <add>, %53, %cst_31 [0] : vector<32x296xf32> to vector<296xf32>
    %55 = vector.shape_cast %54 : vector<296xf32> to vector<1x296xf32>
    %c0_32 = arith.constant 0 : index
    %c0_33 = arith.constant 0 : index
    %56 = vector.load %arg2[%c0_32, %c0_33] : memref<1x344xi32, #tpu.memory_space<vmem>>, vector<1x296xi32>
    %cst_34 = arith.constant 0.000000e+00 : f32
    %57 = vector.broadcast %cst_34 : f32 to vector<1x296xf32>
    %cst_35 = arith.constant 0.000000e+00 : f32
    %58 = vector.broadcast %cst_35 : f32 to vector<1x296xf32>
    %c0_i32 = arith.constant 0 : i32
    %59 = vector.broadcast %c0_i32 : i32 to vector<1x296xi32>
    %60 = arith.cmpi eq, %56, %59 : vector<1x296xi32>
    %cst_36 = arith.constant 0.000000e+00 : f32
    %61 = vector.broadcast %cst_36 : f32 to vector<1x296xf32>
    %62 = arith.select %60, %52, %61 : vector<1x296xi1>, vector<1x296xf32>
    %63 = vector.shape_cast %62 : vector<1x296xf32> to vector<1x1x296xf32>
    %cst_37 = arith.constant dense<0.000000e+00> : vector<1xf32>
    %64 = vector.multi_reduction <add>, %63, %cst_37 [1, 2] : vector<1x1x296xf32> to vector<1xf32>
    %65 = vector.shape_cast %64 : vector<1xf32> to vector<1x1x1xf32>
    %66 = vector.extract %65[0, 0, 0] : f32 from vector<1x1x1xf32>
    %cst_38 = arith.constant 0.000000e+00 : f32
    %67 = vector.broadcast %cst_38 : f32 to vector<1x296xf32>
    %68 = arith.select %60, %55, %67 : vector<1x296xi1>, vector<1x296xf32>
    %69 = vector.shape_cast %68 : vector<1x296xf32> to vector<1x1x296xf32>
    %cst_39 = arith.constant dense<0.000000e+00> : vector<1xf32>
    %70 = vector.multi_reduction <add>, %69, %cst_39 [1, 2] : vector<1x1x296xf32> to vector<1xf32>
    %71 = vector.shape_cast %70 : vector<1xf32> to vector<1x1x1xf32>
    %72 = vector.extract %71[0, 0, 0] : f32 from vector<1x1x1xf32>
    %cst_40 = arith.constant 2.11148654E-4 : f32
    %73 = arith.mulf %66, %cst_40 : f32
    %74 = vector.broadcast %73 : f32 to vector<1x296xf32>
    %75 = arith.select %60, %74, %57 : vector<1x296xi1>, vector<1x296xf32>
    %cst_41 = arith.constant 2.11148654E-4 : f32
    %76 = arith.mulf %72, %cst_41 : f32
    %77 = vector.broadcast %76 : f32 to vector<1x296xf32>
    %78 = arith.select %60, %77, %58 : vector<1x296xi1>, vector<1x296xf32>
    %c1_i32 = arith.constant 1 : i32
    %79 = vector.broadcast %c1_i32 : i32 to vector<1x296xi32>
    %80 = arith.cmpi eq, %56, %79 : vector<1x296xi32>
    %cst_42 = arith.constant 0.000000e+00 : f32
    %81 = vector.broadcast %cst_42 : f32 to vector<1x296xf32>
    %82 = arith.select %80, %52, %81 : vector<1x296xi1>, vector<1x296xf32>
    %83 = vector.shape_cast %82 : vector<1x296xf32> to vector<1x1x296xf32>
    %cst_43 = arith.constant dense<0.000000e+00> : vector<1xf32>
    %84 = vector.multi_reduction <add>, %83, %cst_43 [1, 2] : vector<1x1x296xf32> to vector<1xf32>
    %85 = vector.shape_cast %84 : vector<1xf32> to vector<1x1x1xf32>
    %86 = vector.extract %85[0, 0, 0] : f32 from vector<1x1x1xf32>
    %cst_44 = arith.constant 0.000000e+00 : f32
    %87 = vector.broadcast %cst_44 : f32 to vector<1x296xf32>
    %88 = arith.select %80, %55, %87 : vector<1x296xi1>, vector<1x296xf32>
    %89 = vector.shape_cast %88 : vector<1x296xf32> to vector<1x1x296xf32>
    %cst_45 = arith.constant dense<0.000000e+00> : vector<1xf32>
    %90 = vector.multi_reduction <add>, %89, %cst_45 [1, 2] : vector<1x1x296xf32> to vector<1xf32>
    %91 = vector.shape_cast %90 : vector<1xf32> to vector<1x1x1xf32>
    %92 = vector.extract %91[0, 0, 0] : f32 from vector<1x1x1xf32>
    %cst_46 = arith.constant 2.11148654E-4 : f32
    %93 = arith.mulf %86, %cst_46 : f32
    %94 = vector.broadcast %93 : f32 to vector<1x296xf32>
    %95 = arith.select %80, %94, %75 : vector<1x296xi1>, vector<1x296xf32>
    %cst_47 = arith.constant 2.11148654E-4 : f32
    %96 = arith.mulf %92, %cst_47 : f32
    %97 = vector.broadcast %96 : f32 to vector<1x296xf32>
    %98 = arith.select %80, %97, %78 : vector<1x296xi1>, vector<1x296xf32>
    %99 = arith.mulf %95, %95 : vector<1x296xf32>
    %100 = arith.subf %98, %99 : vector<1x296xf32>
    %cst_48 = arith.constant 0.000000e+00 : f32
    %101 = vector.broadcast %cst_48 : f32 to vector<1x296xf32>
    %102 = arith.maximumf %100, %101 : vector<1x296xf32>
    %cst_49 = arith.constant 9.99999974E-6 : f32
    %103 = vector.broadcast %cst_49 : f32 to vector<1x296xf32>
    %104 = arith.addf %102, %103 : vector<1x296xf32>
    %105 = math.rsqrt %104 : vector<1x296xf32>
    %106 = vector.broadcast %95 : vector<1x296xf32> to vector<32x296xf32>
    %107 = arith.subf %50, %106 : vector<32x296xf32>
    %108 = vector.broadcast %105 : vector<1x296xf32> to vector<32x296xf32>
    %109 = arith.mulf %107, %108 : vector<32x296xf32>
    %110 = arith.truncf %109 : vector<32x296xf32> to vector<32x296xbf16>
    %111 = vector.extract_strided_slice %110 {offsets = [0, 0], sizes = [32, 200], strides = [1, 1]} : vector<32x296xbf16> to vector<32x200xbf16>
    %c0_50 = arith.constant 0 : index
    %c0_51 = arith.constant 0 : index
    %112 = vector.load %arg14[%c0_50, %c0_51] : memref<224x296xbf16, #tpu.memory_space<vmem>>, vector<32x200xbf16>
    tpu.vector_store %arg14[%c0_50, %c0_51], %111 {strides = array<i32>} : memref<224x296xbf16, #tpu.memory_space<vmem>>, vector<32x200xbf16>,
    %113 = vector.extract_strided_slice %110 {offsets = [0, 16], sizes = [32, 200], strides = [1, 1]} : vector<32x296xbf16> to vector<32x200xbf16>
    %c32_52 = arith.constant 32 : index
    %c0_53 = arith.constant 0 : index
    %114 = vector.load %arg14[%c32_52, %c0_53] : memref<224x296xbf16, #tpu.memory_space<vmem>>, vector<32x200xbf16>
    tpu.vector_store %arg14[%c32_52, %c0_53], %113 {strides = array<i32>} : memref<224x296xbf16, #tpu.memory_space<vmem>>, vector<32x200xbf16>,
    %115 = vector.extract_strided_slice %110 {offsets = [0, 32], sizes = [32, 200], strides = [1, 1]} : vector<32x296xbf16> to vector<32x200xbf16>
    %c64_54 = arith.constant 64 : index
    %c0_55 = arith.constant 0 : index
    %116 = vector.load %arg14[%c64_54, %c0_55] : memref<224x296xbf16, #tpu.memory_space<vmem>>, vector<32x200xbf16>
    tpu.vector_store %arg14[%c64_54, %c0_55], %115 {strides = array<i32>} : memref<224x296xbf16, #tpu.memory_space<vmem>>, vector<32x200xbf16>,
    %117 = vector.extract_strided_slice %110 {offsets = [0, 48], sizes = [32, 200], strides = [1, 1]} : vector<32x296xbf16> to vector<32x200xbf16>
    %c96_56 = arith.constant 96 : index
    %c0_57 = arith.constant 0 : index
    %118 = vector.load %arg14[%c96_56, %c0_57] : memref<224x296xbf16, #tpu.memory_space<vmem>>, vector<32x200xbf16>
    tpu.vector_store %arg14[%c96_56, %c0_57], %117 {strides = array<i32>} : memref<224x296xbf16, #tpu.memory_space<vmem>>, vector<32x200xbf16>,
    %119 = vector.extract_strided_slice %110 {offsets = [0, 64], sizes = [32, 200], strides = [1, 1]} : vector<32x296xbf16> to vector<32x200xbf16>
    %c128_58 = arith.constant 128 : index
    %c0_59 = arith.constant 0 : index
    %120 = vector.load %arg14[%c128_58, %c0_59] : memref<224x296xbf16, #tpu.memory_space<vmem>>, vector<32x200xbf16>
    tpu.vector_store %arg14[%c128_58, %c0_59], %119 {strides = array<i32>} : memref<224x296xbf16, #tpu.memory_space<vmem>>, vector<32x200xbf16>,
    %121 = vector.extract_strided_slice %110 {offsets = [0, 80], sizes = [32, 200], strides = [1, 1]} : vector<32x296xbf16> to vector<32x200xbf16>
    %c160_60 = arith.constant 160 : index
    %c0_61 = arith.constant 0 : index
    %122 = vector.load %arg14[%c160_60, %c0_61] : memref<224x296xbf16, #tpu.memory_space<vmem>>, vector<32x200xbf16>
    tpu.vector_store %arg14[%c160_60, %c0_61], %121 {strides = array<i32>} : memref<224x296xbf16, #tpu.memory_space<vmem>>, vector<32x200xbf16>,
    %123 = vector.extract_strided_slice %110 {offsets = [0, 96], sizes = [32, 200], strides = [1, 1]} : vector<32x296xbf16> to vector<32x200xbf16>
    %c192_62 = arith.constant 192 : index
    %c0_63 = arith.constant 0 : index
    %124 = vector.load %arg14[%c192_62, %c0_63] : memref<224x296xbf16, #tpu.memory_space<vmem>>, vector<32x200xbf16>
    tpu.vector_store %arg14[%c192_62, %c0_63], %123 {strides = array<i32>} : memref<224x296xbf16, #tpu.memory_space<vmem>>, vector<32x200xbf16>,
    %c1 = arith.constant 1 : index
    %c0_64 = arith.constant 0 : index
    %c0_65 = arith.constant 0 : index
    %125 = vector.load %arg5[%c1, %c0_64, %c0_65] : memref<3x64x224xbf16, #tpu.memory_space<vmem>>, vector<1x64x224xbf16>
    %126 = vector.shape_cast %125 : vector<1x64x224xbf16> to vector<64x224xbf16>
    %c0_66 = arith.constant 0 : index
    %c0_67 = arith.constant 0 : index
    %127 = vector.load %arg14[%c0_66, %c0_67] : memref<224x296xbf16, #tpu.memory_space<vmem>>, vector<224x200xbf16>
    %cst_68 = arith.constant dense<0.000000e+00> : vector<64x200xf32>
    %128 = tpu.matmul %126, %127, %cst_68 {dimension_numbers = #tpu.dot_dimension_numbers<[1], [0], [0], [1], [0, 0, 1, 1], [], []>} : vector<64x224xbf16>, vector<224x200xbf16>, vector<64x200xf32> -> vector<64x200xf32>
    %c1_69 = arith.constant 1 : index
    %c0_70 = arith.constant 0 : index
    %c0_71 = arith.constant 0 : index
    %129 = vector.load %arg6[%c1_69, %c0_70, %c0_71] : memref<3x64x1xf32, #tpu.memory_space<vmem>>, vector<1x64x1xf32>
    %130 = vector.shape_cast %129 : vector<1x64x1xf32> to vector<64x1xf32>
    %131 = vector.broadcast %130 : vector<64x1xf32> to vector<64x200xf32>
    %132 = arith.addf %128, %131 : vector<64x200xf32>
    %133 = arith.truncf %132 : vector<64x200xf32> to vector<64x200xbf16>
    %134 = vector.extract_strided_slice %133 {offsets = [0, 0], sizes = [32, 200], strides = [1, 1]} : vector<64x200xbf16> to vector<32x200xbf16>
    %135 = math.tanh %134 : vector<32x200xbf16>
    %136 = vector.extract_strided_slice %133 {offsets = [32, 0], sizes = [32, 200], strides = [1, 1]} : vector<64x200xbf16> to vector<32x200xbf16>
    %137 = arith.negf %136 : vector<32x200xbf16>
    %138 = math.exp %137 : vector<32x200xbf16>
    %cst_72 = arith.constant 1.000000e+00 : bf16
    %139 = vector.broadcast %cst_72 : bf16 to vector<32x200xbf16>
    %140 = arith.addf %139, %138 : vector<32x200xbf16>
    %141 = arith.divf %139, %140 : vector<32x200xbf16>
    %142 = arith.mulf %135, %141 : vector<32x200xbf16>
    %c1_73 = arith.constant 1 : index
    %c0_74 = arith.constant 0 : index
    %c0_75 = arith.constant 0 : index
    %143 = vector.load %arg7[%c1_73, %c0_74, %c0_75] : memref<3x32x32xbf16, #tpu.memory_space<vmem>>, vector<1x32x32xbf16>
    %144 = vector.shape_cast %143 : vector<1x32x32xbf16> to vector<32x32xbf16>
    %cst_76 = arith.constant dense<0.000000e+00> : vector<32x200xf32>
    %145 = tpu.matmul %144, %142, %cst_76 {dimension_numbers = #tpu.dot_dimension_numbers<[1], [0], [0], [1], [0, 0, 1, 1], [], []>} : vector<32x32xbf16>, vector<32x200xbf16>, vector<32x200xf32> -> vector<32x200xf32>
    %c1_77 = arith.constant 1 : index
    %c0_78 = arith.constant 0 : index
    %c0_79 = arith.constant 0 : index
    %146 = vector.load %arg8[%c1_77, %c0_78, %c0_79] : memref<3x32x1xf32, #tpu.memory_space<vmem>>, vector<1x32x1xf32>
    %147 = vector.shape_cast %146 : vector<1x32x1xf32> to vector<32x1xf32>
    %148 = vector.broadcast %147 : vector<32x1xf32> to vector<32x200xf32>
    %149 = arith.addf %145, %148 : vector<32x200xf32>
    %150 = vector.extract_strided_slice %109 {offsets = [0, 96], sizes = [32, 200], strides = [1, 1]} : vector<32x296xf32> to vector<32x200xf32>
    %151 = arith.addf %149, %150 : vector<32x200xf32>
    %cst_80 = arith.constant dense<0.000000e+00> : vector<200xf32>
    %152 = vector.multi_reduction <add>, %151, %cst_80 [0] : vector<32x200xf32> to vector<200xf32>
    %153 = vector.shape_cast %152 : vector<200xf32> to vector<1x200xf32>
    %154 = arith.mulf %151, %151 : vector<32x200xf32>
    %cst_81 = arith.constant dense<0.000000e+00> : vector<200xf32>
    %155 = vector.multi_reduction <add>, %154, %cst_81 [0] : vector<32x200xf32> to vector<200xf32>
    %156 = vector.shape_cast %155 : vector<200xf32> to vector<1x200xf32>
    %c0_82 = arith.constant 0 : index
    %c0_83 = arith.constant 0 : index
    %157 = vector.load %arg2[%c0_82, %c0_83] : memref<1x344xi32, #tpu.memory_space<vmem>>, vector<1x200xi32>
    %cst_84 = arith.constant 0.000000e+00 : f32
    %158 = vector.broadcast %cst_84 : f32 to vector<1x200xf32>
    %cst_85 = arith.constant 0.000000e+00 : f32
    %159 = vector.broadcast %cst_85 : f32 to vector<1x200xf32>
    %c0_i32_86 = arith.constant 0 : i32
    %160 = vector.broadcast %c0_i32_86 : i32 to vector<1x200xi32>
    %161 = arith.cmpi eq, %157, %160 : vector<1x200xi32>
    %cst_87 = arith.constant 0.000000e+00 : f32
    %162 = vector.broadcast %cst_87 : f32 to vector<1x200xf32>
    %163 = arith.select %161, %153, %162 : vector<1x200xi1>, vector<1x200xf32>
    %164 = vector.shape_cast %163 : vector<1x200xf32> to vector<1x1x200xf32>
    %cst_88 = arith.constant dense<0.000000e+00> : vector<1xf32>
    %165 = vector.multi_reduction <add>, %164, %cst_88 [1, 2] : vector<1x1x200xf32> to vector<1xf32>
    %166 = vector.shape_cast %165 : vector<1xf32> to vector<1x1x1xf32>
    %167 = vector.extract %166[0, 0, 0] : f32 from vector<1x1x1xf32>
    %cst_89 = arith.constant 0.000000e+00 : f32
    %168 = vector.broadcast %cst_89 : f32 to vector<1x200xf32>
    %169 = arith.select %161, %156, %168 : vector<1x200xi1>, vector<1x200xf32>
    %170 = vector.shape_cast %169 : vector<1x200xf32> to vector<1x1x200xf32>
    %cst_90 = arith.constant dense<0.000000e+00> : vector<1xf32>
    %171 = vector.multi_reduction <add>, %170, %cst_90 [1, 2] : vector<1x1x200xf32> to vector<1xf32>
    %172 = vector.shape_cast %171 : vector<1xf32> to vector<1x1x1xf32>
    %173 = vector.extract %172[0, 0, 0] : f32 from vector<1x1x1xf32>
    %cst_91 = arith.constant 3.125000e-04 : f32
    %174 = arith.mulf %167, %cst_91 : f32
    %175 = vector.broadcast %174 : f32 to vector<1x200xf32>
    %176 = arith.select %161, %175, %158 : vector<1x200xi1>, vector<1x200xf32>
    %cst_92 = arith.constant 3.125000e-04 : f32
    %177 = arith.mulf %173, %cst_92 : f32
    %178 = vector.broadcast %177 : f32 to vector<1x200xf32>
    %179 = arith.select %161, %178, %159 : vector<1x200xi1>, vector<1x200xf32>
    %c1_i32_93 = arith.constant 1 : i32
    %180 = vector.broadcast %c1_i32_93 : i32 to vector<1x200xi32>
    %181 = arith.cmpi eq, %157, %180 : vector<1x200xi32>
    %cst_94 = arith.constant 0.000000e+00 : f32
    %182 = vector.broadcast %cst_94 : f32 to vector<1x200xf32>
    %183 = arith.select %181, %153, %182 : vector<1x200xi1>, vector<1x200xf32>
    %184 = vector.shape_cast %183 : vector<1x200xf32> to vector<1x1x200xf32>
    %cst_95 = arith.constant dense<0.000000e+00> : vector<1xf32>
    %185 = vector.multi_reduction <add>, %184, %cst_95 [1, 2] : vector<1x1x200xf32> to vector<1xf32>
    %186 = vector.shape_cast %185 : vector<1xf32> to vector<1x1x1xf32>
    %187 = vector.extract %186[0, 0, 0] : f32 from vector<1x1x1xf32>
    %cst_96 = arith.constant 0.000000e+00 : f32
    %188 = vector.broadcast %cst_96 : f32 to vector<1x200xf32>
    %189 = arith.select %181, %156, %188 : vector<1x200xi1>, vector<1x200xf32>
    %190 = vector.shape_cast %189 : vector<1x200xf32> to vector<1x1x200xf32>
    %cst_97 = arith.constant dense<0.000000e+00> : vector<1xf32>
    %191 = vector.multi_reduction <add>, %190, %cst_97 [1, 2] : vector<1x1x200xf32> to vector<1xf32>
    %192 = vector.shape_cast %191 : vector<1xf32> to vector<1x1x1xf32>
    %193 = vector.extract %192[0, 0, 0] : f32 from vector<1x1x1xf32>
    %cst_98 = arith.constant 3.125000e-04 : f32
    %194 = arith.mulf %187, %cst_98 : f32
    %195 = vector.broadcast %194 : f32 to vector<1x200xf32>
    %196 = arith.select %181, %195, %176 : vector<1x200xi1>, vector<1x200xf32>
    %cst_99 = arith.constant 3.125000e-04 : f32
    %197 = arith.mulf %193, %cst_99 : f32
    %198 = vector.broadcast %197 : f32 to vector<1x200xf32>
    %199 = arith.select %181, %198, %179 : vector<1x200xi1>, vector<1x200xf32>
    %200 = arith.mulf %196, %196 : vector<1x200xf32>
    %201 = arith.subf %199, %200 : vector<1x200xf32>
    %cst_100 = arith.constant 0.000000e+00 : f32
    %202 = vector.broadcast %cst_100 : f32 to vector<1x200xf32>
    %203 = arith.maximumf %201, %202 : vector<1x200xf32>
    %cst_101 = arith.constant 9.99999974E-6 : f32
    %204 = vector.broadcast %cst_101 : f32 to vector<1x200xf32>
    %205 = arith.addf %203, %204 : vector<1x200xf32>
    %206 = math.rsqrt %205 : vector<1x200xf32>
    %207 = vector.broadcast %196 : vector<1x200xf32> to vector<32x200xf32>
    %208 = arith.subf %151, %207 : vector<32x200xf32>
    %209 = vector.broadcast %206 : vector<1x200xf32> to vector<32x200xf32>
    %210 = arith.mulf %208, %209 : vector<32x200xf32>
    %211 = arith.truncf %210 : vector<32x200xf32> to vector<32x200xbf16>
    %212 = vector.extract_strided_slice %211 {offsets = [0, 0], sizes = [32, 8], strides = [1, 1]} : vector<32x200xbf16> to vector<32x8xbf16>
    %c0_102 = arith.constant 0 : index
    %c0_103 = arith.constant 0 : index
    %213 = vector.load %arg14[%c0_102, %c0_103] : memref<224x296xbf16, #tpu.memory_space<vmem>>, vector<32x8xbf16>
    tpu.vector_store %arg14[%c0_102, %c0_103], %212 {strides = array<i32>} : memref<224x296xbf16, #tpu.memory_space<vmem>>, vector<32x8xbf16>,
    %214 = vector.extract_strided_slice %211 {offsets = [0, 32], sizes = [32, 8], strides = [1, 1]} : vector<32x200xbf16> to vector<32x8xbf16>
    %c32_104 = arith.constant 32 : index
    %c0_105 = arith.constant 0 : index
    %215 = vector.load %arg14[%c32_104, %c0_105] : memref<224x296xbf16, #tpu.memory_space<vmem>>, vector<32x8xbf16>
    tpu.vector_store %arg14[%c32_104, %c0_105], %214 {strides = array<i32>} : memref<224x296xbf16, #tpu.memory_space<vmem>>, vector<32x8xbf16>,
    %216 = vector.extract_strided_slice %211 {offsets = [0, 64], sizes = [32, 8], strides = [1, 1]} : vector<32x200xbf16> to vector<32x8xbf16>
    %c64_106 = arith.constant 64 : index
    %c0_107 = arith.constant 0 : index
    %217 = vector.load %arg14[%c64_106, %c0_107] : memref<224x296xbf16, #tpu.memory_space<vmem>>, vector<32x8xbf16>
    tpu.vector_store %arg14[%c64_106, %c0_107], %216 {strides = array<i32>} : memref<224x296xbf16, #tpu.memory_space<vmem>>, vector<32x8xbf16>,
    %218 = vector.extract_strided_slice %211 {offsets = [0, 96], sizes = [32, 8], strides = [1, 1]} : vector<32x200xbf16> to vector<32x8xbf16>
    %c96_108 = arith.constant 96 : index
    %c0_109 = arith.constant 0 : index
    %219 = vector.load %arg14[%c96_108, %c0_109] : memref<224x296xbf16, #tpu.memory_space<vmem>>, vector<32x8xbf16>
    tpu.vector_store %arg14[%c96_108, %c0_109], %218 {strides = array<i32>} : memref<224x296xbf16, #tpu.memory_space<vmem>>, vector<32x8xbf16>,
    %220 = vector.extract_strided_slice %211 {offsets = [0, 128], sizes = [32, 8], strides = [1, 1]} : vector<32x200xbf16> to vector<32x8xbf16>
    %c128_110 = arith.constant 128 : index
    %c0_111 = arith.constant 0 : index
    %221 = vector.load %arg14[%c128_110, %c0_111] : memref<224x296xbf16, #tpu.memory_space<vmem>>, vector<32x8xbf16>
    tpu.vector_store %arg14[%c128_110, %c0_111], %220 {strides = array<i32>} : memref<224x296xbf16, #tpu.memory_space<vmem>>, vector<32x8xbf16>,
    %222 = vector.extract_strided_slice %211 {offsets = [0, 160], sizes = [32, 8], strides = [1, 1]} : vector<32x200xbf16> to vector<32x8xbf16>
    %c160_112 = arith.constant 160 : index
    %c0_113 = arith.constant 0 : index
    %223 = vector.load %arg14[%c160_112, %c0_113] : memref<224x296xbf16, #tpu.memory_space<vmem>>, vector<32x8xbf16>
    tpu.vector_store %arg14[%c160_112, %c0_113], %222 {strides = array<i32>} : memref<224x296xbf16, #tpu.memory_space<vmem>>, vector<32x8xbf16>,
    %224 = vector.extract_strided_slice %211 {offsets = [0, 192], sizes = [32, 8], strides = [1, 1]} : vector<32x200xbf16> to vector<32x8xbf16>
    %c192_114 = arith.constant 192 : index
    %c0_115 = arith.constant 0 : index
    %225 = vector.load %arg14[%c192_114, %c0_115] : memref<224x296xbf16, #tpu.memory_space<vmem>>, vector<32x8xbf16>
    tpu.vector_store %arg14[%c192_114, %c0_115], %224 {strides = array<i32>} : memref<224x296xbf16, #tpu.memory_space<vmem>>, vector<32x8xbf16>,
    %c2 = arith.constant 2 : index
    %c0_116 = arith.constant 0 : index
    %c0_117 = arith.constant 0 : index
    %226 = vector.load %arg5[%c2, %c0_116, %c0_117] : memref<3x64x224xbf16, #tpu.memory_space<vmem>>, vector<1x64x224xbf16>
    %227 = vector.shape_cast %226 : vector<1x64x224xbf16> to vector<64x224xbf16>
    %c0_118 = arith.constant 0 : index
    %c0_119 = arith.constant 0 : index
    %228 = vector.load %arg14[%c0_118, %c0_119] : memref<224x296xbf16, #tpu.memory_space<vmem>>, vector<224x8xbf16>
    %cst_120 = arith.constant dense<0.000000e+00> : vector<64x8xf32>
    %229 = tpu.matmul %227, %228, %cst_120 {dimension_numbers = #tpu.dot_dimension_numbers<[1], [0], [0], [1], [0, 0, 1, 1], [], []>} : vector<64x224xbf16>, vector<224x8xbf16>, vector<64x8xf32> -> vector<64x8xf32>
    %c2_121 = arith.constant 2 : index
    %c0_122 = arith.constant 0 : index
    %c0_123 = arith.constant 0 : index
    %230 = vector.load %arg6[%c2_121, %c0_122, %c0_123] : memref<3x64x1xf32, #tpu.memory_space<vmem>>, vector<1x64x1xf32>
    %231 = vector.shape_cast %230 : vector<1x64x1xf32> to vector<64x1xf32>
    %232 = vector.broadcast %231 : vector<64x1xf32> to vector<64x8xf32>
    %233 = arith.addf %229, %232 : vector<64x8xf32>
    %234 = arith.truncf %233 : vector<64x8xf32> to vector<64x8xbf16>
    %235 = vector.extract_strided_slice %234 {offsets = [0, 0], sizes = [32, 8], strides = [1, 1]} : vector<64x8xbf16> to vector<32x8xbf16>
    %236 = math.tanh %235 : vector<32x8xbf16>
    %237 = vector.extract_strided_slice %234 {offsets = [32, 0], sizes = [32, 8], strides = [1, 1]} : vector<64x8xbf16> to vector<32x8xbf16>
    %238 = arith.negf %237 : vector<32x8xbf16>
    %239 = math.exp %238 : vector<32x8xbf16>
    %cst_124 = arith.constant 1.000000e+00 : bf16
    %240 = vector.broadcast %cst_124 : bf16 to vector<32x8xbf16>
    %241 = arith.addf %240, %239 : vector<32x8xbf16>
    %242 = arith.divf %240, %241 : vector<32x8xbf16>
    %243 = arith.mulf %236, %242 : vector<32x8xbf16>
    %c2_125 = arith.constant 2 : index
    %c0_126 = arith.constant 0 : index
    %c0_127 = arith.constant 0 : index
    %244 = vector.load %arg7[%c2_125, %c0_126, %c0_127] : memref<3x32x32xbf16, #tpu.memory_space<vmem>>, vector<1x32x32xbf16>
    %245 = vector.shape_cast %244 : vector<1x32x32xbf16> to vector<32x32xbf16>
    %cst_128 = arith.constant dense<0.000000e+00> : vector<32x8xf32>
    %246 = tpu.matmul %245, %243, %cst_128 {dimension_numbers = #tpu.dot_dimension_numbers<[1], [0], [0], [1], [0, 0, 1, 1], [], []>} : vector<32x32xbf16>, vector<32x8xbf16>, vector<32x8xf32> -> vector<32x8xf32>
    %c2_129 = arith.constant 2 : index
    %c0_130 = arith.constant 0 : index
    %c0_131 = arith.constant 0 : index
    %247 = vector.load %arg8[%c2_129, %c0_130, %c0_131] : memref<3x32x1xf32, #tpu.memory_space<vmem>>, vector<1x32x1xf32>
    %248 = vector.shape_cast %247 : vector<1x32x1xf32> to vector<32x1xf32>
    %249 = vector.broadcast %248 : vector<32x1xf32> to vector<32x8xf32>
    %250 = arith.addf %246, %249 : vector<32x8xf32>
    %251 = vector.extract_strided_slice %210 {offsets = [0, 192], sizes = [32, 8], strides = [1, 1]} : vector<32x200xf32> to vector<32x8xf32>
    %252 = arith.addf %250, %251 : vector<32x8xf32>
    %cst_132 = arith.constant dense<0.000000e+00> : vector<8xf32>
    %253 = vector.multi_reduction <add>, %252, %cst_132 [0] : vector<32x8xf32> to vector<8xf32>
    %254 = vector.shape_cast %253 : vector<8xf32> to vector<1x8xf32>
    %255 = arith.mulf %252, %252 : vector<32x8xf32>
    %cst_133 = arith.constant dense<0.000000e+00> : vector<8xf32>
    %256 = vector.multi_reduction <add>, %255, %cst_133 [0] : vector<32x8xf32> to vector<8xf32>
    %257 = vector.shape_cast %256 : vector<8xf32> to vector<1x8xf32>
    %c0_134 = arith.constant 0 : index
    %c0_135 = arith.constant 0 : index
    %258 = vector.load %arg2[%c0_134, %c0_135] : memref<1x344xi32, #tpu.memory_space<vmem>>, vector<1x8xi32>
    %cst_136 = arith.constant 0.000000e+00 : f32
    %259 = vector.broadcast %cst_136 : f32 to vector<1x8xf32>
    %cst_137 = arith.constant 0.000000e+00 : f32
    %260 = vector.broadcast %cst_137 : f32 to vector<1x8xf32>
    %c0_i32_138 = arith.constant 0 : i32
    %261 = vector.broadcast %c0_i32_138 : i32 to vector<1x8xi32>
    %262 = arith.cmpi eq, %258, %261 : vector<1x8xi32>
    %cst_139 = arith.constant 0.000000e+00 : f32
    %263 = vector.broadcast %cst_139 : f32 to vector<1x8xf32>
    %264 = arith.select %262, %254, %263 : vector<1x8xi1>, vector<1x8xf32>
    %265 = vector.shape_cast %264 : vector<1x8xf32> to vector<1x1x8xf32>
    %cst_140 = arith.constant dense<0.000000e+00> : vector<1xf32>
    %266 = vector.multi_reduction <add>, %265, %cst_140 [1, 2] : vector<1x1x8xf32> to vector<1xf32>
    %267 = vector.shape_cast %266 : vector<1xf32> to vector<1x1x1xf32>
    %268 = vector.extract %267[0, 0, 0] : f32 from vector<1x1x1xf32>
    %cst_141 = arith.constant 0.000000e+00 : f32
    %269 = vector.broadcast %cst_141 : f32 to vector<1x8xf32>
    %270 = arith.select %262, %257, %269 : vector<1x8xi1>, vector<1x8xf32>
    %271 = vector.shape_cast %270 : vector<1x8xf32> to vector<1x1x8xf32>
    %cst_142 = arith.constant dense<0.000000e+00> : vector<1xf32>
    %272 = vector.multi_reduction <add>, %271, %cst_142 [1, 2] : vector<1x1x8xf32> to vector<1xf32>
    %273 = vector.shape_cast %272 : vector<1xf32> to vector<1x1x1xf32>
    %274 = vector.extract %273[0, 0, 0] : f32 from vector<1x1x1xf32>
    %cst_143 = arith.constant 7.812500e-03 : f32
    %275 = arith.mulf %268, %cst_143 : f32
    %276 = vector.broadcast %275 : f32 to vector<1x8xf32>
    %277 = arith.select %262, %276, %259 : vector<1x8xi1>, vector<1x8xf32>
    %cst_144 = arith.constant 7.812500e-03 : f32
    %278 = arith.mulf %274, %cst_144 : f32
    %279 = vector.broadcast %278 : f32 to vector<1x8xf32>
    %280 = arith.select %262, %279, %260 : vector<1x8xi1>, vector<1x8xf32>
    %c1_i32_145 = arith.constant 1 : i32
    %281 = vector.broadcast %c1_i32_145 : i32 to vector<1x8xi32>
    %282 = arith.cmpi eq, %258, %281 : vector<1x8xi32>
    %cst_146 = arith.constant 0.000000e+00 : f32
    %283 = vector.broadcast %cst_146 : f32 to vector<1x8xf32>
    %284 = arith.select %282, %254, %283 : vector<1x8xi1>, vector<1x8xf32>
    %285 = vector.shape_cast %284 : vector<1x8xf32> to vector<1x1x8xf32>
    %cst_147 = arith.constant dense<0.000000e+00> : vector<1xf32>
    %286 = vector.multi_reduction <add>, %285, %cst_147 [1, 2] : vector<1x1x8xf32> to vector<1xf32>
    %287 = vector.shape_cast %286 : vector<1xf32> to vector<1x1x1xf32>
    %288 = vector.extract %287[0, 0, 0] : f32 from vector<1x1x1xf32>
    %cst_148 = arith.constant 0.000000e+00 : f32
    %289 = vector.broadcast %cst_148 : f32 to vector<1x8xf32>
    %290 = arith.select %282, %257, %289 : vector<1x8xi1>, vector<1x8xf32>
    %291 = vector.shape_cast %290 : vector<1x8xf32> to vector<1x1x8xf32>
    %cst_149 = arith.constant dense<0.000000e+00> : vector<1xf32>
    %292 = vector.multi_reduction <add>, %291, %cst_149 [1, 2] : vector<1x1x8xf32> to vector<1xf32>
    %293 = vector.shape_cast %292 : vector<1xf32> to vector<1x1x1xf32>
    %294 = vector.extract %293[0, 0, 0] : f32 from vector<1x1x1xf32>
    %cst_150 = arith.constant 7.812500e-03 : f32
    %295 = arith.mulf %288, %cst_150 : f32
    %296 = vector.broadcast %295 : f32 to vector<1x8xf32>
    %297 = arith.select %282, %296, %277 : vector<1x8xi1>, vector<1x8xf32>
    %cst_151 = arith.constant 7.812500e-03 : f32
    %298 = arith.mulf %294, %cst_151 : f32
    %299 = vector.broadcast %298 : f32 to vector<1x8xf32>
    %300 = arith.select %282, %299, %280 : vector<1x8xi1>, vector<1x8xf32>
    %301 = arith.mulf %297, %297 : vector<1x8xf32>
    %302 = arith.subf %300, %301 : vector<1x8xf32>
    %cst_152 = arith.constant 0.000000e+00 : f32
    %303 = vector.broadcast %cst_152 : f32 to vector<1x8xf32>
    %304 = arith.maximumf %302, %303 : vector<1x8xf32>
    %cst_153 = arith.constant 9.99999974E-6 : f32
    %305 = vector.broadcast %cst_153 : f32 to vector<1x8xf32>
    %306 = arith.addf %304, %305 : vector<1x8xf32>
    %307 = math.rsqrt %306 : vector<1x8xf32>
    %308 = vector.broadcast %297 : vector<1x8xf32> to vector<32x8xf32>
    %309 = arith.subf %252, %308 : vector<32x8xf32>
    %310 = vector.broadcast %307 : vector<1x8xf32> to vector<32x8xf32>
    %311 = arith.mulf %309, %310 : vector<32x8xf32>
    %c0_154 = arith.constant 0 : index
    %c0_155 = arith.constant 0 : index
    %312 = vector.load %arg9[%c0_154, %c0_155] : memref<32x32xbf16, #tpu.memory_space<vmem>>, vector<32x32xbf16>
    %313 = arith.truncf %311 : vector<32x8xf32> to vector<32x8xbf16>
    %cst_156 = arith.constant dense<0.000000e+00> : vector<32x8xf32>
    %314 = tpu.matmul %312, %313, %cst_156 {dimension_numbers = #tpu.dot_dimension_numbers<[1], [0], [0], [1], [0, 0, 1, 1], [], []>} : vector<32x32xbf16>, vector<32x8xbf16>, vector<32x8xf32> -> vector<32x8xf32>
    %c0_157 = arith.constant 0 : index
    %c0_158 = arith.constant 0 : index
    %315 = vector.load %arg10[%c0_157, %c0_158] : memref<32x1xf32, #tpu.memory_space<vmem>>, vector<32x1xf32>
    %316 = vector.broadcast %315 : vector<32x1xf32> to vector<32x8xf32>
    %317 = arith.addf %314, %316 : vector<32x8xf32>
    %cst_159 = arith.constant 0.000000e+00 : f32
    %318 = vector.broadcast %cst_159 : f32 to vector<32x8xf32>
    %319 = arith.maximumf %317, %318 : vector<32x8xf32>
    %c0_160 = arith.constant 0 : index
    %c0_161 = arith.constant 0 : index
    %320 = vector.load %arg11[%c0_160, %c0_161] : memref<1x32xbf16, #tpu.memory_space<vmem>>, vector<1x32xbf16>
    %321 = arith.truncf %319 : vector<32x8xf32> to vector<32x8xbf16>
    %cst_162 = arith.constant dense<0.000000e+00> : vector<1x8xf32>
    %322 = tpu.matmul %320, %321, %cst_162 {dimension_numbers = #tpu.dot_dimension_numbers<[1], [0], [0], [1], [0, 0, 1, 1], [], []>} : vector<1x32xbf16>, vector<32x8xbf16>, vector<1x8xf32> -> vector<1x8xf32>
    %c0_163 = arith.constant 0 : index
    %c0_164 = arith.constant 0 : index
    %323 = vector.load %arg12[%c0_163, %c0_164] : memref<1x1xf32, #tpu.memory_space<vmem>>, vector<1x1xf32>
    %324 = vector.broadcast %323 : vector<1x1xf32> to vector<1x8xf32>
    %325 = arith.addf %322, %324 : vector<1x8xf32>
    %c0_165 = arith.constant 0 : index
    %c0_166 = arith.constant 0 : index
    %c0_167 = arith.constant 0 : index
    %326 = vector.load %arg13[%c0_165, %c0_166, %c0_167] : memref<1x1x8xf32, #tpu.memory_space<vmem>>, vector<1x1x8xf32>
    %327 = vector.shape_cast %326 : vector<1x1x8xf32> to vector<1x8xf32>
    %328 = vector.shape_cast %325 : vector<1x8xf32> to vector<1x1x8xf32>
    tpu.vector_store %arg13[%c0_165, %c0_166, %c0_167], %328 {strides = array<i32>} : memref<1x1x8xf32, #tpu.memory_space<vmem>>, vector<1x1x8xf32>,
    return
  }
  func.func @transform_0(%arg0: i32) -> (i32, i32, i32) {
    %c0_i32 = arith.constant 0 : i32
    %c0_i32_0 = arith.constant 0 : i32
    %c0_i32_1 = arith.constant 0 : i32
    return %arg0, %c0_i32, %c0_i32_0 : i32, i32, i32
  }
  func.func @transform_1(%arg0: i32) -> (i32, i32) {
    %c0_i32 = arith.constant 0 : i32
    %c0_i32_0 = arith.constant 0 : i32
    %c0_i32_1 = arith.constant 0 : i32
    return %c0_i32, %c0_i32_0 : i32, i32
  }
  func.func @transform_2(%arg0: i32) -> (i32, i32) {
    %c0_i32 = arith.constant 0 : i32
    %c0_i32_0 = arith.constant 0 : i32
    %c0_i32_1 = arith.constant 0 : i32
    return %c0_i32, %c0_i32_0 : i32, i32
  }
  func.func @transform_3(%arg0: i32) -> (i32, i32) {
    %c0_i32 = arith.constant 0 : i32
    %c0_i32_0 = arith.constant 0 : i32
    %c0_i32_1 = arith.constant 0 : i32
    return %c0_i32, %c0_i32_0 : i32, i32
  }
  func.func @transform_4(%arg0: i32) -> (i32, i32, i32) {
    %c0_i32 = arith.constant 0 : i32
    %c0_i32_0 = arith.constant 0 : i32
    %c0_i32_1 = arith.constant 0 : i32
    %c0_i32_2 = arith.constant 0 : i32
    return %c0_i32, %c0_i32_0, %c0_i32_1 : i32, i32, i32
  }
  func.func @transform_5(%arg0: i32) -> (i32, i32, i32) {
    %c0_i32 = arith.constant 0 : i32
    %c0_i32_0 = arith.constant 0 : i32
    %c0_i32_1 = arith.constant 0 : i32
    %c0_i32_2 = arith.constant 0 : i32
    return %c0_i32, %c0_i32_0, %c0_i32_1 : i32, i32, i32
  }
  func.func @transform_6(%arg0: i32) -> (i32, i32, i32) {
    %c0_i32 = arith.constant 0 : i32
    %c0_i32_0 = arith.constant 0 : i32
    %c0_i32_1 = arith.constant 0 : i32
    %c0_i32_2 = arith.constant 0 : i32
    return %c0_i32, %c0_i32_0, %c0_i32_1 : i32, i32, i32
  }
  func.func @transform_7(%arg0: i32) -> (i32, i32, i32) {
    %c0_i32 = arith.constant 0 : i32
    %c0_i32_0 = arith.constant 0 : i32
    %c0_i32_1 = arith.constant 0 : i32
    %c0_i32_2 = arith.constant 0 : i32
    return %c0_i32, %c0_i32_0, %c0_i32_1 : i32, i32, i32
  }
  func.func @transform_8(%arg0: i32) -> (i32, i32) {
    %c0_i32 = arith.constant 0 : i32
    %c0_i32_0 = arith.constant 0 : i32
    %c0_i32_1 = arith.constant 0 : i32
    return %c0_i32, %c0_i32_0 : i32, i32
  }
  func.func @transform_9(%arg0: i32) -> (i32, i32) {
    %c0_i32 = arith.constant 0 : i32
    %c0_i32_0 = arith.constant 0 : i32
    %c0_i32_1 = arith.constant 0 : i32
    return %c0_i32, %c0_i32_0 : i32, i32
  }
  func.func @transform_10(%arg0: i32) -> (i32, i32) {
    %c0_i32 = arith.constant 0 : i32
    %c0_i32_0 = arith.constant 0 : i32
    %c0_i32_1 = arith.constant 0 : i32
    return %c0_i32, %c0_i32_0 : i32, i32
  }
  func.func @transform_11(%arg0: i32) -> (i32, i32) {
    %c0_i32 = arith.constant 0 : i32
    %c0_i32_0 = arith.constant 0 : i32
    %c0_i32_1 = arith.constant 0 : i32
    return %c0_i32, %c0_i32_0 : i32, i32
  }
  func.func @transform_12(%arg0: i32) -> (i32, i32, i32) {
    %c0_i32 = arith.constant 0 : i32
    %c0_i32_0 = arith.constant 0 : i32
    %c0_i32_1 = arith.constant 0 : i32
    return %arg0, %c0_i32, %c0_i32_0 : i32, i32, i32
  }
}

</mosaic_0001>

<llo_original>
// kernel: tpu_custom_call.1
$region0: #{tpu_custom_call.1}
  #allocation0 [shape = 'u32[]', space=smem, size = 0x4, offset = 0x4, fixed_abs, tag = 'smem constant byte address 0x4 - core index']
  #allocation1 [shape = 'u32[144,128]{1,0:T(1,128)}', space=vmem, size = 0x12000, scoped, tag = 'internal scratch']
  #allocation2 [shape = 'bf16[224,296]{1,0:T(8,128)(2,1)}', space=vmem, size = 0x2a000, scoped, tag = 'scratch operand']
  #allocation3 [shape = 'f32[1,1]{1,0:T(1,128)S(1)}', space=vmem, size = 0x200, scoped, tag = 'scoped memory for tpu_custom_call.1']
  %s0 = inlined_call_operand.vmem [shape: f32[1,1,344], index: 0, kind: input, shape index: {}]
  %s1 = inlined_call_operand.vmem [shape: s32[1,344], index: 1, kind: input, shape index: {}]
  %s2 = inlined_call_operand.vmem [shape: f32[32,1], index: 2, kind: input, shape index: {}]
  %s3 = inlined_call_operand.vmem [shape: f32[32,1], index: 3, kind: input, shape index: {}]
  %s4 = inlined_call_operand.vmem [shape: bf16[3,64,224], index: 4, kind: input, shape index: {}]
  %s5 = inlined_call_operand.vmem [shape: f32[3,64,1], index: 5, kind: input, shape index: {}]
  %s6 = inlined_call_operand.vmem [shape: bf16[3,32,32], index: 6, kind: input, shape index: {}]
  %s7 = inlined_call_operand.vmem [shape: f32[3,32,1], index: 7, kind: input, shape index: {}]
  %s8 = inlined_call_operand.vmem [shape: bf16[32,32], index: 8, kind: input, shape index: {}]
  %s9 = inlined_call_operand.vmem [shape: f32[32,1], index: 9, kind: input, shape index: {}]
  %s10 = inlined_call_operand.vmem [shape: bf16[1,32], index: 10, kind: input, shape index: {}]
  %s11 = inlined_call_operand.<no memory space> [shape: f32[1,1], index: 11, kind: input, shape index: {}]
  %s12 = inlined_call_operand.hbm [shape: f32[1,1,8], index: 12, kind: output, shape index: {}]
  %s13 = sld [smem:[#allocation0]]
  $region58: #{tpu_custom_call.1} parent=0
    _
  %s15 = ssub.s32 1, %s13
  %s16 = scalar_select 0, %s15, %s13
  %v17 = vstv %s11
  %18 = vst [vmem:[#allocation3] sm:$0x1] %v17
  $region1: #{tpu_custom_call.1} parent=0
    #allocation4 [shape = 'u8[512]{0}', space=vmem, size = 0x400, scoped, tag = 'output window, operand 0, single buffered']
    #allocation5 [shape = 's32[1]{0}', space=sflag, size = 0x4, scoped, tag = 'scoped memory for tpu_custom_call.1']
    %19 = vsyncpa [#allocation5], 0
    // Predicated region
    $region2: #{tpu_custom_call.1} parent=1 // pred_check
      _
    $region3: #{tpu_custom_call.1} parent=1 // pred_check_branch
      %21 = sbr.rel (0) target = $region5
    $region4: #{tpu_custom_call.1} parent=1 // pred_region
      _
    $region5: #{tpu_custom_call.1} parent=1 // pred_fallthru
      _
    // Predicated region
    $region6: #{tpu_custom_call.1} parent=1 // pred_check
      _
    $region7: #{tpu_custom_call.1} parent=1 // pred_check_branch
      %23 = sbr.rel (0) target = $region9
    $region8: #{tpu_custom_call.1} parent=1 // pred_region
      _
    $region9: #{tpu_custom_call.1} parent=1 // pred_fallthru
      _
    // Predicated region
    $region10: #{tpu_custom_call.1} parent=1 // pred_check
      _
    $region11: #{tpu_custom_call.1} parent=1 // pred_check_branch
      %25 = sbr.rel (0) target = $region13
    $region12: #{tpu_custom_call.1} parent=1 // pred_region
      _
    $region13: #{tpu_custom_call.1} parent=1 // pred_fallthru
      _
    // Predicated region
    $region14: #{tpu_custom_call.1} parent=1 // pred_check
      _
    $region15: #{tpu_custom_call.1} parent=1 // pred_check_branch
      %27 = sbr.rel (0) target = $region17
    $region16: #{tpu_custom_call.1} parent=1 // pred_region
      _
    $region17: #{tpu_custom_call.1} parent=1 // pred_fallthru
      _
    // Predicated region
    $region18: #{tpu_custom_call.1} parent=1 // pred_check
      _
    $region19: #{tpu_custom_call.1} parent=1 // pred_check_branch
      %29 = sbr.rel (0) target = $region21
    $region20: #{tpu_custom_call.1} parent=1 // pred_region
      _
    $region21: #{tpu_custom_call.1} parent=1 // pred_fallthru
      _
    // Predicated region
    $region22: #{tpu_custom_call.1} parent=1 // pred_check
      _
    $region23: #{tpu_custom_call.1} parent=1 // pred_check_branch
      %31 = sbr.rel (0) target = $region25
    $region24: #{tpu_custom_call.1} parent=1 // pred_region
      _
    $region25: #{tpu_custom_call.1} parent=1 // pred_fallthru
      _
    // Predicated region
    $region26: #{tpu_custom_call.1} parent=1 // pred_check
      _
    $region27: #{tpu_custom_call.1} parent=1 // pred_check_branch
      %33 = sbr.rel (0) target = $region29
    $region28: #{tpu_custom_call.1} parent=1 // pred_region
      _
    $region29: #{tpu_custom_call.1} parent=1 // pred_fallthru
      _
    // Predicated region
    $region30: #{tpu_custom_call.1} parent=1 // pred_check
      _
    $region31: #{tpu_custom_call.1} parent=1 // pred_check_branch
      %35 = sbr.rel (0) target = $region33
    $region32: #{tpu_custom_call.1} parent=1 // pred_region
      _
    $region33: #{tpu_custom_call.1} parent=1 // pred_fallthru
      _
    // Predicated region
    $region34: #{tpu_custom_call.1} parent=1 // pred_check
      _
    $region35: #{tpu_custom_call.1} parent=1 // pred_check_branch
      %37 = sbr.rel (0) target = $region37
    $region36: #{tpu_custom_call.1} parent=1 // pred_region
      _
    $region37: #{tpu_custom_call.1} parent=1 // pred_fallthru
      _
    // Predicated region
    $region38: #{tpu_custom_call.1} parent=1 // pred_check
      _
    $region39: #{tpu_custom_call.1} parent=1 // pred_check_branch
      %39 = sbr.rel (0) target = $region41
    $region40: #{tpu_custom_call.1} parent=1 // pred_region
      _
    $region41: #{tpu_custom_call.1} parent=1 // pred_fallthru
      _
    // Predicated region
    $region42: #{tpu_custom_call.1} parent=1 // pred_check
      _
    $region43: #{tpu_custom_call.1} parent=1 // pred_check_branch
      %41 = sbr.rel (0) target = $region45
    $region44: #{tpu_custom_call.1} parent=1 // pred_region
      _
    $region45: #{tpu_custom_call.1} parent=1 // pred_fallthru
      _
    // Predicated region
    $region46: #{tpu_custom_call.1} parent=1 // pred_check
      _
    $region47: #{tpu_custom_call.1} parent=1 // pred_check_branch
      %43 = sbr.rel (0) target = $region49
    $region48: #{tpu_custom_call.1} parent=1 // pred_region
      _
    $region49: #{tpu_custom_call.1} parent=1 // pred_fallthru
      _
    %v46 = vld [vmem:[%s0] sm:$0x7]
    %v47 = vld [vmem:[%s2] sm:$0xff]
    %v48 = vld [vmem:[%s2 + $0x8] sm:$0xff]
    %v49 = vld [vmem:[%s2 + $0x10] sm:$0xff]
    %v50 = vld [vmem:[%s2 + $0x18] sm:$0xff]
    %52 = vset.pattern.permute.xlu0 0
    %53 = vperm.xlu0 %52, %v47
    %v54 = vpop.permute.xlu0 %53
    %57 = vset.pattern.permute.xlu0 0
    %58 = vperm.xlu0 %57, %v48
    %v59 = vpop.permute.xlu0 %58
    %62 = vset.pattern.permute.xlu0 0
    %63 = vperm.xlu0 %62, %v49
    %v64 = vpop.permute.xlu0 %63
    %67 = vset.pattern.permute.xlu0 0
    %68 = vperm.xlu0 %67, %v50
    %v69 = vpop.permute.xlu0 %68
    %v72 = vlaneseq
    %v73 = vshrl.u32 %v72, 7
    %v74 = vsub.s32 0, %v73
    %v75 = vrot.slane %v46, %v74
    %v76 = vlaneseq
    %v77 = vshrl.u32 %v76, 7
    %v78 = vsub.s32 1, %v77
    %v79 = vrot.slane %v46, %v78
    %v80 = vlaneseq
    %v81 = vshrl.u32 %v80, 7
    %v82 = vsub.s32 2, %v81
    %v83 = vrot.slane %v46, %v82
    %v87 = vmul.f32 %v54, %v75
    %v88 = vmul.f32 %v54, %v79
    %v89 = vmul.f32 %v54, %v83
    %v90 = vmul.f32 %v59, %v75
    %v91 = vmul.f32 %v59, %v79
    %v92 = vmul.f32 %v59, %v83
    %v93 = vmul.f32 %v64, %v75
    %v94 = vmul.f32 %v64, %v79
    %v95 = vmul.f32 %v64, %v83
    %v96 = vmul.f32 %v69, %v75
    %v97 = vmul.f32 %v69, %v79
    %v98 = vmul.f32 %v69, %v83
    %v99 = vld [vmem:[%s3] sm:$0xff]
    %v100 = vld [vmem:[%s3 + $0x8] sm:$0xff]
    %v101 = vld [vmem:[%s3 + $0x10] sm:$0xff]
    %v102 = vld [vmem:[%s3 + $0x18] sm:$0xff]
    %104 = vset.pattern.permute.xlu0 0
    %105 = vperm.xlu0 %104, %v99
    %v106 = vpop.permute.xlu0 %105
    %109 = vset.pattern.permute.xlu0 0
    %110 = vperm.xlu0 %109, %v100
    %v111 = vpop.permute.xlu0 %110
    %114 = vset.pattern.permute.xlu0 0
    %115 = vperm.xlu0 %114, %v101
    %v116 = vpop.permute.xlu0 %115
    %119 = vset.pattern.permute.xlu0 0
    %120 = vperm.xlu0 %119, %v102
    %v121 = vpop.permute.xlu0 %120
    %v123 = vadd.f32 %v87, %v106
    %v124 = vadd.f32 %v88, %v106
    %v125 = vadd.f32 %v89, %v106
    %v126 = vadd.f32 %v90, %v111
    %v127 = vadd.f32 %v91, %v111
    %v128 = vadd.f32 %v92, %v111
    %v129 = vadd.f32 %v93, %v116
    %v130 = vadd.f32 %v94, %v116
    %v131 = vadd.f32 %v95, %v116
    %v132 = vadd.f32 %v96, %v121
    %v133 = vadd.f32 %v97, %v121
    %v134 = vadd.f32 %v98, %v121
    %v135 = vpack.c.bf16 %v126, %v123
    %v136 = vpack.c.bf16 %v127, %v124
    %v137 = vpack.c.bf16 %v128, %v125
    %v138 = vpack.c.bf16 %v132, %v129
    %v139 = vpack.c.bf16 %v133, %v130
    %v140 = vpack.c.bf16 %v134, %v131
    %v147 = vunpack.c.l.b16 %v135
    %v148 = vunpack.c.l.b16 %v136
    %v149 = vunpack.c.l.b16 %v137
    %v150 = vunpack.c.h.b16 %v135
    %v151 = vunpack.c.h.b16 %v136
    %v152 = vunpack.c.h.b16 %v137
    %v153 = vunpack.c.l.b16 %v138
    %v154 = vunpack.c.l.b16 %v139
    %v155 = vunpack.c.l.b16 %v140
    %v156 = vunpack.c.h.b16 %v138
    %v157 = vunpack.c.h.b16 %v139
    %v158 = vunpack.c.h.b16 %v140
    %v159 = vpack.c.b16 %v148, %v147
    %v160 = vpack.c.b16 %v149, %v149
    %v161 = vpack.c.b16 %v151, %v150
    %v162 = vpack.c.b16 %v152, %v152
    %v163 = vpack.c.b16 %v154, %v153
    %v164 = vpack.c.b16 %v155, %v155
    %v165 = vpack.c.b16 %v157, %v156
    %v166 = vpack.c.b16 %v158, %v158
    %175 = vst [vmem:[#allocation2] sm:$0xff] %v159
    %vm176 = vcmask 322560
    %177 = vst.msk [vmem:[#allocation2 + $0x8] sm:$0xf] %vm176, %v160
    %178 = vst [vmem:[#allocation2 + $0xc] sm:$0xff] %v161
    %179 = vst.msk [vmem:[#allocation2 + $0x14] sm:$0xf] %vm176, %v162
    %180 = vst [vmem:[#allocation2 + $0x18] sm:$0xff] %v163
    %181 = vst.msk [vmem:[#allocation2 + $0x20] sm:$0xf] %vm176, %v164
    %182 = vst [vmem:[#allocation2 + $0x24] sm:$0xff] %v165
    %183 = vst.msk [vmem:[#allocation2 + $0x2c] sm:$0xf] %vm176, %v166
    %184 = vrot.lane.b32.xlu0 %v159, 120
    %v185 = vpop.permute.xlu0 %184
    %186 = vrot.lane.b32.xlu0 %v160, 120
    %v187 = vpop.permute.xlu0 %186
    %188 = vrot.lane.b32.xlu0 %v161, 120
    %v189 = vpop.permute.xlu0 %188
    %190 = vrot.lane.b32.xlu0 %v162, 120
    %v191 = vpop.permute.xlu0 %190
    %192 = vrot.lane.b32.xlu0 %v163, 120
    %v193 = vpop.permute.xlu0 %192
    %194 = vrot.lane.b32.xlu0 %v164, 120
    %v195 = vpop.permute.xlu0 %194
    %196 = vrot.lane.b32.xlu0 %v165, 120
    %v197 = vpop.permute.xlu0 %196
    %198 = vrot.lane.b32.xlu0 %v166, 120
    %v199 = vpop.permute.xlu0 %198
    %v200 = vrot.slane %v185, 4
    %v201 = vrot.slane %v187, 4
    %v202 = vrot.slane %v189, 4
    %v203 = vrot.slane %v191, 4
    %v204 = vrot.slane %v193, 4
    %v205 = vrot.slane %v195, 4
    %v206 = vrot.slane %v197, 4
    %v207 = vrot.slane %v199, 4
    %vm208 = vcmask 1043456
    %v209 = vsel %vm208, %v200, %v201
    %vm210 = vcmask 982016
    %v211 = vsel %vm210, %v185, %v209
    %v212 = vsel %vm208, %v202, %v203
    %v213 = vsel %vm210, %v189, %v212
    %v214 = vsel %vm208, %v204, %v205
    %v215 = vsel %vm210, %v193, %v214
    %v216 = vsel %vm208, %v206, %v207
    %v217 = vsel %vm210, %v197, %v216
    %226 = vst [vmem:[#allocation2 + $0x30] sm:$0xff] %v211
    %227 = vst.msk [vmem:[#allocation2 + $0x38] sm:$0xf] %vm176, %v187
    %228 = vst [vmem:[#allocation2 + $0x3c] sm:$0xff] %v213
    %229 = vst.msk [vmem:[#allocation2 + $0x44] sm:$0xf] %vm176, %v191
    %230 = vst [vmem:[#allocation2 + $0x48] sm:$0xff] %v215
    %231 = vst.msk [vmem:[#allocation2 + $0x50] sm:$0xf] %vm176, %v195
    %232 = vst [vmem:[#allocation2 + $0x54] sm:$0xff] %v217
    %233 = vst.msk [vmem:[#allocation2 + $0x5c] sm:$0xf] %vm176, %v199
    %234 = vrot.lane.b32.xlu0 %v159, 112
    %v235 = vpop.permute.xlu0 %234
    %236 = vrot.lane.b32.xlu0 %v160, 112
    %v237 = vpop.permute.xlu0 %236
    %238 = vrot.lane.b32.xlu0 %v161, 112
    %v239 = vpop.permute.xlu0 %238
    %240 = vrot.lane.b32.xlu0 %v162, 112
    %v241 = vpop.permute.xlu0 %240
    %242 = vrot.lane.b32.xlu0 %v163, 112
    %v243 = vpop.permute.xlu0 %242
    %244 = vrot.lane.b32.xlu0 %v164, 112
    %v245 = vpop.permute.xlu0 %244
    %246 = vrot.lane.b32.xlu0 %v165, 112
    %v247 = vpop.permute.xlu0 %246
    %248 = vrot.lane.b32.xlu0 %v166, 112
    %v249 = vpop.permute.xlu0 %248
    %v250 = vrot.slane %v235, 4
    %v251 = vrot.slane %v237, 4
    %v252 = vrot.slane %v239, 4
    %v253 = vrot.slane %v241, 4
    %v254 = vrot.slane %v243, 4
    %v255 = vrot.slane %v245, 4
    %v256 = vrot.slane %v247, 4
    %v257 = vrot.slane %v249, 4
    %v258 = vsel %vm208, %v250, %v251
    %vm259 = vcmask 916480
    %v260 = vsel %vm259, %v235, %v258
    %v261 = vsel %vm208, %v252, %v253
    %v262 = vsel %vm259, %v239, %v261
    %v263 = vsel %vm208, %v254, %v255
    %v264 = vsel %vm259, %v243, %v263
    %v265 = vsel %vm208, %v256, %v257
    %v266 = vsel %vm259, %v247, %v265
    %275 = vst [vmem:[#allocation2 + $0x60] sm:$0xff] %v260
    %276 = vst.msk [vmem:[#allocation2 + $0x68] sm:$0xf] %vm176, %v237
    %277 = vst [vmem:[#allocation2 + $0x6c] sm:$0xff] %v262
    %278 = vst.msk [vmem:[#allocation2 + $0x74] sm:$0xf] %vm176, %v241
    %279 = vst [vmem:[#allocation2 + $0x78] sm:$0xff] %v264
    %280 = vst.msk [vmem:[#allocation2 + $0x80] sm:$0xf] %vm176, %v245
    %281 = vst [vmem:[#allocation2 + $0x84] sm:$0xff] %v266
    %282 = vst.msk [vmem:[#allocation2 + $0x8c] sm:$0xf] %vm176, %v249
    %283 = vrot.lane.b32.xlu0 %v159, 104
    %v284 = vpop.permute.xlu0 %283
    %285 = vrot.lane.b32.xlu0 %v160, 104
    %v286 = vpop.permute.xlu0 %285
    %287 = vrot.lane.b32.xlu0 %v161, 104
    %v288 = vpop.permute.xlu0 %287
    %289 = vrot.lane.b32.xlu0 %v162, 104
    %v290 = vpop.permute.xlu0 %289
    %291 = vrot.lane.b32.xlu0 %v163, 104
    %v292 = vpop.permute.xlu0 %291
    %293 = vrot.lane.b32.xlu0 %v164, 104
    %v294 = vpop.permute.xlu0 %293
    %295 = vrot.lane.b32.xlu0 %v165, 104
    %v296 = vpop.permute.xlu0 %295
    %297 = vrot.lane.b32.xlu0 %v166, 104
    %v298 = vpop.permute.xlu0 %297
    %v299 = vrot.slane %v284, 4
    %v300 = vrot.slane %v286, 4
    %v301 = vrot.slane %v288, 4
    %v302 = vrot.slane %v290, 4
    %v303 = vrot.slane %v292, 4
    %v304 = vrot.slane %v294, 4
    %v305 = vrot.slane %v296, 4
    %v306 = vrot.slane %v298, 4
    %v307 = vsel %vm208, %v299, %v300
    %vm308 = vcmask 850944
    %v309 = vsel %vm308, %v284, %v307
    %v310 = vsel %vm208, %v301, %v302
    %v311 = vsel %vm308, %v288, %v310
    %v312 = vsel %vm208, %v303, %v304
    %v313 = vsel %vm308, %v292, %v312
    %v314 = vsel %vm208, %v305, %v306
    %v315 = vsel %vm308, %v296, %v314
    %324 = vst [vmem:[#allocation2 + $0x90] sm:$0xff] %v309
    %325 = vst.msk [vmem:[#allocation2 + $0x98] sm:$0xf] %vm176, %v286
    %326 = vst [vmem:[#allocation2 + $0x9c] sm:$0xff] %v311
    %327 = vst.msk [vmem:[#allocation2 + $0xa4] sm:$0xf] %vm176, %v290
    %328 = vst [vmem:[#allocation2 + $0xa8] sm:$0xff] %v313
    %329 = vst.msk [vmem:[#allocation2 + $0xb0] sm:$0xf] %vm176, %v294
    %330 = vst [vmem:[#allocation2 + $0xb4] sm:$0xff] %v315
    %331 = vst.msk [vmem:[#allocation2 + $0xbc] sm:$0xf] %vm176, %v298
    %332 = vrot.lane.b32.xlu0 %v159, 96
    %v333 = vpop.permute.xlu0 %332
    %334 = vrot.lane.b32.xlu0 %v160, 96
    %v335 = vpop.permute.xlu0 %334
    %336 = vrot.lane.b32.xlu0 %v161, 96
    %v337 = vpop.permute.xlu0 %336
    %338 = vrot.lane.b32.xlu0 %v162, 96
    %v339 = vpop.permute.xlu0 %338
    %340 = vrot.lane.b32.xlu0 %v163, 96
    %v341 = vpop.permute.xlu0 %340
    %342 = vrot.lane.b32.xlu0 %v164, 96
    %v343 = vpop.permute.xlu0 %342
    %344 = vrot.lane.b32.xlu0 %v165, 96
    %v345 = vpop.permute.xlu0 %344
    %346 = vrot.lane.b32.xlu0 %v166, 96
    %v347 = vpop.permute.xlu0 %346
    %v348 = vrot.slane %v333, 4
    %v349 = vrot.slane %v335, 4
    %v350 = vrot.slane %v337, 4
    %v351 = vrot.slane %v339, 4
    %v352 = vrot.slane %v341, 4
    %v353 = vrot.slane %v343, 4
    %v354 = vrot.slane %v345, 4
    %v355 = vrot.slane %v347, 4
    %v356 = vsel %vm208, %v348, %v349
    %vm357 = vcmask 785408
    %v358 = vsel %vm357, %v333, %v356
    %v359 = vsel %vm208, %v350, %v351
    %v360 = vsel %vm357, %v337, %v359
    %v361 = vsel %vm208, %v352, %v353
    %v362 = vsel %vm357, %v341, %v361
    %v363 = vsel %vm208, %v354, %v355
    %v364 = vsel %vm357, %v345, %v363
    %373 = vst [vmem:[#allocation2 + $0xc0] sm:$0xff] %v358
    %374 = vst.msk [vmem:[#allocation2 + $0xc8] sm:$0xf] %vm176, %v335
    %375 = vst [vmem:[#allocation2 + $0xcc] sm:$0xff] %v360
    %376 = vst.msk [vmem:[#allocation2 + $0xd4] sm:$0xf] %vm176, %v339
    %377 = vst [vmem:[#allocation2 + $0xd8] sm:$0xff] %v362
    %378 = vst.msk [vmem:[#allocation2 + $0xe0] sm:$0xf] %vm176, %v343
    %379 = vst [vmem:[#allocation2 + $0xe4] sm:$0xff] %v364
    %380 = vst.msk [vmem:[#allocation2 + $0xec] sm:$0xf] %vm176, %v347
    %381 = vrot.lane.b32.xlu0 %v159, 88
    %v382 = vpop.permute.xlu0 %381
    %383 = vrot.lane.b32.xlu0 %v160, 88
    %v384 = vpop.permute.xlu0 %383
    %385 = vrot.lane.b32.xlu0 %v161, 88
    %v386 = vpop.permute.xlu0 %385
    %387 = vrot.lane.b32.xlu0 %v162, 88
    %v388 = vpop.permute.xlu0 %387
    %389 = vrot.lane.b32.xlu0 %v163, 88
    %v390 = vpop.permute.xlu0 %389
    %391 = vrot.lane.b32.xlu0 %v164, 88
    %v392 = vpop.permute.xlu0 %391
    %393 = vrot.lane.b32.xlu0 %v165, 88
    %v394 = vpop.permute.xlu0 %393
    %395 = vrot.lane.b32.xlu0 %v166, 88
    %v396 = vpop.permute.xlu0 %395
    %v397 = vrot.slane %v382, 4
    %v398 = vrot.slane %v384, 4
    %v399 = vrot.slane %v386, 4
    %v400 = vrot.slane %v388, 4
    %v401 = vrot.slane %v390, 4
    %v402 = vrot.slane %v392, 4
    %v403 = vrot.slane %v394, 4
    %v404 = vrot.slane %v396, 4
    %v405 = vsel %vm208, %v397, %v398
    %vm406 = vcmask 719872
    %v407 = vsel %vm406, %v382, %v405
    %v408 = vsel %vm208, %v399, %v400
    %v409 = vsel %vm406, %v386, %v408
    %v410 = vsel %vm208, %v401, %v402
    %v411 = vsel %vm406, %v390, %v410
    %v412 = vsel %vm208, %v403, %v404
    %v413 = vsel %vm406, %v394, %v412
    %422 = vst [vmem:[#allocation2 + $0xf0] sm:$0xff] %v407
    %423 = vst.msk [vmem:[#allocation2 + $0xf8] sm:$0xf] %vm176, %v384
    %424 = vst [vmem:[#allocation2 + $0xfc] sm:$0xff] %v409
    %425 = vst.msk [vmem:[#allocation2 + $0x104] sm:$0xf] %vm176, %v388
    %426 = vst [vmem:[#allocation2 + $0x108] sm:$0xff] %v411
    %427 = vst.msk [vmem:[#allocation2 + $0x110] sm:$0xf] %vm176, %v392
    %428 = vst [vmem:[#allocation2 + $0x114] sm:$0xff] %v413
    %429 = vst.msk [vmem:[#allocation2 + $0x11c] sm:$0xf] %vm176, %v396
    %430 = vrot.lane.b32.xlu0 %v159, 80
    %v431 = vpop.permute.xlu0 %430
    %432 = vrot.lane.b32.xlu0 %v160, 80
    %v433 = vpop.permute.xlu0 %432
    %434 = vrot.lane.b32.xlu0 %v161, 80
    %v435 = vpop.permute.xlu0 %434
    %436 = vrot.lane.b32.xlu0 %v162, 80
    %v437 = vpop.permute.xlu0 %436
    %438 = vrot.lane.b32.xlu0 %v163, 80
    %v439 = vpop.permute.xlu0 %438
    %440 = vrot.lane.b32.xlu0 %v164, 80
    %v441 = vpop.permute.xlu0 %440
    %442 = vrot.lane.b32.xlu0 %v165, 80
    %v443 = vpop.permute.xlu0 %442
    %444 = vrot.lane.b32.xlu0 %v166, 80
    %v445 = vpop.permute.xlu0 %444
    %v446 = vrot.slane %v431, 4
    %v447 = vrot.slane %v433, 4
    %v448 = vrot.slane %v435, 4
    %v449 = vrot.slane %v437, 4
    %v450 = vrot.slane %v439, 4
    %v451 = vrot.slane %v441, 4
    %v452 = vrot.slane %v443, 4
    %v453 = vrot.slane %v445, 4
    %v454 = vsel %vm208, %v446, %v447
    %vm455 = vcmask 654336
    %v456 = vsel %vm455, %v431, %v454
    %v457 = vsel %vm208, %v448, %v449
    %v458 = vsel %vm455, %v435, %v457
    %v459 = vsel %vm208, %v450, %v451
    %v460 = vsel %vm455, %v439, %v459
    %v461 = vsel %vm208, %v452, %v453
    %v462 = vsel %vm455, %v443, %v461
    %471 = vst [vmem:[#allocation2 + $0x120] sm:$0xff] %v456
    %472 = vst.msk [vmem:[#allocation2 + $0x128] sm:$0xf] %vm176, %v433
    %473 = vst [vmem:[#allocation2 + $0x12c] sm:$0xff] %v458
    %474 = vst.msk [vmem:[#allocation2 + $0x134] sm:$0xf] %vm176, %v437
    %475 = vst [vmem:[#allocation2 + $0x138] sm:$0xff] %v460
    %476 = vst.msk [vmem:[#allocation2 + $0x140] sm:$0xf] %vm176, %v441
    %477 = vst [vmem:[#allocation2 + $0x144] sm:$0xff] %v462
    %478 = vst.msk [vmem:[#allocation2 + $0x14c] sm:$0xf] %vm176, %v445
    %v479 = vld [vmem:[%s4] sm:$0xff]
    %v480 = vld [vmem:[%s4 + $0x8] sm:$0xff]
    %v481 = vld [vmem:[%s4 + $0x10] sm:$0xff]
    %v482 = vld [vmem:[%s4 + $0x18] sm:$0xff]
    %v483 = vld [vmem:[%s4 + $0x20] sm:$0xff]
    %v484 = vld [vmem:[%s4 + $0x28] sm:$0xff]
    %v485 = vld [vmem:[%s4 + $0x30] sm:$0xff]
    %v486 = vld [vmem:[%s4 + $0x38] sm:$0xff]
    %v487 = vld [vmem:[#allocation2] sm:$0xff]
    %v488 = vld [vmem:[#allocation2 + $0x8] sm:$0xf]
    %v489 = vld [vmem:[#allocation2 + $0xc] sm:$0xff]
    %v490 = vld [vmem:[#allocation2 + $0x14] sm:$0xf]
    %v491 = vld [vmem:[#allocation2 + $0x18] sm:$0xff]
    %v492 = vld [vmem:[#allocation2 + $0x20] sm:$0xf]
    %v493 = vld [vmem:[#allocation2 + $0x24] sm:$0xff]
    %v494 = vld [vmem:[#allocation2 + $0x2c] sm:$0xf]
    %v495 = vld [vmem:[#allocation2 + $0x30] sm:$0xff]
    %v496 = vld [vmem:[#allocation2 + $0x38] sm:$0xf]
    %v497 = vld [vmem:[#allocation2 + $0x3c] sm:$0xff]
    %v498 = vld [vmem:[#allocation2 + $0x44] sm:$0xf]
    %v499 = vld [vmem:[#allocation2 + $0x48] sm:$0xff]
    %v500 = vld [vmem:[#allocation2 + $0x50] sm:$0xf]
    %v501 = vld [vmem:[#allocation2 + $0x54] sm:$0xff]
    %v502 = vld [vmem:[#allocation2 + $0x5c] sm:$0xf]
    %v503 = vld [vmem:[#allocation2 + $0x60] sm:$0xff]
    %v504 = vld [vmem:[#allocation2 + $0x68] sm:$0xf]
    %v505 = vld [vmem:[#allocation2 + $0x6c] sm:$0xff]
    %v506 = vld [vmem:[#allocation2 + $0x74] sm:$0xf]
    %v507 = vld [vmem:[#allocation2 + $0x78] sm:$0xff]
    %v508 = vld [vmem:[#allocation2 + $0x80] sm:$0xf]
    %v509 = vld [vmem:[#allocation2 + $0x84] sm:$0xff]
    %v510 = vld [vmem:[#allocation2 + $0x8c] sm:$0xf]
    %v511 = vld [vmem:[#allocation2 + $0x90] sm:$0xff]
    %v512 = vld [vmem:[#allocation2 + $0x98] sm:$0xf]
    %v513 = vld [vmem:[#allocation2 + $0x9c] sm:$0xff]
    %v514 = vld [vmem:[#allocation2 + $0xa4] sm:$0xf]
    %v515 = vld [vmem:[#allocation2 + $0xa8] sm:$0xff]
    %v516 = vld [vmem:[#allocation2 + $0xb0] sm:$0xf]
    %v517 = vld [vmem:[#allocation2 + $0xb4] sm:$0xff]
    %v518 = vld [vmem:[#allocation2 + $0xbc] sm:$0xf]
    %v519 = vld [vmem:[#allocation2 + $0xc0] sm:$0xff]
    %v520 = vld [vmem:[#allocation2 + $0xc8] sm:$0xf]
    %v521 = vld [vmem:[#allocation2 + $0xcc] sm:$0xff]
    %v522 = vld [vmem:[#allocation2 + $0xd4] sm:$0xf]
    %v523 = vld [vmem:[#allocation2 + $0xd8] sm:$0xff]
    %v524 = vld [vmem:[#allocation2 + $0xe0] sm:$0xf]
    %v525 = vld [vmem:[#allocation2 + $0xe4] sm:$0xff]
    %v526 = vld [vmem:[#allocation2 + $0xec] sm:$0xf]
    %v527 = vld [vmem:[#allocation2 + $0xf0] sm:$0xff]
    %v528 = vld [vmem:[#allocation2 + $0xf8] sm:$0xf]
    %v529 = vld [vmem:[#allocation2 + $0xfc] sm:$0xff]
    %v530 = vld [vmem:[#allocation2 + $0x104] sm:$0xf]
    %v531 = vld [vmem:[#allocation2 + $0x108] sm:$0xff]
    %v532 = vld [vmem:[#allocation2 + $0x110] sm:$0xf]
    %v533 = vld [vmem:[#allocation2 + $0x114] sm:$0xff]
    %v534 = vld [vmem:[#allocation2 + $0x11c] sm:$0xf]
    %v535 = vld [vmem:[#allocation2 + $0x120] sm:$0xff]
    %v536 = vld [vmem:[#allocation2 + $0x128] sm:$0xf]
    %v537 = vld [vmem:[#allocation2 + $0x12c] sm:$0xff]
    %v538 = vld [vmem:[#allocation2 + $0x134] sm:$0xf]
    %v539 = vld [vmem:[#allocation2 + $0x138] sm:$0xff]
    %v540 = vld [vmem:[#allocation2 + $0x140] sm:$0xf]
    %v541 = vld [vmem:[#allocation2 + $0x144] sm:$0xff]
    %v542 = vld [vmem:[#allocation2 + $0x14c] sm:$0xf]
    %v543 = vld [vmem:[%s5] sm:$0xff]
    %v544 = vld [vmem:[%s5 + $0x8] sm:$0xff]
    %v545 = vld [vmem:[%s5 + $0x10] sm:$0xff]
    %v546 = vld [vmem:[%s5 + $0x18] sm:$0xff]
    %v547 = vld [vmem:[%s5 + $0x20] sm:$0xff]
    %v548 = vld [vmem:[%s5 + $0x28] sm:$0xff]
    %v549 = vld [vmem:[%s5 + $0x30] sm:$0xff]
    %v550 = vld [vmem:[%s5 + $0x38] sm:$0xff]
    %552 = vset.pattern.permute.xlu0 0
    %553 = vperm.xlu0 %552, %v543
    %v554 = vpop.permute.xlu0 %553
    %557 = vset.pattern.permute.xlu0 0
    %558 = vperm.xlu0 %557, %v544
    %v559 = vpop.permute.xlu0 %558
    %562 = vset.pattern.permute.xlu0 0
    %563 = vperm.xlu0 %562, %v545
    %v564 = vpop.permute.xlu0 %563
    %567 = vset.pattern.permute.xlu0 0
    %568 = vperm.xlu0 %567, %v546
    %v569 = vpop.permute.xlu0 %568
    %572 = vset.pattern.permute.xlu0 0
    %573 = vperm.xlu0 %572, %v547
    %v574 = vpop.permute.xlu0 %573
    %577 = vset.pattern.permute.xlu0 0
    %578 = vperm.xlu0 %577, %v548
    %v579 = vpop.permute.xlu0 %578
    %582 = vset.pattern.permute.xlu0 0
    %583 = vperm.xlu0 %582, %v549
    %v584 = vpop.permute.xlu0 %583
    %587 = vset.pattern.permute.xlu0 0
    %588 = vperm.xlu0 %587, %v550
    %v589 = vpop.permute.xlu0 %588
    %v599 = vunpack.c.l.b16 %v479
    %v600 = vunpack.c.h.b16 %v479
    %v601 = vunpack.c.l.b16 %v480
    %v602 = vunpack.c.h.b16 %v480
    %v603 = vunpack.c.l.b16 %v481
    %v604 = vunpack.c.h.b16 %v481
    %v605 = vunpack.c.l.b16 %v482
    %v606 = vunpack.c.h.b16 %v482
    %v607 = vunpack.c.l.b16 %v483
    %v608 = vunpack.c.h.b16 %v483
    %v609 = vunpack.c.l.b16 %v484
    %v610 = vunpack.c.h.b16 %v484
    %v611 = vunpack.c.l.b16 %v485
    %v612 = vunpack.c.h.b16 %v485
    %v613 = vunpack.c.l.b16 %v486
    %v614 = vunpack.c.h.b16 %v486
    %v615 = vpack.c.b16 %v601, %v599
    %v616 = vpack.c.b16 %v602, %v600
    %v617 = vpack.c.b16 %v605, %v603
    %v618 = vpack.c.b16 %v606, %v604
    %v619 = vpack.c.b16 %v609, %v607
    %v620 = vpack.c.b16 %v610, %v608
    %v621 = vpack.c.b16 %v613, %v611
    %v622 = vpack.c.b16 %v614, %v612
    %v683 = vunpack.c.l.b16 %v487
    %v684 = vunpack.c.h.b16 %v487
    %v685 = vunpack.c.l.b16 %v488
    %v686 = vunpack.c.l.b16 %v489
    %v687 = vunpack.c.h.b16 %v489
    %v688 = vunpack.c.l.b16 %v490
    %v689 = vunpack.c.l.b16 %v491
    %v690 = vunpack.c.h.b16 %v491
    %v691 = vunpack.c.l.b16 %v492
    %v692 = vunpack.c.l.b16 %v493
    %v693 = vunpack.c.h.b16 %v493
    %v694 = vunpack.c.l.b16 %v494
    %v695 = vunpack.c.l.b16 %v495
    %v696 = vunpack.c.h.b16 %v495
    %v697 = vunpack.c.l.b16 %v496
    %v698 = vunpack.c.l.b16 %v497
    %v699 = vunpack.c.h.b16 %v497
    %v700 = vunpack.c.l.b16 %v498
    %v701 = vunpack.c.l.b16 %v499
    %v702 = vunpack.c.h.b16 %v499
    %v703 = vunpack.c.l.b16 %v500
    %v704 = vunpack.c.l.b16 %v501
    %v705 = vunpack.c.h.b16 %v501
    %v706 = vunpack.c.l.b16 %v502
    %v707 = vunpack.c.l.b16 %v503
    %v708 = vunpack.c.h.b16 %v503
    %v709 = vunpack.c.l.b16 %v504
    %v710 = vunpack.c.l.b16 %v505
    %v711 = vunpack.c.h.b16 %v505
    %v712 = vunpack.c.l.b16 %v506
    %v713 = vunpack.c.l.b16 %v507
    %v714 = vunpack.c.h.b16 %v507
    %v715 = vunpack.c.l.b16 %v508
    %v716 = vunpack.c.l.b16 %v509
    %v717 = vunpack.c.h.b16 %v509
    %v718 = vunpack.c.l.b16 %v510
    %v719 = vunpack.c.l.b16 %v511
    %v720 = vunpack.c.h.b16 %v511
    %v721 = vunpack.c.l.b16 %v512
    %v722 = vunpack.c.l.b16 %v513
    %v723 = vunpack.c.h.b16 %v513
    %v724 = vunpack.c.l.b16 %v514
    %v725 = vunpack.c.l.b16 %v515
    %v726 = vunpack.c.h.b16 %v515
    %v727 = vunpack.c.l.b16 %v516
    %v728 = vunpack.c.l.b16 %v517
    %v729 = vunpack.c.h.b16 %v517
    %v730 = vunpack.c.l.b16 %v518
    %v731 = vunpack.c.l.b16 %v519
    %v732 = vunpack.c.h.b16 %v519
    %v733 = vunpack.c.l.b16 %v520
    %v734 = vunpack.c.l.b16 %v521
    %v735 = vunpack.c.h.b16 %v521
    %v736 = vunpack.c.l.b16 %v522
    %v737 = vunpack.c.l.b16 %v523
    %v738 = vunpack.c.h.b16 %v523
    %v739 = vunpack.c.l.b16 %v524
    %v740 = vunpack.c.l.b16 %v525
    %v741 = vunpack.c.h.b16 %v525
    %v742 = vunpack.c.l.b16 %v526
    %v743 = vunpack.c.l.b16 %v527
    %v744 = vunpack.c.h.b16 %v527
    %v745 = vunpack.c.l.b16 %v528
    %v746 = vunpack.c.l.b16 %v529
    %v747 = vunpack.c.h.b16 %v529
    %v748 = vunpack.c.l.b16 %v530
    %v749 = vunpack.c.l.b16 %v531
    %v750 = vunpack.c.h.b16 %v531
    %v751 = vunpack.c.l.b16 %v532
    %v752 = vunpack.c.l.b16 %v533
    %v753 = vunpack.c.h.b16 %v533
    %v754 = vunpack.c.l.b16 %v534
    %v755 = vunpack.c.l.b16 %v535
    %v756 = vunpack.c.h.b16 %v535
    %v757 = vunpack.c.l.b16 %v536
    %v758 = vunpack.c.l.b16 %v537
    %v759 = vunpack.c.h.b16 %v537
    %v760 = vunpack.c.l.b16 %v538
    %v761 = vunpack.c.l.b16 %v539
    %v762 = vunpack.c.h.b16 %v539
    %v763 = vunpack.c.l.b16 %v540
    %v764 = vunpack.c.l.b16 %v541
    %v765 = vunpack.c.h.b16 %v541
    %v766 = vunpack.c.l.b16 %v542
    %v767 = vpack.c.b16 %v686, %v683
    %v768 = vpack.c.b16 %v687, %v684
    %v769 = vpack.c.b16 %v688, %v685
    %v770 = vpack.c.b16 %v692, %v689
    %v771 = vpack.c.b16 %v693, %v690
    %v772 = vpack.c.b16 %v694, %v691
    %v773 = vpack.c.b16 %v698, %v695
    %v774 = vpack.c.b16 %v699, %v696
    %v775 = vpack.c.b16 %v700, %v697
    %v776 = vpack.c.b16 %v704, %v701
    %v777 = vpack.c.b16 %v705, %v702
    %v778 = vpack.c.b16 %v706, %v703
    %v779 = vpack.c.b16 %v710, %v707
    %v780 = vpack.c.b16 %v711, %v708
    %v781 = vpack.c.b16 %v712, %v709
    %v782 = vpack.c.b16 %v716, %v713
    %v783 = vpack.c.b16 %v717, %v714
    %v784 = vpack.c.b16 %v718, %v715
    %v785 = vpack.c.b16 %v722, %v719
    %v786 = vpack.c.b16 %v723, %v720
    %v787 = vpack.c.b16 %v724, %v721
    %v788 = vpack.c.b16 %v728, %v725
    %v789 = vpack.c.b16 %v729, %v726
    %v790 = vpack.c.b16 %v730, %v727
    %v791 = vpack.c.b16 %v734, %v731
    %v792 = vpack.c.b16 %v735, %v732
    %v793 = vpack.c.b16 %v736, %v733
    %v794 = vpack.c.b16 %v740, %v737
    %v795 = vpack.c.b16 %v741, %v738
    %v796 = vpack.c.b16 %v742, %v739
    %v797 = vpack.c.b16 %v746, %v743
    %v798 = vpack.c.b16 %v747, %v744
    %v799 = vpack.c.b16 %v748, %v745
    %v800 = vpack.c.b16 %v752, %v749
    %v801 = vpack.c.b16 %v753, %v750
    %v802 = vpack.c.b16 %v754, %v751
    %v803 = vpack.c.b16 %v758, %v755
    %v804 = vpack.c.b16 %v759, %v756
    %v805 = vpack.c.b16 %v760, %v757
    %v806 = vpack.c.b16 %v764, %v761
    %v807 = vpack.c.b16 %v765, %v762
    %v808 = vpack.c.b16 %v766, %v763
    %vm851 = vcmask 785408
    %v853 = vsel %vm851, %v616, 0
    %v856 = vsel %vm851, %v618, 0
    %v859 = vsel %vm851, %v620, 0
    %v862 = vsel %vm851, %v622, 0
    %864 = vmatprep.subr.bf16.mxu0 %v789
    %865 = vmatpush1.bf16.msra.mxu0 %v788
    %866 = vmatprep.subr.bf16.mxu0 %v786
    %867 = vmatpush1.bf16.msra.mxu0 %v785
    %868 = vmatprep.subr.bf16.mxu0 %v783
    %869 = vmatpush1.bf16.msra.mxu0 %v782
    %870 = vmatprep.subr.bf16.mxu0 %v780
    %871 = vmatpush1.bf16.msra.mxu0 %v779
    %872 = vmatprep.subr.bf16.mxu0 %v777
    %873 = vmatpush1.bf16.msra.mxu0 %v776
    %874 = vmatprep.subr.bf16.mxu0 %v774
    %875 = vmatpush1.bf16.msra.mxu0 %v773
    %876 = vmatprep.subr.bf16.mxu0 %v771
    %877 = vmatpush1.bf16.msra.mxu0 %v770
    %878 = vmatprep.subr.bf16.mxu0 %v768
    %879 = vmatpush1.bf16.msra.mxu0 %v767
    %880 = vmatprep.subr.bf16.mxu0 0
    %881 = vmatpush2.bf16.msra.mxu0 0
    %882 = vmatprep.subr.bf16.mxu0 0
    %883 = vmatpush2.bf16.msra.mxu0 0
    %884 = vmatprep.subr.bf16.mxu0 %v807
    %885 = vmatpush2.bf16.msra.mxu0 %v806
    %886 = vmatprep.subr.bf16.mxu0 %v804
    %887 = vmatpush2.bf16.msra.mxu0 %v803
    %888 = vmatprep.subr.bf16.mxu0 %v801
    %889 = vmatpush2.bf16.msra.mxu0 %v800
    %890 = vmatprep.subr.bf16.mxu0 %v798
    %891 = vmatpush2.bf16.msra.mxu0 %v797
    %892 = vmatprep.subr.bf16.mxu0 %v795
    %893 = vmatpush2.bf16.msra.mxu0 %v794
    %894 = vmatprep.subr.bf16.mxu0 %v792
    %895 = vmatpush2.bf16.msra.mxu0 %v791
    %896 = vmatprep.mubr.bf16.mxu0 %v853
    %897 = vmatmul.mubr.bf16.gmra.mxu0 %v615
    %v898 = vpop.f32.mrf.mxu0
    %v899 = vadd.f32 %v554, %v898
    %v900 = vpop.f32.mrf.mxu0
    %v901 = vadd.f32 %v554, %v900
    %v902 = vpop.f32.mrf.mxu0
    %v903 = vadd.f32 %v559, %v902
    %v904 = vpop.f32.mrf.mxu0
    %v905 = vadd.f32 %v559, %v904
    %906 = vmatprep.mubr.bf16.mxu0 %v856
    %907 = vmatmul.mubr.bf16.gmra.mxu0 %v617
    %v908 = vpop.f32.mrf.mxu0
    %v909 = vadd.f32 %v564, %v908
    %v910 = vpop.f32.mrf.mxu0
    %v911 = vadd.f32 %v564, %v910
    %v912 = vpop.f32.mrf.mxu0
    %v913 = vadd.f32 %v569, %v912
    %v914 = vpop.f32.mrf.mxu0
    %v915 = vadd.f32 %v569, %v914
    %916 = vmatprep.mubr.bf16.mxu0 %v859
    %917 = vmatmul.mubr.bf16.gmra.mxu0 %v619
    %v918 = vpop.f32.mrf.mxu0
    %v919 = vadd.f32 %v574, %v918
    %v920 = vpop.f32.mrf.mxu0
    %v921 = vadd.f32 %v574, %v920
    %v922 = vpop.f32.mrf.mxu0
    %v923 = vadd.f32 %v579, %v922
    %v924 = vpop.f32.mrf.mxu0
    %v925 = vadd.f32 %v579, %v924
    %926 = vmatprep.mubr.bf16.mxu0 %v862
    %927 = vmatmul.mubr.bf16.gmra.mxu0 %v621
    %v928 = vpop.f32.mrf.mxu0
    %v929 = vadd.f32 %v584, %v928
    %v930 = vpop.f32.mrf.mxu0
    %v931 = vadd.f32 %v584, %v930
    %v932 = vpop.f32.mrf.mxu0
    %v933 = vadd.f32 %v589, %v932
    %v934 = vpop.f32.mrf.mxu0
    %v935 = vadd.f32 %v589, %v934
    %936 = vdwg.mxu0
    %937 = vmatprep.subr.bf16.mxu0 0
    %938 = vmatpush1.bf16.msra.mxu0 %v790
    %939 = vmatprep.subr.bf16.mxu0 0
    %940 = vmatpush1.bf16.msra.mxu0 %v787
    %941 = vmatprep.subr.bf16.mxu0 0
    %942 = vmatpush1.bf16.msra.mxu0 %v784
    %943 = vmatprep.subr.bf16.mxu0 0
    %944 = vmatpush1.bf16.msra.mxu0 %v781
    %945 = vmatprep.subr.bf16.mxu0 0
    %946 = vmatpush1.bf16.msra.mxu0 %v778
    %947 = vmatprep.subr.bf16.mxu0 0
    %948 = vmatpush1.bf16.msra.mxu0 %v775
    %949 = vmatprep.subr.bf16.mxu0 0
    %950 = vmatpush1.bf16.msra.mxu0 %v772
    %951 = vmatprep.subr.bf16.mxu0 0
    %952 = vmatpush1.bf16.msra.mxu0 %v769
    %953 = vmatprep.subr.bf16.mxu0 0
    %954 = vmatpush2.bf16.msra.mxu0 0
    %955 = vmatprep.subr.bf16.mxu0 0
    %956 = vmatpush2.bf16.msra.mxu0 0
    %957 = vmatprep.subr.bf16.mxu0 0
    %958 = vmatpush2.bf16.msra.mxu0 %v808
    %959 = vmatprep.subr.bf16.mxu0 0
    %960 = vmatpush2.bf16.msra.mxu0 %v805
    %961 = vmatprep.subr.bf16.mxu0 0
    %962 = vmatpush2.bf16.msra.mxu0 %v802
    %963 = vmatprep.subr.bf16.mxu0 0
    %964 = vmatpush2.bf16.msra.mxu0 %v799
    %965 = vmatprep.subr.bf16.mxu0 0
    %966 = vmatpush2.bf16.msra.mxu0 %v796
    %967 = vmatprep.subr.bf16.mxu0 0
    %968 = vmatpush2.bf16.msra.mxu0 %v793
    %969 = vmatprep.mubr.bf16.mxu0 %v853
    %970 = vmatmul.mubr.bf16.gmra.mxu0 %v615
    %v971 = vpop.f32.mrf.mxu0
    %v972 = vadd.f32 %v554, %v971
    %v973 = vpop.f32.mrf.mxu0
    %v974 = vpop.f32.mrf.mxu0
    %v975 = vadd.f32 %v559, %v974
    %v976 = vpop.f32.mrf.mxu0
    %977 = vmatprep.mubr.bf16.mxu0 %v856
    %978 = vmatmul.mubr.bf16.gmra.mxu0 %v617
    %v979 = vpop.f32.mrf.mxu0
    %v980 = vadd.f32 %v564, %v979
    %v981 = vpop.f32.mrf.mxu0
    %v982 = vpop.f32.mrf.mxu0
    %v983 = vadd.f32 %v569, %v982
    %v984 = vpop.f32.mrf.mxu0
    %985 = vmatprep.mubr.bf16.mxu0 %v859
    %986 = vmatmul.mubr.bf16.gmra.mxu0 %v619
    %v987 = vpop.f32.mrf.mxu0
    %v988 = vadd.f32 %v574, %v987
    %v989 = vpop.f32.mrf.mxu0
    %v990 = vpop.f32.mrf.mxu0
    %v991 = vadd.f32 %v579, %v990
    %v992 = vpop.f32.mrf.mxu0
    %993 = vmatprep.mubr.bf16.mxu0 %v862
    %994 = vmatmul.mubr.bf16.gmra.mxu0 %v621
    %v995 = vpop.f32.mrf.mxu0
    %v996 = vadd.f32 %v584, %v995
    %v997 = vpop.f32.mrf.mxu0
    %v998 = vpop.f32.mrf.mxu0
    %v999 = vadd.f32 %v589, %v998
    %v1000 = vpop.f32.mrf.mxu0
    %1001 = vdwg.mxu0
    %v1002 = vpack.c.bf16 %v903, %v899
    %v1003 = vpack.c.bf16 %v905, %v901
    %v1004 = vpack.c.bf16 %v975, %v972
    %v1005 = vpack.c.bf16 %v913, %v909
    %v1006 = vpack.c.bf16 %v915, %v911
    %v1007 = vpack.c.bf16 %v983, %v980
    %v1008 = vpack.c.bf16 %v923, %v919
    %v1009 = vpack.c.bf16 %v925, %v921
    %v1010 = vpack.c.bf16 %v991, %v988
    %v1011 = vpack.c.bf16 %v933, %v929
    %v1012 = vpack.c.bf16 %v935, %v931
    %v1013 = vpack.c.bf16 %v999, %v996
    %v1014 = vtanh.bf16.pop %v1002
    %v1015 = vtanh.bf16.pop %v1003
    %v1016 = vtanh.bf16.pop %v1004
    %v1017 = vtanh.bf16.pop %v1005
    %v1018 = vtanh.bf16.pop %v1006
    %v1019 = vtanh.bf16.pop %v1007
    %v1020 = vxor.u32 %v1008, 2147516416
    %v1021 = vxor.u32 %v1009, 2147516416
    %v1022 = vxor.u32 %v1010, 2147516416
    %v1023 = vxor.u32 %v1011, 2147516416
    %v1024 = vxor.u32 %v1012, 2147516416
    %v1025 = vxor.u32 %v1013, 2147516416
    %v1027 = vmul.bf16 %v1020, 1069105081
    %v1028 = vpow.bf16.pop %v1027
    %v1030 = vmul.bf16 %v1021, 1069105081
    %v1031 = vpow.bf16.pop %v1030
    %v1033 = vmul.bf16 %v1022, 1069105081
    %v1034 = vpow.bf16.pop %v1033
    %v1036 = vmul.bf16 %v1023, 1069105081
    %v1037 = vpow.bf16.pop %v1036
    %v1039 = vmul.bf16 %v1024, 1069105081
    %v1040 = vpow.bf16.pop %v1039
    %v1042 = vmul.bf16 %v1025, 1069105081
    %v1043 = vpow.bf16.pop %v1042
    %v1044 = vadd.bf16 %v1028, 1065369472
    %v1045 = vadd.bf16 %v1031, 1065369472
    %v1046 = vadd.bf16 %v1034, 1065369472
    %v1047 = vadd.bf16 %v1037, 1065369472
    %v1048 = vadd.bf16 %v1040, 1065369472
    %v1049 = vadd.bf16 %v1043, 1065369472
    %v1050 = vrcp.bf16.pop %v1044
    %v1051 = vmul.bf16 1065369472, %v1050
    %v1052 = vrcp.bf16.pop %v1045
    %v1053 = vmul.bf16 1065369472, %v1052
    %v1054 = vrcp.bf16.pop %v1046
    %v1055 = vmul.bf16 1065369472, %v1054
    %v1056 = vrcp.bf16.pop %v1047
    %v1057 = vmul.bf16 1065369472, %v1056
    %v1058 = vrcp.bf16.pop %v1048
    %v1059 = vmul.bf16 1065369472, %v1058
    %v1060 = vrcp.bf16.pop %v1049
    %v1061 = vmul.bf16 1065369472, %v1060
    %v1062 = vmul.bf16 %v1014, %v1051
    %v1063 = vmul.bf16 %v1015, %v1053
    %v1064 = vmul.bf16 %v1016, %v1055
    %v1065 = vmul.bf16 %v1017, %v1057
    %v1066 = vmul.bf16 %v1018, %v1059
    %v1067 = vmul.bf16 %v1019, %v1061
    %v1068 = vld [vmem:[%s6] sm:$0xf]
    %v1069 = vld [vmem:[%s6 + $0x4] sm:$0xf]
    %v1070 = vld [vmem:[%s6 + $0x8] sm:$0xf]
    %v1071 = vld [vmem:[%s6 + $0xc] sm:$0xf]
    %v1072 = vld [vmem:[%s7] sm:$0xff]
    %v1073 = vld [vmem:[%s7 + $0x8] sm:$0xff]
    %v1074 = vld [vmem:[%s7 + $0x10] sm:$0xff]
    %v1075 = vld [vmem:[%s7 + $0x18] sm:$0xff]
    %1077 = vset.pattern.permute.xlu0 0
    %1078 = vperm.xlu0 %1077, %v1072
    %v1079 = vpop.permute.xlu0 %1078
    %1082 = vset.pattern.permute.xlu0 0
    %1083 = vperm.xlu0 %1082, %v1073
    %v1084 = vpop.permute.xlu0 %1083
    %1087 = vset.pattern.permute.xlu0 0
    %1088 = vperm.xlu0 %1087, %v1074
    %v1089 = vpop.permute.xlu0 %1088
    %1092 = vset.pattern.permute.xlu0 0
    %1093 = vperm.xlu0 %1092, %v1075
    %v1094 = vpop.permute.xlu0 %1093
    %v1100 = vunpack.c.l.b16 %v1068
    %v1101 = vunpack.c.l.b16 %v1069
    %v1102 = vunpack.c.l.b16 %v1070
    %v1103 = vunpack.c.l.b16 %v1071
    %v1104 = vpack.c.b16 %v1101, %v1100
    %v1105 = vpack.c.b16 %v1103, %v1102
    %vm1106 = vcmask 261120
    %v1108 = vsel %vm1106, %v1104, 0
    %v1111 = vsel %vm1106, %v1105, 0
    %1113 = vmatprep.subr.bf16.mxu0 0
    %1114 = vmatpush1.bf16.msra.mxu0 0
    %1115 = vmatprep.subr.bf16.mxu0 0
    %1116 = vmatpush1.bf16.msra.mxu0 0
    %1117 = vmatprep.subr.bf16.mxu0 0
    %1118 = vmatpush1.bf16.msra.mxu0 0
    %1119 = vmatprep.subr.bf16.mxu0 0
    %1120 = vmatpush1.bf16.msra.mxu0 0
    %1121 = vmatprep.subr.bf16.mxu0 0
    %1122 = vmatpush1.bf16.msra.mxu0 0
    %1123 = vmatprep.subr.bf16.mxu0 0
    %1124 = vmatpush1.bf16.msra.mxu0 0
    %1125 = vmatprep.subr.bf16.mxu0 %v1066
    %1126 = vmatpush1.bf16.msra.mxu0 %v1065
    %1127 = vmatprep.subr.bf16.mxu0 %v1063
    %1128 = vmatpush1.bf16.msra.mxu0 %v1062
    %1129 = vmatprep.subr.bf16.mxu0 0
    %1130 = vmatpush2.bf16.msra.mxu0 0
    %1131 = vmatprep.subr.bf16.mxu0 0
    %1132 = vmatpush2.bf16.msra.mxu0 0
    %1133 = vmatprep.subr.bf16.mxu0 0
    %1134 = vmatpush2.bf16.msra.mxu0 0
    %1135 = vmatprep.subr.bf16.mxu0 0
    %1136 = vmatpush2.bf16.msra.mxu0 0
    %1137 = vmatprep.subr.bf16.mxu0 0
    %1138 = vmatpush2.bf16.msra.mxu0 0
    %1139 = vmatprep.subr.bf16.mxu0 0
    %1140 = vmatpush2.bf16.msra.mxu0 0
    %1141 = vmatprep.subr.bf16.mxu0 0
    %1142 = vmatpush2.bf16.msra.mxu0 0
    %1143 = vmatprep.subr.bf16.mxu0 0
    %1144 = vmatpush2.bf16.msra.mxu0 0
    %1145 = vmatprep.mubr.bf16.mxu0 0
    %1146 = vmatmul.mubr.bf16.gmra.mxu0 %v1108
    %v1147 = vpop.f32.mrf.mxu0
    %v1148 = vadd.f32 %v1079, %v1147
    %v1149 = vpop.f32.mrf.mxu0
    %v1150 = vadd.f32 %v1079, %v1149
    %v1151 = vpop.f32.mrf.mxu0
    %v1152 = vadd.f32 %v1084, %v1151
    %v1153 = vpop.f32.mrf.mxu0
    %v1154 = vadd.f32 %v1084, %v1153
    %1155 = vmatprep.mubr.bf16.mxu0 0
    %1156 = vmatmul.mubr.bf16.gmra.mxu0 %v1111
    %v1157 = vpop.f32.mrf.mxu0
    %v1158 = vadd.f32 %v1089, %v1157
    %v1159 = vpop.f32.mrf.mxu0
    %v1160 = vadd.f32 %v1089, %v1159
    %v1161 = vpop.f32.mrf.mxu0
    %v1162 = vadd.f32 %v1094, %v1161
    %v1163 = vpop.f32.mrf.mxu0
    %v1164 = vadd.f32 %v1094, %v1163
    %1165 = vdwg.mxu0
    %1166 = vmatprep.subr.bf16.mxu0 0
    %1167 = vmatpush1.bf16.msra.mxu0 0
    %1168 = vmatprep.subr.bf16.mxu0 0
    %1169 = vmatpush1.bf16.msra.mxu0 0
    %1170 = vmatprep.subr.bf16.mxu0 0
    %1171 = vmatpush1.bf16.msra.mxu0 0
    %1172 = vmatprep.subr.bf16.mxu0 0
    %1173 = vmatpush1.bf16.msra.mxu0 0
    %1174 = vmatprep.subr.bf16.mxu0 0
    %1175 = vmatpush1.bf16.msra.mxu0 0
    %1176 = vmatprep.subr.bf16.mxu0 0
    %1177 = vmatpush1.bf16.msra.mxu0 0
    %1178 = vmatprep.subr.bf16.mxu0 0
    %1179 = vmatpush1.bf16.msra.mxu0 %v1067
    %1180 = vmatprep.subr.bf16.mxu0 0
    %1181 = vmatpush1.bf16.msra.mxu0 %v1064
    %1182 = vmatprep.subr.bf16.mxu0 0
    %1183 = vmatpush2.bf16.msra.mxu0 0
    %1184 = vmatprep.subr.bf16.mxu0 0
    %1185 = vmatpush2.bf16.msra.mxu0 0
    %1186 = vmatprep.subr.bf16.mxu0 0
    %1187 = vmatpush2.bf16.msra.mxu0 0
    %1188 = vmatprep.subr.bf16.mxu0 0
    %1189 = vmatpush2.bf16.msra.mxu0 0
    %1190 = vmatprep.subr.bf16.mxu0 0
    %1191 = vmatpush2.bf16.msra.mxu0 0
    %1192 = vmatprep.subr.bf16.mxu0 0
    %1193 = vmatpush2.bf16.msra.mxu0 0
    %1194 = vmatprep.subr.bf16.mxu0 0
    %1195 = vmatpush2.bf16.msra.mxu0 0
    %1196 = vmatprep.subr.bf16.mxu0 0
    %1197 = vmatpush2.bf16.msra.mxu0 0
    %1198 = vmatprep.mubr.bf16.mxu0 0
    %1199 = vmatmul.mubr.bf16.gmra.mxu0 %v1108
    %v1200 = vpop.f32.mrf.mxu0
    %v1201 = vadd.f32 %v1079, %v1200
    %v1202 = vpop.f32.mrf.mxu0
    %v1203 = vpop.f32.mrf.mxu0
    %v1204 = vadd.f32 %v1084, %v1203
    %v1205 = vpop.f32.mrf.mxu0
    %1206 = vmatprep.mubr.bf16.mxu0 0
    %1207 = vmatmul.mubr.bf16.gmra.mxu0 %v1111
    %v1208 = vpop.f32.mrf.mxu0
    %v1209 = vadd.f32 %v1089, %v1208
    %v1210 = vpop.f32.mrf.mxu0
    %v1211 = vpop.f32.mrf.mxu0
    %v1212 = vadd.f32 %v1094, %v1211
    %v1213 = vpop.f32.mrf.mxu0
    %1214 = vdwg.mxu0
    %1227 = vrot.lane.b32.xlu0 %v123, 80
    %v1228 = vpop.permute.xlu0 %1227
    %1229 = vrot.lane.b32.xlu0 %v124, 80
    %v1230 = vpop.permute.xlu0 %1229
    %1231 = vrot.lane.b32.xlu0 %v125, 80
    %v1232 = vpop.permute.xlu0 %1231
    %1233 = vrot.lane.b32.xlu0 %v126, 80
    %v1234 = vpop.permute.xlu0 %1233
    %1235 = vrot.lane.b32.xlu0 %v127, 80
    %v1236 = vpop.permute.xlu0 %1235
    %1237 = vrot.lane.b32.xlu0 %v128, 80
    %v1238 = vpop.permute.xlu0 %1237
    %1239 = vrot.lane.b32.xlu0 %v129, 80
    %v1240 = vpop.permute.xlu0 %1239
    %1241 = vrot.lane.b32.xlu0 %v130, 80
    %v1242 = vpop.permute.xlu0 %1241
    %1243 = vrot.lane.b32.xlu0 %v131, 80
    %v1244 = vpop.permute.xlu0 %1243
    %1245 = vrot.lane.b32.xlu0 %v132, 80
    %v1246 = vpop.permute.xlu0 %1245
    %1247 = vrot.lane.b32.xlu0 %v133, 80
    %v1248 = vpop.permute.xlu0 %1247
    %1249 = vrot.lane.b32.xlu0 %v134, 80
    %v1250 = vpop.permute.xlu0 %1249
    %vm1251 = vcmask 654336
    %v1252 = vsel %vm1251, %v1228, %v1230
    %v1253 = vsel %vm1251, %v1230, %v1232
    %v1254 = vsel %vm1251, %v1234, %v1236
    %v1255 = vsel %vm1251, %v1236, %v1238
    %v1256 = vsel %vm1251, %v1240, %v1242
    %v1257 = vsel %vm1251, %v1242, %v1244
    %v1258 = vsel %vm1251, %v1246, %v1248
    %v1259 = vsel %vm1251, %v1248, %v1250
    %v1272 = vadd.f32 %v1148, %v1252
    %v1273 = vadd.f32 %v1150, %v1253
    %v1274 = vadd.f32 %v1201, %v1232
    %v1275 = vadd.f32 %v1152, %v1254
    %v1276 = vadd.f32 %v1154, %v1255
    %v1277 = vadd.f32 %v1204, %v1238
    %v1278 = vadd.f32 %v1158, %v1256
    %v1279 = vadd.f32 %v1160, %v1257
    %v1280 = vadd.f32 %v1209, %v1244
    %v1281 = vadd.f32 %v1162, %v1258
    %v1282 = vadd.f32 %v1164, %v1259
    %v1283 = vadd.f32 %v1212, %v1250
    %v1284 = vadd.f32 %v1272, %v1275
    %v1285 = vadd.f32 %v1284, %v1278
    %v1286 = vadd.f32 %v1285, %v1281
    %v1287 = vrot.slane %v1286, 4
    %v1288 = vadd.f32 %v1286, %v1287
    %v1289 = vrot.slane %v1288, 2
    %v1290 = vadd.f32 %v1288, %v1289
    %v1291 = vrot.slane %v1290, 1
    %v1292 = vadd.f32 %v1290, %v1291
    %v1293 = vadd.f32 %v1273, %v1276
    %v1294 = vadd.f32 %v1293, %v1279
    %v1295 = vadd.f32 %v1294, %v1282
    %v1296 = vrot.slane %v1295, 4
    %v1297 = vadd.f32 %v1295, %v1296
    %v1298 = vrot.slane %v1297, 2
    %v1299 = vadd.f32 %v1297, %v1298
    %v1300 = vrot.slane %v1299, 1
    %v1301 = vadd.f32 %v1299, %v1300
    %vm1302 = vcmask 326656
    %v1303 = vsel %vm1302, %v1274, 0.0
    %v1304 = vsel %vm1302, %v1277, 0.0
    %v1305 = vadd.f32 %v1303, %v1304
    %v1306 = vsel %vm1302, %v1280, 0.0
    %v1307 = vadd.f32 %v1305, %v1306
    %v1308 = vsel %vm1302, %v1283, 0.0
    %v1309 = vadd.f32 %v1307, %v1308
    %v1310 = vrot.slane %v1309, 4
    %v1311 = vadd.f32 %v1309, %v1310
    %v1312 = vrot.slane %v1311, 2
    %v1313 = vadd.f32 %v1311, %v1312
    %v1314 = vrot.slane %v1313, 1
    %v1315 = vadd.f32 %v1313, %v1314
    %v1316 = vmul.f32 %v1272, %v1272
    %v1317 = vmul.f32 %v1273, %v1273
    %v1318 = vmul.f32 %v1274, %v1274
    %v1319 = vmul.f32 %v1275, %v1275
    %v1320 = vmul.f32 %v1276, %v1276
    %v1321 = vmul.f32 %v1277, %v1277
    %v1322 = vmul.f32 %v1278, %v1278
    %v1323 = vmul.f32 %v1279, %v1279
    %v1324 = vmul.f32 %v1280, %v1280
    %v1325 = vmul.f32 %v1281, %v1281
    %v1326 = vmul.f32 %v1282, %v1282
    %v1327 = vmul.f32 %v1283, %v1283
    %v1328 = vadd.f32 %v1316, %v1319
    %v1329 = vadd.f32 %v1328, %v1322
    %v1330 = vadd.f32 %v1329, %v1325
    %v1331 = vrot.slane %v1330, 4
    %v1332 = vadd.f32 %v1330, %v1331
    %v1333 = vrot.slane %v1332, 2
    %v1334 = vadd.f32 %v1332, %v1333
    %v1335 = vrot.slane %v1334, 1
    %v1336 = vadd.f32 %v1334, %v1335
    %v1337 = vadd.f32 %v1317, %v1320
    %v1338 = vadd.f32 %v1337, %v1323
    %v1339 = vadd.f32 %v1338, %v1326
    %v1340 = vrot.slane %v1339, 4
    %v1341 = vadd.f32 %v1339, %v1340
    %v1342 = vrot.slane %v1341, 2
    %v1343 = vadd.f32 %v1341, %v1342
    %v1344 = vrot.slane %v1343, 1
    %v1345 = vadd.f32 %v1343, %v1344
    %v1346 = vsel %vm1302, %v1318, 0.0
    %v1347 = vsel %vm1302, %v1321, 0.0
    %v1348 = vadd.f32 %v1346, %v1347
    %v1349 = vsel %vm1302, %v1324, 0.0
    %v1350 = vadd.f32 %v1348, %v1349
    %v1351 = vsel %vm1302, %v1327, 0.0
    %v1352 = vadd.f32 %v1350, %v1351
    %v1353 = vrot.slane %v1352, 4
    %v1354 = vadd.f32 %v1352, %v1353
    %v1355 = vrot.slane %v1354, 2
    %v1356 = vadd.f32 %v1354, %v1355
    %v1357 = vrot.slane %v1356, 1
    %v1358 = vadd.f32 %v1356, %v1357
    %v1359 = vld [vmem:[%s1] sm:$0x7]
    %vm1360 = vcmp.eq.s32.totalorder %v1359, 0
    %v1364 = vcombine.low %v1292, %v1301
    %v1366 = vunpack.c.l.s4 1966171168
    %v1367 = vunpack.c.0.s8 %v1366
    %v1368 = vlaneseq
    %v1369 = vshrl.u32 %v1368, 7
    %v1370 = vsub.s32 %v1367, %v1369
    %v1371 = vrot.slane %v1364, %v1370
    %v1373 = vunpack.c.l.s4 1966171168
    %v1374 = vunpack.c.0.s8 %v1373
    %v1375 = vlaneseq
    %v1376 = vshrl.u32 %v1375, 7
    %v1377 = vsub.s32 %v1374, %v1376
    %v1378 = vrot.slane %v1315, %v1377
    %v1379 = vcombine.low %v1371, %v1378
    %v1381 = vunpack.c.l.s4 1966171168
    %v1382 = vunpack.c.0.s8 %v1381
    %v1383 = vlaneseq
    %v1384 = vshrl.u32 %v1383, 7
    %v1385 = vsub.s32 %v1382, %v1384
    %v1386 = vrot.slane %v1379, %v1385
    %v1388 = vsel %vm1360, %v1386, 0.0
    %v1390 = vlaneseq
    %v1391 = vshrl.u32 %v1390, 7
    %v1392 = vsub.s32 0, %v1391
    %v1393 = vrot.slane %v1388, %v1392
    %v1394 = vlaneseq
    %v1395 = vshrl.u32 %v1394, 7
    %v1396 = vsub.s32 1, %v1395
    %v1397 = vrot.slane %v1388, %v1396
    %v1398 = vlaneseq
    %v1399 = vshrl.u32 %v1398, 7
    %v1400 = vsub.s32 2, %v1399
    %v1401 = vrot.slane %v1388, %v1400
    %vm1405 = vcmask 1040384
    %v1406 = vsel %vm1405, %v1393, 0.0
    %v1407 = vsel %vm1405, %v1397, 0.0
    %v1408 = vadd.f32 %v1406, %v1407
    %vm1409 = vcmask 319488
    %v1410 = vsel %vm1409, %v1401, 0.0
    %v1411 = vadd.f32 %v1408, %v1410
    %1412 = vadd.xlane.f32.xlu0 %v1411
    %v1413 = vpop.xlane.xlu0 %1412
    %v1414 = vrot.slane %v1413, 4
    %v1415 = vadd.f32 %v1413, %v1414
    %v1416 = vrot.slane %v1415, 2
    %v1417 = vadd.f32 %v1415, %v1416
    %v1418 = vrot.slane %v1417, 1
    %v1419 = vadd.f32 %v1417, %v1418
    %s1420 = vtos %v1419
    %v1424 = vcombine.low %v1336, %v1345
    %v1426 = vunpack.c.l.s4 1966171168
    %v1427 = vunpack.c.0.s8 %v1426
    %v1428 = vlaneseq
    %v1429 = vshrl.u32 %v1428, 7
    %v1430 = vsub.s32 %v1427, %v1429
    %v1431 = vrot.slane %v1424, %v1430
    %v1433 = vunpack.c.l.s4 1966171168
    %v1434 = vunpack.c.0.s8 %v1433
    %v1435 = vlaneseq
    %v1436 = vshrl.u32 %v1435, 7
    %v1437 = vsub.s32 %v1434, %v1436
    %v1438 = vrot.slane %v1358, %v1437
    %v1439 = vcombine.low %v1431, %v1438
    %v1441 = vunpack.c.l.s4 1966171168
    %v1442 = vunpack.c.0.s8 %v1441
    %v1443 = vlaneseq
    %v1444 = vshrl.u32 %v1443, 7
    %v1445 = vsub.s32 %v1442, %v1444
    %v1446 = vrot.slane %v1439, %v1445
    %v1448 = vsel %vm1360, %v1446, 0.0
    %v1450 = vlaneseq
    %v1451 = vshrl.u32 %v1450, 7
    %v1452 = vsub.s32 0, %v1451
    %v1453 = vrot.slane %v1448, %v1452
    %v1454 = vlaneseq
    %v1455 = vshrl.u32 %v1454, 7
    %v1456 = vsub.s32 1, %v1455
    %v1457 = vrot.slane %v1448, %v1456
    %v1458 = vlaneseq
    %v1459 = vshrl.u32 %v1458, 7
    %v1460 = vsub.s32 2, %v1459
    %v1461 = vrot.slane %v1448, %v1460
    %v1465 = vsel %vm1405, %v1453, 0.0
    %v1466 = vsel %vm1405, %v1457, 0.0
    %v1467 = vadd.f32 %v1465, %v1466
    %v1468 = vsel %vm1409, %v1461, 0.0
    %v1469 = vadd.f32 %v1467, %v1468
    %1470 = vadd.xlane.f32.xlu0 %v1469
    %v1471 = vpop.xlane.xlu0 %1470
    %v1472 = vrot.slane %v1471, 4
    %v1473 = vadd.f32 %v1471, %v1472
    %v1474 = vrot.slane %v1473, 2
    %v1475 = vadd.f32 %v1473, %v1474
    %v1476 = vrot.slane %v1475, 1
    %v1477 = vadd.f32 %v1475, %v1476
    %s1478 = vtos %v1477
    %s1479 = smul.f32 %s1420, 0.00021114865
    %v1480 = vstv %s1479
    %v1481 = vsel %vm1360, %v1480, 0.0
    %s1482 = smul.f32 %s1478, 0.00021114865
    %v1483 = vstv %s1482
    %v1484 = vsel %vm1360, %v1483, 0.0
    %vm1485 = vcmp.eq.s32.totalorder %v1359, 1
    %v1486 = vsel %vm1485, %v1386, 0.0
    %v1488 = vlaneseq
    %v1489 = vshrl.u32 %v1488, 7
    %v1490 = vsub.s32 0, %v1489
    %v1491 = vrot.slane %v1486, %v1490
    %v1492 = vlaneseq
    %v1493 = vshrl.u32 %v1492, 7
    %v1494 = vsub.s32 1, %v1493
    %v1495 = vrot.slane %v1486, %v1494
    %v1496 = vlaneseq
    %v1497 = vshrl.u32 %v1496, 7
    %v1498 = vsub.s32 2, %v1497
    %v1499 = vrot.slane %v1486, %v1498
    %v1503 = vsel %vm1405, %v1491, 0.0
    %v1504 = vsel %vm1405, %v1495, 0.0
    %v1505 = vadd.f32 %v1503, %v1504
    %v1506 = vsel %vm1409, %v1499, 0.0
    %v1507 = vadd.f32 %v1505, %v1506
    %1508 = vadd.xlane.f32.xlu0 %v1507
    %v1509 = vpop.xlane.xlu0 %1508
    %v1510 = vrot.slane %v1509, 4
    %v1511 = vadd.f32 %v1509, %v1510
    %v1512 = vrot.slane %v1511, 2
    %v1513 = vadd.f32 %v1511, %v1512
    %v1514 = vrot.slane %v1513, 1
    %v1515 = vadd.f32 %v1513, %v1514
    %s1516 = vtos %v1515
    %v1517 = vsel %vm1485, %v1446, 0.0
    %v1519 = vlaneseq
    %v1520 = vshrl.u32 %v1519, 7
    %v1521 = vsub.s32 0, %v1520
    %v1522 = vrot.slane %v1517, %v1521
    %v1523 = vlaneseq
    %v1524 = vshrl.u32 %v1523, 7
    %v1525 = vsub.s32 1, %v1524
    %v1526 = vrot.slane %v1517, %v1525
    %v1527 = vlaneseq
    %v1528 = vshrl.u32 %v1527, 7
    %v1529 = vsub.s32 2, %v1528
    %v1530 = vrot.slane %v1517, %v1529
    %v1534 = vsel %vm1405, %v1522, 0.0
    %v1535 = vsel %vm1405, %v1526, 0.0
    %v1536 = vadd.f32 %v1534, %v1535
    %v1537 = vsel %vm1409, %v1530, 0.0
    %v1538 = vadd.f32 %v1536, %v1537
    %1539 = vadd.xlane.f32.xlu0 %v1538
    %v1540 = vpop.xlane.xlu0 %1539
    %v1541 = vrot.slane %v1540, 4
    %v1542 = vadd.f32 %v1540, %v1541
    %v1543 = vrot.slane %v1542, 2
    %v1544 = vadd.f32 %v1542, %v1543
    %v1545 = vrot.slane %v1544, 1
    %v1546 = vadd.f32 %v1544, %v1545
    %s1547 = vtos %v1546
    %s1548 = smul.f32 %s1516, 0.00021114865
    %v1549 = vstv %s1548
    %v1550 = vsel %vm1485, %v1549, %v1481
    %s1551 = smul.f32 %s1547, 0.00021114865
    %v1552 = vstv %s1551
    %v1553 = vsel %vm1485, %v1552, %v1484
    %v1554 = vmul.f32 %v1550, %v1550
    %v1555 = vsub.f32 %v1553, %v1554
    %v1556 = vmax.f32 %v1555, 0.0
    %v1557 = vadd.f32 %v1556, 1e-05
    %v1558 = vrsqrt.pop %v1557
    %v1560 = vlaneseq
    %v1561 = vshrl.u32 %v1560, 7
    %v1562 = vsub.s32 0, %v1561
    %v1563 = vrot.slane %v1550, %v1562
    %v1564 = vlaneseq
    %v1565 = vshrl.u32 %v1564, 7
    %v1566 = vsub.s32 1, %v1565
    %v1567 = vrot.slane %v1550, %v1566
    %v1568 = vlaneseq
    %v1569 = vshrl.u32 %v1568, 7
    %v1570 = vsub.s32 2, %v1569
    %v1571 = vrot.slane %v1550, %v1570
    %v1575 = vsub.f32 %v1272, %v1563
    %v1576 = vsub.f32 %v1273, %v1567
    %v1577 = vsub.f32 %v1274, %v1571
    %v1578 = vsub.f32 %v1275, %v1563
    %v1579 = vsub.f32 %v1276, %v1567
    %v1580 = vsub.f32 %v1277, %v1571
    %v1581 = vsub.f32 %v1278, %v1563
    %v1582 = vsub.f32 %v1279, %v1567
    %v1583 = vsub.f32 %v1280, %v1571
    %v1584 = vsub.f32 %v1281, %v1563
    %v1585 = vsub.f32 %v1282, %v1567
    %v1586 = vsub.f32 %v1283, %v1571
    %v1588 = vlaneseq
    %v1589 = vshrl.u32 %v1588, 7
    %v1590 = vsub.s32 0, %v1589
    %v1591 = vrot.slane %v1558, %v1590
    %v1592 = vlaneseq
    %v1593 = vshrl.u32 %v1592, 7
    %v1594 = vsub.s32 1, %v1593
    %v1595 = vrot.slane %v1558, %v1594
    %v1596 = vlaneseq
    %v1597 = vshrl.u32 %v1596, 7
    %v1598 = vsub.s32 2, %v1597
    %v1599 = vrot.slane %v1558, %v1598
    %v1603 = vmul.f32 %v1575, %v1591
    %v1604 = vmul.f32 %v1576, %v1595
    %v1605 = vmul.f32 %v1577, %v1599
    %v1606 = vmul.f32 %v1578, %v1591
    %v1607 = vmul.f32 %v1579, %v1595
    %v1608 = vmul.f32 %v1580, %v1599
    %v1609 = vmul.f32 %v1581, %v1591
    %v1610 = vmul.f32 %v1582, %v1595
    %v1611 = vmul.f32 %v1583, %v1599
    %v1612 = vmul.f32 %v1584, %v1591
    %v1613 = vmul.f32 %v1585, %v1595
    %v1614 = vmul.f32 %v1586, %v1599
    %v1615 = vpack.c.bf16 %v1606, %v1603
    %v1616 = vpack.c.bf16 %v1607, %v1604
    %v1617 = vpack.c.bf16 %v1608, %v1605
    %v1618 = vpack.c.bf16 %v1612, %v1609
    %v1619 = vpack.c.bf16 %v1613, %v1610
    %v1620 = vpack.c.bf16 %v1614, %v1611
    %v1625 = vunpack.c.l.b16 %v1615
    %v1626 = vunpack.c.l.b16 %v1616
    %v1627 = vunpack.c.h.b16 %v1615
    %v1628 = vunpack.c.h.b16 %v1616
    %v1629 = vunpack.c.l.b16 %v1618
    %v1630 = vunpack.c.l.b16 %v1619
    %v1631 = vunpack.c.h.b16 %v1618
    %v1632 = vunpack.c.h.b16 %v1619
    %v1633 = vpack.c.b16 %v1626, %v1625
    %v1634 = vpack.c.b16 %v1628, %v1627
    %v1635 = vpack.c.b16 %v1630, %v1629
    %v1636 = vpack.c.b16 %v1632, %v1631
    %vm1641 = vcmask 1043456
    %vm1642 = vcmask 588804
    %vm1643 = vmor %vm1642, %vm1641
    %1644 = vst.msk [vmem:[#allocation2] sm:$0xff] %vm1643, %v1633
    %1645 = vst.msk [vmem:[#allocation2 + $0xc] sm:$0xff] %vm1643, %v1634
    %1646 = vst.msk [vmem:[#allocation2 + $0x18] sm:$0xff] %vm1643, %v1635
    %1647 = vst.msk [vmem:[#allocation2 + $0x24] sm:$0xff] %vm1643, %v1636
    %1648 = vrot.lane.b32.xlu0 %v1633, 112
    %v1649 = vpop.permute.xlu0 %1648
    %1650 = vrot.lane.b32.xlu0 %v1634, 112
    %v1651 = vpop.permute.xlu0 %1650
    %1652 = vrot.lane.b32.xlu0 %v1635, 112
    %v1653 = vpop.permute.xlu0 %1652
    %1654 = vrot.lane.b32.xlu0 %v1636, 112
    %v1655 = vpop.permute.xlu0 %1654
    %v1656 = vrot.slane %v1649, 4
    %v1657 = vrot.slane %v1651, 4
    %v1658 = vrot.slane %v1653, 4
    %v1659 = vrot.slane %v1655, 4
    %v1660 = vsel %vm259, %v1649, %v1656
    %v1661 = vsel %vm259, %v1651, %v1657
    %v1662 = vsel %vm259, %v1653, %v1658
    %v1663 = vsel %vm259, %v1655, %v1659
    %1668 = vst.msk [vmem:[#allocation2 + $0x30] sm:$0xff] %vm1643, %v1660
    %1669 = vst.msk [vmem:[#allocation2 + $0x3c] sm:$0xff] %vm1643, %v1661
    %1670 = vst.msk [vmem:[#allocation2 + $0x48] sm:$0xff] %vm1643, %v1662
    %1671 = vst.msk [vmem:[#allocation2 + $0x54] sm:$0xff] %vm1643, %v1663
    %1672 = vrot.lane.b32.xlu0 %v1633, 96
    %v1673 = vpop.permute.xlu0 %1672
    %1674 = vrot.lane.b32.xlu0 %v1634, 96
    %v1675 = vpop.permute.xlu0 %1674
    %1676 = vrot.lane.b32.xlu0 %v1635, 96
    %v1677 = vpop.permute.xlu0 %1676
    %1678 = vrot.lane.b32.xlu0 %v1636, 96
    %v1679 = vpop.permute.xlu0 %1678
    %v1680 = vrot.slane %v1673, 4
    %v1681 = vrot.slane %v1675, 4
    %v1682 = vrot.slane %v1677, 4
    %v1683 = vrot.slane %v1679, 4
    %v1684 = vsel %vm357, %v1673, %v1680
    %v1685 = vsel %vm357, %v1675, %v1681
    %v1686 = vsel %vm357, %v1677, %v1682
    %v1687 = vsel %vm357, %v1679, %v1683
    %1692 = vst.msk [vmem:[#allocation2 + $0x60] sm:$0xff] %vm1643, %v1684
    %1693 = vst.msk [vmem:[#allocation2 + $0x6c] sm:$0xff] %vm1643, %v1685
    %1694 = vst.msk [vmem:[#allocation2 + $0x78] sm:$0xff] %vm1643, %v1686
    %1695 = vst.msk [vmem:[#allocation2 + $0x84] sm:$0xff] %vm1643, %v1687
    %1696 = vrot.lane.b32.xlu0 %v1633, 80
    %v1697 = vpop.permute.xlu0 %1696
    %1698 = vrot.lane.b32.xlu0 %v1634, 80
    %v1699 = vpop.permute.xlu0 %1698
    %1700 = vrot.lane.b32.xlu0 %v1635, 80
    %v1701 = vpop.permute.xlu0 %1700
    %1702 = vrot.lane.b32.xlu0 %v1636, 80
    %v1703 = vpop.permute.xlu0 %1702
    %v1704 = vrot.slane %v1697, 4
    %v1705 = vrot.slane %v1699, 4
    %v1706 = vrot.slane %v1701, 4
    %v1707 = vrot.slane %v1703, 4
    %v1708 = vsel %vm455, %v1697, %v1704
    %v1709 = vsel %vm455, %v1699, %v1705
    %v1710 = vsel %vm455, %v1701, %v1706
    %v1711 = vsel %vm455, %v1703, %v1707
    %1716 = vst.msk [vmem:[#allocation2 + $0x90] sm:$0xff] %vm1643, %v1708
    %1717 = vst.msk [vmem:[#allocation2 + $0x9c] sm:$0xff] %vm1643, %v1709
    %1718 = vst.msk [vmem:[#allocation2 + $0xa8] sm:$0xff] %vm1643, %v1710
    %1719 = vst.msk [vmem:[#allocation2 + $0xb4] sm:$0xff] %vm1643, %v1711
    %v1722 = vunpack.c.l.b16 %v1617
    %v1723 = vunpack.c.h.b16 %v1617
    %v1724 = vunpack.c.l.b16 %v1620
    %v1725 = vunpack.c.h.b16 %v1620
    %v1726 = vpack.c.b16 %v1722, %v1722
    %v1727 = vpack.c.b16 %v1723, %v1723
    %v1728 = vpack.c.b16 %v1724, %v1724
    %v1729 = vpack.c.b16 %v1725, %v1725
    %1730 = vrot.lane.b32.xlu0 %v1633, 64
    %v1731 = vpop.permute.xlu0 %1730
    %1732 = vrot.lane.b32.xlu0 %v1726, 64
    %v1733 = vpop.permute.xlu0 %1732
    %1734 = vrot.lane.b32.xlu0 %v1634, 64
    %v1735 = vpop.permute.xlu0 %1734
    %1736 = vrot.lane.b32.xlu0 %v1727, 64
    %v1737 = vpop.permute.xlu0 %1736
    %1738 = vrot.lane.b32.xlu0 %v1635, 64
    %v1739 = vpop.permute.xlu0 %1738
    %1740 = vrot.lane.b32.xlu0 %v1728, 64
    %v1741 = vpop.permute.xlu0 %1740
    %1742 = vrot.lane.b32.xlu0 %v1636, 64
    %v1743 = vpop.permute.xlu0 %1742
    %1744 = vrot.lane.b32.xlu0 %v1729, 64
    %v1745 = vpop.permute.xlu0 %1744
    %v1746 = vrot.slane %v1731, 4
    %v1747 = vrot.slane %v1733, 4
    %v1748 = vrot.slane %v1735, 4
    %v1749 = vrot.slane %v1737, 4
    %v1750 = vrot.slane %v1739, 4
    %v1751 = vrot.slane %v1741, 4
    %v1752 = vrot.slane %v1743, 4
    %v1753 = vrot.slane %v1745, 4
    %v1754 = vsel %vm208, %v1746, %v1747
    %vm1755 = vcmask 523264
    %v1756 = vsel %vm1755, %v1731, %v1754
    %v1757 = vsel %vm208, %v1748, %v1749
    %v1758 = vsel %vm1755, %v1735, %v1757
    %v1759 = vsel %vm208, %v1750, %v1751
    %v1760 = vsel %vm1755, %v1739, %v1759
    %v1761 = vsel %vm208, %v1752, %v1753
    %v1762 = vsel %vm1755, %v1743, %v1761
    %1767 = vst.msk [vmem:[#allocation2 + $0xc0] sm:$0xff] %vm1643, %v1756
    %1768 = vst.msk [vmem:[#allocation2 + $0xcc] sm:$0xff] %vm1643, %v1758
    %1769 = vst.msk [vmem:[#allocation2 + $0xd8] sm:$0xff] %vm1643, %v1760
    %1770 = vst.msk [vmem:[#allocation2 + $0xe4] sm:$0xff] %vm1643, %v1762
    %1771 = vrot.lane.b32.xlu0 %v1633, 48
    %v1772 = vpop.permute.xlu0 %1771
    %1773 = vrot.lane.b32.xlu0 %v1726, 48
    %v1774 = vpop.permute.xlu0 %1773
    %1775 = vrot.lane.b32.xlu0 %v1634, 48
    %v1776 = vpop.permute.xlu0 %1775
    %1777 = vrot.lane.b32.xlu0 %v1727, 48
    %v1778 = vpop.permute.xlu0 %1777
    %1779 = vrot.lane.b32.xlu0 %v1635, 48
    %v1780 = vpop.permute.xlu0 %1779
    %1781 = vrot.lane.b32.xlu0 %v1728, 48
    %v1782 = vpop.permute.xlu0 %1781
    %1783 = vrot.lane.b32.xlu0 %v1636, 48
    %v1784 = vpop.permute.xlu0 %1783
    %1785 = vrot.lane.b32.xlu0 %v1729, 48
    %v1786 = vpop.permute.xlu0 %1785
    %v1787 = vrot.slane %v1772, 4
    %v1788 = vrot.slane %v1774, 4
    %v1789 = vrot.slane %v1776, 4
    %v1790 = vrot.slane %v1778, 4
    %v1791 = vrot.slane %v1780, 4
    %v1792 = vrot.slane %v1782, 4
    %v1793 = vrot.slane %v1784, 4
    %v1794 = vrot.slane %v1786, 4
    %v1795 = vsel %vm208, %v1787, %v1788
    %vm1796 = vcmask 392192
    %v1797 = vsel %vm1796, %v1772, %v1795
    %v1798 = vsel %vm208, %v1789, %v1790
    %v1799 = vsel %vm1796, %v1776, %v1798
    %v1800 = vsel %vm208, %v1791, %v1792
    %v1801 = vsel %vm1796, %v1780, %v1800
    %v1802 = vsel %vm208, %v1793, %v1794
    %v1803 = vsel %vm1796, %v1784, %v1802
    %1808 = vst.msk [vmem:[#allocation2 + $0xf0] sm:$0xff] %vm1643, %v1797
    %1809 = vst.msk [vmem:[#allocation2 + $0xfc] sm:$0xff] %vm1643, %v1799
    %1810 = vst.msk [vmem:[#allocation2 + $0x108] sm:$0xff] %vm1643, %v1801
    %1811 = vst.msk [vmem:[#allocation2 + $0x114] sm:$0xff] %vm1643, %v1803
    %1812 = vrot.lane.b32.xlu0 %v1633, 32
    %v1813 = vpop.permute.xlu0 %1812
    %1814 = vrot.lane.b32.xlu0 %v1726, 32
    %v1815 = vpop.permute.xlu0 %1814
    %1816 = vrot.lane.b32.xlu0 %v1634, 32
    %v1817 = vpop.permute.xlu0 %1816
    %1818 = vrot.lane.b32.xlu0 %v1727, 32
    %v1819 = vpop.permute.xlu0 %1818
    %1820 = vrot.lane.b32.xlu0 %v1635, 32
    %v1821 = vpop.permute.xlu0 %1820
    %1822 = vrot.lane.b32.xlu0 %v1728, 32
    %v1823 = vpop.permute.xlu0 %1822
    %1824 = vrot.lane.b32.xlu0 %v1636, 32
    %v1825 = vpop.permute.xlu0 %1824
    %1826 = vrot.lane.b32.xlu0 %v1729, 32
    %v1827 = vpop.permute.xlu0 %1826
    %v1828 = vrot.slane %v1813, 4
    %v1829 = vrot.slane %v1815, 4
    %v1830 = vrot.slane %v1817, 4
    %v1831 = vrot.slane %v1819, 4
    %v1832 = vrot.slane %v1821, 4
    %v1833 = vrot.slane %v1823, 4
    %v1834 = vrot.slane %v1825, 4
    %v1835 = vrot.slane %v1827, 4
    %v1836 = vsel %vm208, %v1828, %v1829
    %vm1837 = vcmask 261120
    %v1838 = vsel %vm1837, %v1813, %v1836
    %v1839 = vsel %vm208, %v1830, %v1831
    %v1840 = vsel %vm1837, %v1817, %v1839
    %v1841 = vsel %vm208, %v1832, %v1833
    %v1842 = vsel %vm1837, %v1821, %v1841
    %v1843 = vsel %vm208, %v1834, %v1835
    %v1844 = vsel %vm1837, %v1825, %v1843
    %1849 = vst.msk [vmem:[#allocation2 + $0x120] sm:$0xff] %vm1643, %v1838
    %1850 = vst.msk [vmem:[#allocation2 + $0x12c] sm:$0xff] %vm1643, %v1840
    %1851 = vst.msk [vmem:[#allocation2 + $0x138] sm:$0xff] %vm1643, %v1842
    %1852 = vst.msk [vmem:[#allocation2 + $0x144] sm:$0xff] %vm1643, %v1844
    %s1853 = scalar_lea.vmem %s4, 64
    %v1854 = vld [vmem:[%s1853] sm:$0xff]
    %v1855 = vld [vmem:[%s1853 + $0x8] sm:$0xff]
    %v1856 = vld [vmem:[%s1853 + $0x10] sm:$0xff]
    %v1857 = vld [vmem:[%s1853 + $0x18] sm:$0xff]
    %v1858 = vld [vmem:[%s1853 + $0x20] sm:$0xff]
    %v1859 = vld [vmem:[%s1853 + $0x28] sm:$0xff]
    %v1860 = vld [vmem:[%s1853 + $0x30] sm:$0xff]
    %v1861 = vld [vmem:[%s1853 + $0x38] sm:$0xff]
    %v1862 = vld [vmem:[#allocation2] sm:$0xff]
    %v1863 = vld [vmem:[#allocation2 + $0xc] sm:$0xff]
    %v1864 = vld [vmem:[#allocation2 + $0x18] sm:$0xff]
    %v1865 = vld [vmem:[#allocation2 + $0x24] sm:$0xff]
    %v1866 = vld [vmem:[#allocation2 + $0x30] sm:$0xff]
    %v1867 = vld [vmem:[#allocation2 + $0x3c] sm:$0xff]
    %v1868 = vld [vmem:[#allocation2 + $0x48] sm:$0xff]
    %v1869 = vld [vmem:[#allocation2 + $0x54] sm:$0xff]
    %v1870 = vld [vmem:[#allocation2 + $0x60] sm:$0xff]
    %v1871 = vld [vmem:[#allocation2 + $0x6c] sm:$0xff]
    %v1872 = vld [vmem:[#allocation2 + $0x78] sm:$0xff]
    %v1873 = vld [vmem:[#allocation2 + $0x84] sm:$0xff]
    %v1874 = vld [vmem:[#allocation2 + $0x90] sm:$0xff]
    %v1875 = vld [vmem:[#allocation2 + $0x9c] sm:$0xff]
    %v1876 = vld [vmem:[#allocation2 + $0xa8] sm:$0xff]
    %v1877 = vld [vmem:[#allocation2 + $0xb4] sm:$0xff]
    %v1878 = vld [vmem:[#allocation2 + $0xc0] sm:$0xff]
    %v1879 = vld [vmem:[#allocation2 + $0xcc] sm:$0xff]
    %v1880 = vld [vmem:[#allocation2 + $0xd8] sm:$0xff]
    %v1881 = vld [vmem:[#allocation2 + $0xe4] sm:$0xff]
    %v1882 = vld [vmem:[#allocation2 + $0xf0] sm:$0xff]
    %v1883 = vld [vmem:[#allocation2 + $0xfc] sm:$0xff]
    %v1884 = vld [vmem:[#allocation2 + $0x108] sm:$0xff]
    %v1885 = vld [vmem:[#allocation2 + $0x114] sm:$0xff]
    %v1886 = vld [vmem:[#allocation2 + $0x120] sm:$0xff]
    %v1887 = vld [vmem:[#allocation2 + $0x12c] sm:$0xff]
    %v1888 = vld [vmem:[#allocation2 + $0x138] sm:$0xff]
    %v1889 = vld [vmem:[#allocation2 + $0x144] sm:$0xff]
    %s1890 = scalar_lea.vmem %s5, 64
    %v1891 = vld [vmem:[%s1890] sm:$0xff]
    %v1892 = vld [vmem:[%s1890 + $0x8] sm:$0xff]
    %v1893 = vld [vmem:[%s1890 + $0x10] sm:$0xff]
    %v1894 = vld [vmem:[%s1890 + $0x18] sm:$0xff]
    %v1895 = vld [vmem:[%s1890 + $0x20] sm:$0xff]
    %v1896 = vld [vmem:[%s1890 + $0x28] sm:$0xff]
    %v1897 = vld [vmem:[%s1890 + $0x30] sm:$0xff]
    %v1898 = vld [vmem:[%s1890 + $0x38] sm:$0xff]
    %1900 = vset.pattern.permute.xlu0 0
    %1901 = vperm.xlu0 %1900, %v1891
    %v1902 = vpop.permute.xlu0 %1901
    %1905 = vset.pattern.permute.xlu0 0
    %1906 = vperm.xlu0 %1905, %v1892
    %v1907 = vpop.permute.xlu0 %1906
    %1910 = vset.pattern.permute.xlu0 0
    %1911 = vperm.xlu0 %1910, %v1893
    %v1912 = vpop.permute.xlu0 %1911
    %1915 = vset.pattern.permute.xlu0 0
    %1916 = vperm.xlu0 %1915, %v1894
    %v1917 = vpop.permute.xlu0 %1916
    %1920 = vset.pattern.permute.xlu0 0
    %1921 = vperm.xlu0 %1920, %v1895
    %v1922 = vpop.permute.xlu0 %1921
    %1925 = vset.pattern.permute.xlu0 0
    %1926 = vperm.xlu0 %1925, %v1896
    %v1927 = vpop.permute.xlu0 %1926
    %1930 = vset.pattern.permute.xlu0 0
    %1931 = vperm.xlu0 %1930, %v1897
    %v1932 = vpop.permute.xlu0 %1931
    %1935 = vset.pattern.permute.xlu0 0
    %1936 = vperm.xlu0 %1935, %v1898
    %v1937 = vpop.permute.xlu0 %1936
    %v1947 = vunpack.c.l.b16 %v1854
    %v1948 = vunpack.c.h.b16 %v1854
    %v1949 = vunpack.c.l.b16 %v1855
    %v1950 = vunpack.c.h.b16 %v1855
    %v1951 = vunpack.c.l.b16 %v1856
    %v1952 = vunpack.c.h.b16 %v1856
    %v1953 = vunpack.c.l.b16 %v1857
    %v1954 = vunpack.c.h.b16 %v1857
    %v1955 = vunpack.c.l.b16 %v1858
    %v1956 = vunpack.c.h.b16 %v1858
    %v1957 = vunpack.c.l.b16 %v1859
    %v1958 = vunpack.c.h.b16 %v1859
    %v1959 = vunpack.c.l.b16 %v1860
    %v1960 = vunpack.c.h.b16 %v1860
    %v1961 = vunpack.c.l.b16 %v1861
    %v1962 = vunpack.c.h.b16 %v1861
    %v1963 = vpack.c.b16 %v1949, %v1947
    %v1964 = vpack.c.b16 %v1950, %v1948
    %v1965 = vpack.c.b16 %v1953, %v1951
    %v1966 = vpack.c.b16 %v1954, %v1952
    %v1967 = vpack.c.b16 %v1957, %v1955
    %v1968 = vpack.c.b16 %v1958, %v1956
    %v1969 = vpack.c.b16 %v1961, %v1959
    %v1970 = vpack.c.b16 %v1962, %v1960
    %v2003 = vunpack.c.l.b16 %v1862
    %v2004 = vunpack.c.h.b16 %v1862
    %v2005 = vunpack.c.l.b16 %v1863
    %v2006 = vunpack.c.h.b16 %v1863
    %v2007 = vunpack.c.l.b16 %v1864
    %v2008 = vunpack.c.h.b16 %v1864
    %v2009 = vunpack.c.l.b16 %v1865
    %v2010 = vunpack.c.h.b16 %v1865
    %v2011 = vunpack.c.l.b16 %v1866
    %v2012 = vunpack.c.h.b16 %v1866
    %v2013 = vunpack.c.l.b16 %v1867
    %v2014 = vunpack.c.h.b16 %v1867
    %v2015 = vunpack.c.l.b16 %v1868
    %v2016 = vunpack.c.h.b16 %v1868
    %v2017 = vunpack.c.l.b16 %v1869
    %v2018 = vunpack.c.h.b16 %v1869
    %v2019 = vunpack.c.l.b16 %v1870
    %v2020 = vunpack.c.h.b16 %v1870
    %v2021 = vunpack.c.l.b16 %v1871
    %v2022 = vunpack.c.h.b16 %v1871
    %v2023 = vunpack.c.l.b16 %v1872
    %v2024 = vunpack.c.h.b16 %v1872
    %v2025 = vunpack.c.l.b16 %v1873
    %v2026 = vunpack.c.h.b16 %v1873
    %v2027 = vunpack.c.l.b16 %v1874
    %v2028 = vunpack.c.h.b16 %v1874
    %v2029 = vunpack.c.l.b16 %v1875
    %v2030 = vunpack.c.h.b16 %v1875
    %v2031 = vunpack.c.l.b16 %v1876
    %v2032 = vunpack.c.h.b16 %v1876
    %v2033 = vunpack.c.l.b16 %v1877
    %v2034 = vunpack.c.h.b16 %v1877
    %v2035 = vunpack.c.l.b16 %v1878
    %v2036 = vunpack.c.h.b16 %v1878
    %v2037 = vunpack.c.l.b16 %v1879
    %v2038 = vunpack.c.h.b16 %v1879
    %v2039 = vunpack.c.l.b16 %v1880
    %v2040 = vunpack.c.h.b16 %v1880
    %v2041 = vunpack.c.l.b16 %v1881
    %v2042 = vunpack.c.h.b16 %v1881
    %v2043 = vunpack.c.l.b16 %v1882
    %v2044 = vunpack.c.h.b16 %v1882
    %v2045 = vunpack.c.l.b16 %v1883
    %v2046 = vunpack.c.h.b16 %v1883
    %v2047 = vunpack.c.l.b16 %v1884
    %v2048 = vunpack.c.h.b16 %v1884
    %v2049 = vunpack.c.l.b16 %v1885
    %v2050 = vunpack.c.h.b16 %v1885
    %v2051 = vunpack.c.l.b16 %v1886
    %v2052 = vunpack.c.h.b16 %v1886
    %v2053 = vunpack.c.l.b16 %v1887
    %v2054 = vunpack.c.h.b16 %v1887
    %v2055 = vunpack.c.l.b16 %v1888
    %v2056 = vunpack.c.h.b16 %v1888
    %v2057 = vunpack.c.l.b16 %v1889
    %v2058 = vunpack.c.h.b16 %v1889
    %v2059 = vpack.c.b16 %v2005, %v2003
    %v2060 = vpack.c.b16 %v2006, %v2004
    %v2061 = vpack.c.b16 %v2009, %v2007
    %v2062 = vpack.c.b16 %v2010, %v2008
    %v2063 = vpack.c.b16 %v2013, %v2011
    %v2064 = vpack.c.b16 %v2014, %v2012
    %v2065 = vpack.c.b16 %v2017, %v2015
    %v2066 = vpack.c.b16 %v2018, %v2016
    %v2067 = vpack.c.b16 %v2021, %v2019
    %v2068 = vpack.c.b16 %v2022, %v2020
    %v2069 = vpack.c.b16 %v2025, %v2023
    %v2070 = vpack.c.b16 %v2026, %v2024
    %v2071 = vpack.c.b16 %v2029, %v2027
    %v2072 = vpack.c.b16 %v2030, %v2028
    %v2073 = vpack.c.b16 %v2033, %v2031
    %v2074 = vpack.c.b16 %v2034, %v2032
    %v2075 = vpack.c.b16 %v2037, %v2035
    %v2076 = vpack.c.b16 %v2038, %v2036
    %v2077 = vpack.c.b16 %v2041, %v2039
    %v2078 = vpack.c.b16 %v2042, %v2040
    %v2079 = vpack.c.b16 %v2045, %v2043
    %v2080 = vpack.c.b16 %v2046, %v2044
    %v2081 = vpack.c.b16 %v2049, %v2047
    %v2082 = vpack.c.b16 %v2050, %v2048
    %v2083 = vpack.c.b16 %v2053, %v2051
    %v2084 = vpack.c.b16 %v2054, %v2052
    %v2085 = vpack.c.b16 %v2057, %v2055
    %v2086 = vpack.c.b16 %v2058, %v2056
    %v2116 = vsel %vm851, %v1964, 0
    %v2119 = vsel %vm851, %v1966, 0
    %v2122 = vsel %vm851, %v1968, 0
    %v2125 = vsel %vm851, %v1970, 0
    %2127 = vmatprep.subr.bf16.mxu0 %v2074
    %2128 = vmatpush1.bf16.msra.mxu0 %v2073
    %2129 = vmatprep.subr.bf16.mxu0 %v2072
    %2130 = vmatpush1.bf16.msra.mxu0 %v2071
    %2131 = vmatprep.subr.bf16.mxu0 %v2070
    %2132 = vmatpush1.bf16.msra.mxu0 %v2069
    %2133 = vmatprep.subr.bf16.mxu0 %v2068
    %2134 = vmatpush1.bf16.msra.mxu0 %v2067
    %2135 = vmatprep.subr.bf16.mxu0 %v2066
    %2136 = vmatpush1.bf16.msra.mxu0 %v2065
    %2137 = vmatprep.subr.bf16.mxu0 %v2064
    %2138 = vmatpush1.bf16.msra.mxu0 %v2063
    %2139 = vmatprep.subr.bf16.mxu0 %v2062
    %2140 = vmatpush1.bf16.msra.mxu0 %v2061
    %2141 = vmatprep.subr.bf16.mxu0 %v2060
    %2142 = vmatpush1.bf16.msra.mxu0 %v2059
    %2143 = vmatprep.subr.bf16.mxu0 0
    %2144 = vmatpush2.bf16.msra.mxu0 0
    %2145 = vmatprep.subr.bf16.mxu0 0
    %2146 = vmatpush2.bf16.msra.mxu0 0
    %2147 = vmatprep.subr.bf16.mxu0 %v2086
    %2148 = vmatpush2.bf16.msra.mxu0 %v2085
    %2149 = vmatprep.subr.bf16.mxu0 %v2084
    %2150 = vmatpush2.bf16.msra.mxu0 %v2083
    %2151 = vmatprep.subr.bf16.mxu0 %v2082
    %2152 = vmatpush2.bf16.msra.mxu0 %v2081
    %2153 = vmatprep.subr.bf16.mxu0 %v2080
    %2154 = vmatpush2.bf16.msra.mxu0 %v2079
    %2155 = vmatprep.subr.bf16.mxu0 %v2078
    %2156 = vmatpush2.bf16.msra.mxu0 %v2077
    %2157 = vmatprep.subr.bf16.mxu0 %v2076
    %2158 = vmatpush2.bf16.msra.mxu0 %v2075
    %2159 = vmatprep.mubr.bf16.mxu0 %v2116
    %2160 = vmatmul.mubr.bf16.gmra.mxu0 %v1963
    %v2161 = vpop.f32.mrf.mxu0
    %v2162 = vadd.f32 %v1902, %v2161
    %v2163 = vpop.f32.mrf.mxu0
    %v2164 = vadd.f32 %v1902, %v2163
    %v2165 = vpop.f32.mrf.mxu0
    %v2166 = vadd.f32 %v1907, %v2165
    %v2167 = vpop.f32.mrf.mxu0
    %v2168 = vadd.f32 %v1907, %v2167
    %2169 = vmatprep.mubr.bf16.mxu0 %v2119
    %2170 = vmatmul.mubr.bf16.gmra.mxu0 %v1965
    %v2171 = vpop.f32.mrf.mxu0
    %v2172 = vadd.f32 %v1912, %v2171
    %v2173 = vpop.f32.mrf.mxu0
    %v2174 = vadd.f32 %v1912, %v2173
    %v2175 = vpop.f32.mrf.mxu0
    %v2176 = vadd.f32 %v1917, %v2175
    %v2177 = vpop.f32.mrf.mxu0
    %v2178 = vadd.f32 %v1917, %v2177
    %2179 = vmatprep.mubr.bf16.mxu0 %v2122
    %2180 = vmatmul.mubr.bf16.gmra.mxu0 %v1967
    %v2181 = vpop.f32.mrf.mxu0
    %v2182 = vadd.f32 %v1922, %v2181
    %v2183 = vpop.f32.mrf.mxu0
    %v2184 = vadd.f32 %v1922, %v2183
    %v2185 = vpop.f32.mrf.mxu0
    %v2186 = vadd.f32 %v1927, %v2185
    %v2187 = vpop.f32.mrf.mxu0
    %v2188 = vadd.f32 %v1927, %v2187
    %2189 = vmatprep.mubr.bf16.mxu0 %v2125
    %2190 = vmatmul.mubr.bf16.gmra.mxu0 %v1969
    %v2191 = vpop.f32.mrf.mxu0
    %v2192 = vadd.f32 %v1932, %v2191
    %v2193 = vpop.f32.mrf.mxu0
    %v2194 = vadd.f32 %v1932, %v2193
    %v2195 = vpop.f32.mrf.mxu0
    %v2196 = vadd.f32 %v1937, %v2195
    %v2197 = vpop.f32.mrf.mxu0
    %v2198 = vadd.f32 %v1937, %v2197
    %2199 = vdwg.mxu0
    %v2200 = vpack.c.bf16 %v2166, %v2162
    %v2201 = vpack.c.bf16 %v2168, %v2164
    %v2202 = vpack.c.bf16 %v2176, %v2172
    %v2203 = vpack.c.bf16 %v2178, %v2174
    %v2204 = vpack.c.bf16 %v2186, %v2182
    %v2205 = vpack.c.bf16 %v2188, %v2184
    %v2206 = vpack.c.bf16 %v2196, %v2192
    %v2207 = vpack.c.bf16 %v2198, %v2194
    %v2208 = vtanh.bf16.pop %v2200
    %v2209 = vtanh.bf16.pop %v2201
    %v2210 = vtanh.bf16.pop %v2202
    %v2211 = vtanh.bf16.pop %v2203
    %v2212 = vxor.u32 %v2204, 2147516416
    %v2213 = vxor.u32 %v2205, 2147516416
    %v2214 = vxor.u32 %v2206, 2147516416
    %v2215 = vxor.u32 %v2207, 2147516416
    %v2217 = vmul.bf16 %v2212, 1069105081
    %v2218 = vpow.bf16.pop %v2217
    %v2220 = vmul.bf16 %v2213, 1069105081
    %v2221 = vpow.bf16.pop %v2220
    %v2223 = vmul.bf16 %v2214, 1069105081
    %v2224 = vpow.bf16.pop %v2223
    %v2226 = vmul.bf16 %v2215, 1069105081
    %v2227 = vpow.bf16.pop %v2226
    %v2228 = vadd.bf16 %v2218, 1065369472
    %v2229 = vadd.bf16 %v2221, 1065369472
    %v2230 = vadd.bf16 %v2224, 1065369472
    %v2231 = vadd.bf16 %v2227, 1065369472
    %v2232 = vrcp.bf16.pop %v2228
    %v2233 = vmul.bf16 1065369472, %v2232
    %v2234 = vrcp.bf16.pop %v2229
    %v2235 = vmul.bf16 1065369472, %v2234
    %v2236 = vrcp.bf16.pop %v2230
    %v2237 = vmul.bf16 1065369472, %v2236
    %v2238 = vrcp.bf16.pop %v2231
    %v2239 = vmul.bf16 1065369472, %v2238
    %v2240 = vmul.bf16 %v2208, %v2233
    %v2241 = vmul.bf16 %v2209, %v2235
    %v2242 = vmul.bf16 %v2210, %v2237
    %v2243 = vmul.bf16 %v2211, %v2239
    %s2244 = scalar_lea.vmem %s6, 16
    %v2245 = vld [vmem:[%s2244] sm:$0xf]
    %v2246 = vld [vmem:[%s2244 + $0x4] sm:$0xf]
    %v2247 = vld [vmem:[%s2244 + $0x8] sm:$0xf]
    %v2248 = vld [vmem:[%s2244 + $0xc] sm:$0xf]
    %s2249 = scalar_lea.vmem %s7, 32
    %v2250 = vld [vmem:[%s2249] sm:$0xff]
    %v2251 = vld [vmem:[%s2249 + $0x8] sm:$0xff]
    %v2252 = vld [vmem:[%s2249 + $0x10] sm:$0xff]
    %v2253 = vld [vmem:[%s2249 + $0x18] sm:$0xff]
    %2255 = vset.pattern.permute.xlu0 0
    %2256 = vperm.xlu0 %2255, %v2250
    %v2257 = vpop.permute.xlu0 %2256
    %2260 = vset.pattern.permute.xlu0 0
    %2261 = vperm.xlu0 %2260, %v2251
    %v2262 = vpop.permute.xlu0 %2261
    %2265 = vset.pattern.permute.xlu0 0
    %2266 = vperm.xlu0 %2265, %v2252
    %v2267 = vpop.permute.xlu0 %2266
    %2270 = vset.pattern.permute.xlu0 0
    %2271 = vperm.xlu0 %2270, %v2253
    %v2272 = vpop.permute.xlu0 %2271
    %v2278 = vunpack.c.l.b16 %v2245
    %v2279 = vunpack.c.l.b16 %v2246
    %v2280 = vunpack.c.l.b16 %v2247
    %v2281 = vunpack.c.l.b16 %v2248
    %v2282 = vpack.c.b16 %v2279, %v2278
    %v2283 = vpack.c.b16 %v2281, %v2280
    %v2285 = vsel %vm1106, %v2282, 0
    %v2288 = vsel %vm1106, %v2283, 0
    %2290 = vmatprep.subr.bf16.mxu0 0
    %2291 = vmatpush1.bf16.msra.mxu0 0
    %2292 = vmatprep.subr.bf16.mxu0 0
    %2293 = vmatpush1.bf16.msra.mxu0 0
    %2294 = vmatprep.subr.bf16.mxu0 0
    %2295 = vmatpush1.bf16.msra.mxu0 0
    %2296 = vmatprep.subr.bf16.mxu0 0
    %2297 = vmatpush1.bf16.msra.mxu0 0
    %2298 = vmatprep.subr.bf16.mxu0 0
    %2299 = vmatpush1.bf16.msra.mxu0 0
    %2300 = vmatprep.subr.bf16.mxu0 0
    %2301 = vmatpush1.bf16.msra.mxu0 0
    %2302 = vmatprep.subr.bf16.mxu0 %v2243
    %2303 = vmatpush1.bf16.msra.mxu0 %v2242
    %2304 = vmatprep.subr.bf16.mxu0 %v2241
    %2305 = vmatpush1.bf16.msra.mxu0 %v2240
    %2306 = vmatprep.subr.bf16.mxu0 0
    %2307 = vmatpush2.bf16.msra.mxu0 0
    %2308 = vmatprep.subr.bf16.mxu0 0
    %2309 = vmatpush2.bf16.msra.mxu0 0
    %2310 = vmatprep.subr.bf16.mxu0 0
    %2311 = vmatpush2.bf16.msra.mxu0 0
    %2312 = vmatprep.subr.bf16.mxu0 0
    %2313 = vmatpush2.bf16.msra.mxu0 0
    %2314 = vmatprep.subr.bf16.mxu0 0
    %2315 = vmatpush2.bf16.msra.mxu0 0
    %2316 = vmatprep.subr.bf16.mxu0 0
    %2317 = vmatpush2.bf16.msra.mxu0 0
    %2318 = vmatprep.subr.bf16.mxu0 0
    %2319 = vmatpush2.bf16.msra.mxu0 0
    %2320 = vmatprep.subr.bf16.mxu0 0
    %2321 = vmatpush2.bf16.msra.mxu0 0
    %2322 = vmatprep.mubr.bf16.mxu0 0
    %2323 = vmatmul.mubr.bf16.gmra.mxu0 %v2285
    %v2324 = vpop.f32.mrf.mxu0
    %v2325 = vadd.f32 %v2257, %v2324
    %v2326 = vpop.f32.mrf.mxu0
    %v2327 = vadd.f32 %v2257, %v2326
    %v2328 = vpop.f32.mrf.mxu0
    %v2329 = vadd.f32 %v2262, %v2328
    %v2330 = vpop.f32.mrf.mxu0
    %v2331 = vadd.f32 %v2262, %v2330
    %2332 = vmatprep.mubr.bf16.mxu0 0
    %2333 = vmatmul.mubr.bf16.gmra.mxu0 %v2288
    %v2334 = vpop.f32.mrf.mxu0
    %v2335 = vadd.f32 %v2267, %v2334
    %v2336 = vpop.f32.mrf.mxu0
    %v2337 = vadd.f32 %v2267, %v2336
    %v2338 = vpop.f32.mrf.mxu0
    %v2339 = vadd.f32 %v2272, %v2338
    %v2340 = vpop.f32.mrf.mxu0
    %v2341 = vadd.f32 %v2272, %v2340
    %2342 = vdwg.mxu0
    %2355 = vrot.lane.b32.xlu0 %v1603, 32
    %v2356 = vpop.permute.xlu0 %2355
    %2357 = vrot.lane.b32.xlu0 %v1604, 32
    %v2358 = vpop.permute.xlu0 %2357
    %2359 = vrot.lane.b32.xlu0 %v1605, 32
    %v2360 = vpop.permute.xlu0 %2359
    %2361 = vrot.lane.b32.xlu0 %v1606, 32
    %v2362 = vpop.permute.xlu0 %2361
    %2363 = vrot.lane.b32.xlu0 %v1607, 32
    %v2364 = vpop.permute.xlu0 %2363
    %2365 = vrot.lane.b32.xlu0 %v1608, 32
    %v2366 = vpop.permute.xlu0 %2365
    %2367 = vrot.lane.b32.xlu0 %v1609, 32
    %v2368 = vpop.permute.xlu0 %2367
    %2369 = vrot.lane.b32.xlu0 %v1610, 32
    %v2370 = vpop.permute.xlu0 %2369
    %2371 = vrot.lane.b32.xlu0 %v1611, 32
    %v2372 = vpop.permute.xlu0 %2371
    %2373 = vrot.lane.b32.xlu0 %v1612, 32
    %v2374 = vpop.permute.xlu0 %2373
    %2375 = vrot.lane.b32.xlu0 %v1613, 32
    %v2376 = vpop.permute.xlu0 %2375
    %2377 = vrot.lane.b32.xlu0 %v1614, 32
    %v2378 = vpop.permute.xlu0 %2377
    %v2379 = vsel %vm1106, %v2356, %v2358
    %v2380 = vsel %vm1106, %v2358, %v2360
    %v2381 = vsel %vm1106, %v2362, %v2364
    %v2382 = vsel %vm1106, %v2364, %v2366
    %v2383 = vsel %vm1106, %v2368, %v2370
    %v2384 = vsel %vm1106, %v2370, %v2372
    %v2385 = vsel %vm1106, %v2374, %v2376
    %v2386 = vsel %vm1106, %v2376, %v2378
    %v2395 = vadd.f32 %v2325, %v2379
    %v2396 = vadd.f32 %v2327, %v2380
    %v2397 = vadd.f32 %v2329, %v2381
    %v2398 = vadd.f32 %v2331, %v2382
    %v2399 = vadd.f32 %v2335, %v2383
    %v2400 = vadd.f32 %v2337, %v2384
    %v2401 = vadd.f32 %v2339, %v2385
    %v2402 = vadd.f32 %v2341, %v2386
    %v2403 = vadd.f32 %v2395, %v2397
    %v2404 = vadd.f32 %v2403, %v2399
    %v2405 = vadd.f32 %v2404, %v2401
    %v2406 = vrot.slane %v2405, 4
    %v2407 = vadd.f32 %v2405, %v2406
    %v2408 = vrot.slane %v2407, 2
    %v2409 = vadd.f32 %v2407, %v2408
    %v2410 = vrot.slane %v2409, 1
    %v2411 = vadd.f32 %v2409, %v2410
    %vm2412 = vcmask 588800
    %v2413 = vsel %vm2412, %v2396, 0.0
    %v2414 = vsel %vm2412, %v2398, 0.0
    %v2415 = vadd.f32 %v2413, %v2414
    %v2416 = vsel %vm2412, %v2400, 0.0
    %v2417 = vadd.f32 %v2415, %v2416
    %v2418 = vsel %vm2412, %v2402, 0.0
    %v2419 = vadd.f32 %v2417, %v2418
    %v2420 = vrot.slane %v2419, 4
    %v2421 = vadd.f32 %v2419, %v2420
    %v2422 = vrot.slane %v2421, 2
    %v2423 = vadd.f32 %v2421, %v2422
    %v2424 = vrot.slane %v2423, 1
    %v2425 = vadd.f32 %v2423, %v2424
    %v2426 = vmul.f32 %v2395, %v2395
    %v2427 = vmul.f32 %v2396, %v2396
    %v2428 = vmul.f32 %v2397, %v2397
    %v2429 = vmul.f32 %v2398, %v2398
    %v2430 = vmul.f32 %v2399, %v2399
    %v2431 = vmul.f32 %v2400, %v2400
    %v2432 = vmul.f32 %v2401, %v2401
    %v2433 = vmul.f32 %v2402, %v2402
    %v2434 = vadd.f32 %v2426, %v2428
    %v2435 = vadd.f32 %v2434, %v2430
    %v2436 = vadd.f32 %v2435, %v2432
    %v2437 = vrot.slane %v2436, 4
    %v2438 = vadd.f32 %v2436, %v2437
    %v2439 = vrot.slane %v2438, 2
    %v2440 = vadd.f32 %v2438, %v2439
    %v2441 = vrot.slane %v2440, 1
    %v2442 = vadd.f32 %v2440, %v2441
    %v2443 = vsel %vm2412, %v2427, 0.0
    %v2444 = vsel %vm2412, %v2429, 0.0
    %v2445 = vadd.f32 %v2443, %v2444
    %v2446 = vsel %vm2412, %v2431, 0.0
    %v2447 = vadd.f32 %v2445, %v2446
    %v2448 = vsel %vm2412, %v2433, 0.0
    %v2449 = vadd.f32 %v2447, %v2448
    %v2450 = vrot.slane %v2449, 4
    %v2451 = vadd.f32 %v2449, %v2450
    %v2452 = vrot.slane %v2451, 2
    %v2453 = vadd.f32 %v2451, %v2452
    %v2454 = vrot.slane %v2453, 1
    %v2455 = vadd.f32 %v2453, %v2454
    %v2456 = vld [vmem:[%s1] sm:$0x3]
    %vm2457 = vcmp.eq.s32.totalorder %v2456, 0
    %v2460 = vcombine.low %v2411, %v2425
    %v2462 = vunpack.c.l.s4 1966171168
    %v2463 = vunpack.c.0.s8 %v2462
    %v2464 = vlaneseq
    %v2465 = vshrl.u32 %v2464, 7
    %v2466 = vsub.s32 %v2463, %v2465
    %v2467 = vrot.slane %v2460, %v2466
    %v2469 = vunpack.c.l.s4 1966171168
    %v2470 = vunpack.c.0.s8 %v2469
    %v2471 = vlaneseq
    %v2472 = vshrl.u32 %v2471, 7
    %v2473 = vsub.s32 %v2470, %v2472
    %v2474 = vrot.slane %v2467, %v2473
    %v2476 = vsel %vm2457, %v2474, 0.0
    %v2478 = vlaneseq
    %v2479 = vshrl.u32 %v2478, 7
    %v2480 = vsub.s32 0, %v2479
    %v2481 = vrot.slane %v2476, %v2480
    %v2482 = vlaneseq
    %v2483 = vshrl.u32 %v2482, 7
    %v2484 = vsub.s32 1, %v2483
    %v2485 = vrot.slane %v2476, %v2484
    %v2488 = vsel %vm1405, %v2481, 0.0
    %vm2489 = vcmask 581632
    %v2490 = vsel %vm2489, %v2485, 0.0
    %v2491 = vadd.f32 %v2488, %v2490
    %2492 = vadd.xlane.f32.xlu0 %v2491
    %v2493 = vpop.xlane.xlu0 %2492
    %v2494 = vrot.slane %v2493, 4
    %v2495 = vadd.f32 %v2493, %v2494
    %v2496 = vrot.slane %v2495, 2
    %v2497 = vadd.f32 %v2495, %v2496
    %v2498 = vrot.slane %v2497, 1
    %v2499 = vadd.f32 %v2497, %v2498
    %s2500 = vtos %v2499
    %v2503 = vcombine.low %v2442, %v2455
    %v2505 = vunpack.c.l.s4 1966171168
    %v2506 = vunpack.c.0.s8 %v2505
    %v2507 = vlaneseq
    %v2508 = vshrl.u32 %v2507, 7
    %v2509 = vsub.s32 %v2506, %v2508
    %v2510 = vrot.slane %v2503, %v2509
    %v2512 = vunpack.c.l.s4 1966171168
    %v2513 = vunpack.c.0.s8 %v2512
    %v2514 = vlaneseq
    %v2515 = vshrl.u32 %v2514, 7
    %v2516 = vsub.s32 %v2513, %v2515
    %v2517 = vrot.slane %v2510, %v2516
    %v2519 = vsel %vm2457, %v2517, 0.0
    %v2521 = vlaneseq
    %v2522 = vshrl.u32 %v2521, 7
    %v2523 = vsub.s32 0, %v2522
    %v2524 = vrot.slane %v2519, %v2523
    %v2525 = vlaneseq
    %v2526 = vshrl.u32 %v2525, 7
    %v2527 = vsub.s32 1, %v2526
    %v2528 = vrot.slane %v2519, %v2527
    %v2531 = vsel %vm1405, %v2524, 0.0
    %v2532 = vsel %vm2489, %v2528, 0.0
    %v2533 = vadd.f32 %v2531, %v2532
    %2534 = vadd.xlane.f32.xlu0 %v2533
    %v2535 = vpop.xlane.xlu0 %2534
    %v2536 = vrot.slane %v2535, 4
    %v2537 = vadd.f32 %v2535, %v2536
    %v2538 = vrot.slane %v2537, 2
    %v2539 = vadd.f32 %v2537, %v2538
    %v2540 = vrot.slane %v2539, 1
    %v2541 = vadd.f32 %v2539, %v2540
    %s2542 = vtos %v2541
    %s2543 = smul.f32 %s2500, 0.0003125
    %v2544 = vstv %s2543
    %v2545 = vsel %vm2457, %v2544, 0.0
    %s2546 = smul.f32 %s2542, 0.0003125
    %v2547 = vstv %s2546
    %v2548 = vsel %vm2457, %v2547, 0.0
    %vm2549 = vcmp.eq.s32.totalorder %v2456, 1
    %v2550 = vsel %vm2549, %v2474, 0.0
    %v2552 = vlaneseq
    %v2553 = vshrl.u32 %v2552, 7
    %v2554 = vsub.s32 0, %v2553
    %v2555 = vrot.slane %v2550, %v2554
    %v2556 = vlaneseq
    %v2557 = vshrl.u32 %v2556, 7
    %v2558 = vsub.s32 1, %v2557
    %v2559 = vrot.slane %v2550, %v2558
    %v2562 = vsel %vm1405, %v2555, 0.0
    %v2563 = vsel %vm2489, %v2559, 0.0
    %v2564 = vadd.f32 %v2562, %v2563
    %2565 = vadd.xlane.f32.xlu0 %v2564
    %v2566 = vpop.xlane.xlu0 %2565
    %v2567 = vrot.slane %v2566, 4
    %v2568 = vadd.f32 %v2566, %v2567
    %v2569 = vrot.slane %v2568, 2
    %v2570 = vadd.f32 %v2568, %v2569
    %v2571 = vrot.slane %v2570, 1
    %v2572 = vadd.f32 %v2570, %v2571
    %s2573 = vtos %v2572
    %v2574 = vsel %vm2549, %v2517, 0.0
    %v2576 = vlaneseq
    %v2577 = vshrl.u32 %v2576, 7
    %v2578 = vsub.s32 0, %v2577
    %v2579 = vrot.slane %v2574, %v2578
    %v2580 = vlaneseq
    %v2581 = vshrl.u32 %v2580, 7
    %v2582 = vsub.s32 1, %v2581
    %v2583 = vrot.slane %v2574, %v2582
    %v2586 = vsel %vm1405, %v2579, 0.0
    %v2587 = vsel %vm2489, %v2583, 0.0
    %v2588 = vadd.f32 %v2586, %v2587
    %2589 = vadd.xlane.f32.xlu0 %v2588
    %v2590 = vpop.xlane.xlu0 %2589
    %v2591 = vrot.slane %v2590, 4
    %v2592 = vadd.f32 %v2590, %v2591
    %v2593 = vrot.slane %v2592, 2
    %v2594 = vadd.f32 %v2592, %v2593
    %v2595 = vrot.slane %v2594, 1
    %v2596 = vadd.f32 %v2594, %v2595
    %s2597 = vtos %v2596
    %s2598 = smul.f32 %s2573, 0.0003125
    %v2599 = vstv %s2598
    %v2600 = vsel %vm2549, %v2599, %v2545
    %s2601 = smul.f32 %s2597, 0.0003125
    %v2602 = vstv %s2601
    %v2603 = vsel %vm2549, %v2602, %v2548
    %v2604 = vmul.f32 %v2600, %v2600
    %v2605 = vsub.f32 %v2603, %v2604
    %v2606 = vmax.f32 %v2605, 0.0
    %v2607 = vadd.f32 %v2606, 1e-05
    %v2608 = vrsqrt.pop %v2607
    %v2610 = vlaneseq
    %v2611 = vshrl.u32 %v2610, 7
    %v2612 = vsub.s32 0, %v2611
    %v2613 = vrot.slane %v2600, %v2612
    %v2614 = vlaneseq
    %v2615 = vshrl.u32 %v2614, 7
    %v2616 = vsub.s32 1, %v2615
    %v2617 = vrot.slane %v2600, %v2616
    %v2620 = vsub.f32 %v2395, %v2613
    %v2621 = vsub.f32 %v2396, %v2617
    %v2622 = vsub.f32 %v2397, %v2613
    %v2623 = vsub.f32 %v2398, %v2617
    %v2624 = vsub.f32 %v2399, %v2613
    %v2625 = vsub.f32 %v2400, %v2617
    %v2626 = vsub.f32 %v2401, %v2613
    %v2627 = vsub.f32 %v2402, %v2617
    %v2629 = vlaneseq
    %v2630 = vshrl.u32 %v2629, 7
    %v2631 = vsub.s32 0, %v2630
    %v2632 = vrot.slane %v2608, %v2631
    %v2633 = vlaneseq
    %v2634 = vshrl.u32 %v2633, 7
    %v2635 = vsub.s32 1, %v2634
    %v2636 = vrot.slane %v2608, %v2635
    %v2639 = vmul.f32 %v2620, %v2632
    %v2640 = vmul.f32 %v2621, %v2636
    %v2641 = vmul.f32 %v2622, %v2632
    %v2642 = vmul.f32 %v2623, %v2636
    %v2643 = vmul.f32 %v2624, %v2632
    %v2644 = vmul.f32 %v2625, %v2636
    %v2645 = vmul.f32 %v2626, %v2632
    %v2646 = vmul.f32 %v2627, %v2636
    %v2647 = vpack.c.bf16 %v2641, %v2639
    %v2648 = vpack.c.bf16 %v2642, %v2640
    %v2649 = vpack.c.bf16 %v2645, %v2643
    %v2650 = vpack.c.bf16 %v2646, %v2644
    %v2653 = vunpack.c.l.b16 %v2647
    %v2654 = vunpack.c.h.b16 %v2647
    %v2655 = vunpack.c.l.b16 %v2649
    %v2656 = vunpack.c.h.b16 %v2649
    %v2657 = vpack.c.b16 %v2653, %v2653
    %v2658 = vpack.c.b16 %v2654, %v2654
    %v2659 = vpack.c.b16 %v2655, %v2655
    %v2660 = vpack.c.b16 %v2656, %v2656
    %vm2665 = vcmask 60416
    %2666 = vst.msk [vmem:[#allocation2] sm:$0xf] %vm2665, %v2657
    %2667 = vst.msk [vmem:[#allocation2 + $0xc] sm:$0xf] %vm2665, %v2658
    %2668 = vst.msk [vmem:[#allocation2 + $0x18] sm:$0xf] %vm2665, %v2659
    %2669 = vst.msk [vmem:[#allocation2 + $0x24] sm:$0xf] %vm2665, %v2660
    %2670 = vrot.lane.b32.xlu0 %v2657, 96
    %v2671 = vpop.permute.xlu0 %2670
    %2672 = vrot.lane.b32.xlu0 %v2658, 96
    %v2673 = vpop.permute.xlu0 %2672
    %2674 = vrot.lane.b32.xlu0 %v2659, 96
    %v2675 = vpop.permute.xlu0 %2674
    %2676 = vrot.lane.b32.xlu0 %v2660, 96
    %v2677 = vpop.permute.xlu0 %2676
    %2682 = vst.msk [vmem:[#allocation2 + $0x30] sm:$0xf] %vm2665, %v2671
    %2683 = vst.msk [vmem:[#allocation2 + $0x3c] sm:$0xf] %vm2665, %v2673
    %2684 = vst.msk [vmem:[#allocation2 + $0x48] sm:$0xf] %vm2665, %v2675
    %2685 = vst.msk [vmem:[#allocation2 + $0x54] sm:$0xf] %vm2665, %v2677
    %2686 = vrot.lane.b32.xlu0 %v2657, 64
    %v2687 = vpop.permute.xlu0 %2686
    %2688 = vrot.lane.b32.xlu0 %v2658, 64
    %v2689 = vpop.permute.xlu0 %2688
    %2690 = vrot.lane.b32.xlu0 %v2659, 64
    %v2691 = vpop.permute.xlu0 %2690
    %2692 = vrot.lane.b32.xlu0 %v2660, 64
    %v2693 = vpop.permute.xlu0 %2692
    %2698 = vst.msk [vmem:[#allocation2 + $0x60] sm:$0xf] %vm2665, %v2687
    %2699 = vst.msk [vmem:[#allocation2 + $0x6c] sm:$0xf] %vm2665, %v2689
    %2700 = vst.msk [vmem:[#allocation2 + $0x78] sm:$0xf] %vm2665, %v2691
    %2701 = vst.msk [vmem:[#allocation2 + $0x84] sm:$0xf] %vm2665, %v2693
    %2702 = vrot.lane.b32.xlu0 %v2657, 32
    %v2703 = vpop.permute.xlu0 %2702
    %2704 = vrot.lane.b32.xlu0 %v2658, 32
    %v2705 = vpop.permute.xlu0 %2704
    %2706 = vrot.lane.b32.xlu0 %v2659, 32
    %v2707 = vpop.permute.xlu0 %2706
    %2708 = vrot.lane.b32.xlu0 %v2660, 32
    %v2709 = vpop.permute.xlu0 %2708
    %2714 = vst.msk [vmem:[#allocation2 + $0x90] sm:$0xf] %vm2665, %v2703
    %2715 = vst.msk [vmem:[#allocation2 + $0x9c] sm:$0xf] %vm2665, %v2705
    %2716 = vst.msk [vmem:[#allocation2 + $0xa8] sm:$0xf] %vm2665, %v2707
    %2717 = vst.msk [vmem:[#allocation2 + $0xb4] sm:$0xf] %vm2665, %v2709
    %v2720 = vunpack.c.l.b16 %v2648
    %v2721 = vunpack.c.h.b16 %v2648
    %v2722 = vunpack.c.l.b16 %v2650
    %v2723 = vunpack.c.h.b16 %v2650
    %v2724 = vpack.c.b16 %v2720, %v2720
    %v2725 = vpack.c.b16 %v2721, %v2721
    %v2726 = vpack.c.b16 %v2722, %v2722
    %v2727 = vpack.c.b16 %v2723, %v2723
    %2732 = vst.msk [vmem:[#allocation2 + $0xc0] sm:$0xf] %vm2665, %v2724
    %2733 = vst.msk [vmem:[#allocation2 + $0xcc] sm:$0xf] %vm2665, %v2725
    %2734 = vst.msk [vmem:[#allocation2 + $0xd8] sm:$0xf] %vm2665, %v2726
    %2735 = vst.msk [vmem:[#allocation2 + $0xe4] sm:$0xf] %vm2665, %v2727
    %2736 = vrot.lane.b32.xlu0 %v2724, 96
    %v2737 = vpop.permute.xlu0 %2736
    %2738 = vrot.lane.b32.xlu0 %v2725, 96
    %v2739 = vpop.permute.xlu0 %2738
    %2740 = vrot.lane.b32.xlu0 %v2726, 96
    %v2741 = vpop.permute.xlu0 %2740
    %2742 = vrot.lane.b32.xlu0 %v2727, 96
    %v2743 = vpop.permute.xlu0 %2742
    %2748 = vst.msk [vmem:[#allocation2 + $0xf0] sm:$0xf] %vm2665, %v2737
    %2749 = vst.msk [vmem:[#allocation2 + $0xfc] sm:$0xf] %vm2665, %v2739
    %2750 = vst.msk [vmem:[#allocation2 + $0x108] sm:$0xf] %vm2665, %v2741
    %2751 = vst.msk [vmem:[#allocation2 + $0x114] sm:$0xf] %vm2665, %v2743
    %2752 = vrot.lane.b32.xlu0 %v2724, 64
    %v2753 = vpop.permute.xlu0 %2752
    %2754 = vrot.lane.b32.xlu0 %v2725, 64
    %v2755 = vpop.permute.xlu0 %2754
    %2756 = vrot.lane.b32.xlu0 %v2726, 64
    %v2757 = vpop.permute.xlu0 %2756
    %2758 = vrot.lane.b32.xlu0 %v2727, 64
    %v2759 = vpop.permute.xlu0 %2758
    %2764 = vst.msk [vmem:[#allocation2 + $0x120] sm:$0xf] %vm2665, %v2753
    %2765 = vst.msk [vmem:[#allocation2 + $0x12c] sm:$0xf] %vm2665, %v2755
    %2766 = vst.msk [vmem:[#allocation2 + $0x138] sm:$0xf] %vm2665, %v2757
    %2767 = vst.msk [vmem:[#allocation2 + $0x144] sm:$0xf] %vm2665, %v2759
    %s2768 = scalar_lea.vmem %s4, 128
    %v2769 = vld [vmem:[%s2768] sm:$0xff]
    %v2770 = vld [vmem:[%s2768 + $0x8] sm:$0xff]
    %v2771 = vld [vmem:[%s2768 + $0x10] sm:$0xff]
    %v2772 = vld [vmem:[%s2768 + $0x18] sm:$0xff]
    %v2773 = vld [vmem:[%s2768 + $0x20] sm:$0xff]
    %v2774 = vld [vmem:[%s2768 + $0x28] sm:$0xff]
    %v2775 = vld [vmem:[%s2768 + $0x30] sm:$0xff]
    %v2776 = vld [vmem:[%s2768 + $0x38] sm:$0xff]
    %v2777 = vld [vmem:[#allocation2] sm:$0xf]
    %v2778 = vld [vmem:[#allocation2 + $0xc] sm:$0xf]
    %v2779 = vld [vmem:[#allocation2 + $0x18] sm:$0xf]
    %v2780 = vld [vmem:[#allocation2 + $0x24] sm:$0xf]
    %v2781 = vld [vmem:[#allocation2 + $0x30] sm:$0xf]
    %v2782 = vld [vmem:[#allocation2 + $0x3c] sm:$0xf]
    %v2783 = vld [vmem:[#allocation2 + $0x48] sm:$0xf]
    %v2784 = vld [vmem:[#allocation2 + $0x54] sm:$0xf]
    %v2785 = vld [vmem:[#allocation2 + $0x60] sm:$0xf]
    %v2786 = vld [vmem:[#allocation2 + $0x6c] sm:$0xf]
    %v2787 = vld [vmem:[#allocation2 + $0x78] sm:$0xf]
    %v2788 = vld [vmem:[#allocation2 + $0x84] sm:$0xf]
    %v2789 = vld [vmem:[#allocation2 + $0x90] sm:$0xf]
    %v2790 = vld [vmem:[#allocation2 + $0x9c] sm:$0xf]
    %v2791 = vld [vmem:[#allocation2 + $0xa8] sm:$0xf]
    %v2792 = vld [vmem:[#allocation2 + $0xb4] sm:$0xf]
    %v2793 = vld [vmem:[#allocation2 + $0xc0] sm:$0xf]
    %v2794 = vld [vmem:[#allocation2 + $0xcc] sm:$0xf]
    %v2795 = vld [vmem:[#allocation2 + $0xd8] sm:$0xf]
    %v2796 = vld [vmem:[#allocation2 + $0xe4] sm:$0xf]
    %v2797 = vld [vmem:[#allocation2 + $0xf0] sm:$0xf]
    %v2798 = vld [vmem:[#allocation2 + $0xfc] sm:$0xf]
    %v2799 = vld [vmem:[#allocation2 + $0x108] sm:$0xf]
    %v2800 = vld [vmem:[#allocation2 + $0x114] sm:$0xf]
    %v2801 = vld [vmem:[#allocation2 + $0x120] sm:$0xf]
    %v2802 = vld [vmem:[#allocation2 + $0x12c] sm:$0xf]
    %v2803 = vld [vmem:[#allocation2 + $0x138] sm:$0xf]
    %v2804 = vld [vmem:[#allocation2 + $0x144] sm:$0xf]
    %s2805 = scalar_lea.vmem %s5, 128
    %v2806 = vld [vmem:[%s2805] sm:$0xff]
    %v2807 = vld [vmem:[%s2805 + $0x8] sm:$0xff]
    %v2808 = vld [vmem:[%s2805 + $0x10] sm:$0xff]
    %v2809 = vld [vmem:[%s2805 + $0x18] sm:$0xff]
    %v2810 = vld [vmem:[%s2805 + $0x20] sm:$0xff]
    %v2811 = vld [vmem:[%s2805 + $0x28] sm:$0xff]
    %v2812 = vld [vmem:[%s2805 + $0x30] sm:$0xff]
    %v2813 = vld [vmem:[%s2805 + $0x38] sm:$0xff]
    %2815 = vset.pattern.permute.xlu0 0
    %2816 = vperm.xlu0 %2815, %v2806
    %v2817 = vpop.permute.xlu0 %2816
    %2820 = vset.pattern.permute.xlu0 0
    %2821 = vperm.xlu0 %2820, %v2807
    %v2822 = vpop.permute.xlu0 %2821
    %2825 = vset.pattern.permute.xlu0 0
    %2826 = vperm.xlu0 %2825, %v2808
    %v2827 = vpop.permute.xlu0 %2826
    %2830 = vset.pattern.permute.xlu0 0
    %2831 = vperm.xlu0 %2830, %v2809
    %v2832 = vpop.permute.xlu0 %2831
    %2835 = vset.pattern.permute.xlu0 0
    %2836 = vperm.xlu0 %2835, %v2810
    %v2837 = vpop.permute.xlu0 %2836
    %2840 = vset.pattern.permute.xlu0 0
    %2841 = vperm.xlu0 %2840, %v2811
    %v2842 = vpop.permute.xlu0 %2841
    %2845 = vset.pattern.permute.xlu0 0
    %2846 = vperm.xlu0 %2845, %v2812
    %v2847 = vpop.permute.xlu0 %2846
    %2850 = vset.pattern.permute.xlu0 0
    %2851 = vperm.xlu0 %2850, %v2813
    %v2852 = vpop.permute.xlu0 %2851
    %v2862 = vunpack.c.l.b16 %v2769
    %v2863 = vunpack.c.h.b16 %v2769
    %v2864 = vunpack.c.l.b16 %v2770
    %v2865 = vunpack.c.h.b16 %v2770
    %v2866 = vunpack.c.l.b16 %v2771
    %v2867 = vunpack.c.h.b16 %v2771
    %v2868 = vunpack.c.l.b16 %v2772
    %v2869 = vunpack.c.h.b16 %v2772
    %v2870 = vunpack.c.l.b16 %v2773
    %v2871 = vunpack.c.h.b16 %v2773
    %v2872 = vunpack.c.l.b16 %v2774
    %v2873 = vunpack.c.h.b16 %v2774
    %v2874 = vunpack.c.l.b16 %v2775
    %v2875 = vunpack.c.h.b16 %v2775
    %v2876 = vunpack.c.l.b16 %v2776
    %v2877 = vunpack.c.h.b16 %v2776
    %v2878 = vpack.c.b16 %v2864, %v2862
    %v2879 = vpack.c.b16 %v2865, %v2863
    %v2880 = vpack.c.b16 %v2868, %v2866
    %v2881 = vpack.c.b16 %v2869, %v2867
    %v2882 = vpack.c.b16 %v2872, %v2870
    %v2883 = vpack.c.b16 %v2873, %v2871
    %v2884 = vpack.c.b16 %v2876, %v2874
    %v2885 = vpack.c.b16 %v2877, %v2875
    %v2918 = vunpack.c.l.b16 %v2777
    %v2919 = vunpack.c.l.b16 %v2778
    %v2920 = vunpack.c.l.b16 %v2779
    %v2921 = vunpack.c.l.b16 %v2780
    %v2922 = vunpack.c.l.b16 %v2781
    %v2923 = vunpack.c.l.b16 %v2782
    %v2924 = vunpack.c.l.b16 %v2783
    %v2925 = vunpack.c.l.b16 %v2784
    %v2926 = vunpack.c.l.b16 %v2785
    %v2927 = vunpack.c.l.b16 %v2786
    %v2928 = vunpack.c.l.b16 %v2787
    %v2929 = vunpack.c.l.b16 %v2788
    %v2930 = vunpack.c.l.b16 %v2789
    %v2931 = vunpack.c.l.b16 %v2790
    %v2932 = vunpack.c.l.b16 %v2791
    %v2933 = vunpack.c.l.b16 %v2792
    %v2934 = vunpack.c.l.b16 %v2793
    %v2935 = vunpack.c.l.b16 %v2794
    %v2936 = vunpack.c.l.b16 %v2795
    %v2937 = vunpack.c.l.b16 %v2796
    %v2938 = vunpack.c.l.b16 %v2797
    %v2939 = vunpack.c.l.b16 %v2798
    %v2940 = vunpack.c.l.b16 %v2799
    %v2941 = vunpack.c.l.b16 %v2800
    %v2942 = vunpack.c.l.b16 %v2801
    %v2943 = vunpack.c.l.b16 %v2802
    %v2944 = vunpack.c.l.b16 %v2803
    %v2945 = vunpack.c.l.b16 %v2804
    %v2946 = vpack.c.b16 %v2919, %v2918
    %v2947 = vpack.c.b16 %v2921, %v2920
    %v2948 = vpack.c.b16 %v2923, %v2922
    %v2949 = vpack.c.b16 %v2925, %v2924
    %v2950 = vpack.c.b16 %v2927, %v2926
    %v2951 = vpack.c.b16 %v2929, %v2928
    %v2952 = vpack.c.b16 %v2931, %v2930
    %v2953 = vpack.c.b16 %v2933, %v2932
    %v2954 = vpack.c.b16 %v2935, %v2934
    %v2955 = vpack.c.b16 %v2937, %v2936
    %v2956 = vpack.c.b16 %v2939, %v2938
    %v2957 = vpack.c.b16 %v2941, %v2940
    %v2958 = vpack.c.b16 %v2943, %v2942
    %v2959 = vpack.c.b16 %v2945, %v2944
    %v2975 = vsel %vm851, %v2879, 0
    %v2978 = vsel %vm851, %v2881, 0
    %v2981 = vsel %vm851, %v2883, 0
    %v2984 = vsel %vm851, %v2885, 0
    %2986 = vmatprep.subr.bf16.mxu0 0
    %2987 = vmatpush1.bf16.msra.mxu0 %v2953
    %2988 = vmatprep.subr.bf16.mxu0 0
    %2989 = vmatpush1.bf16.msra.mxu0 %v2952
    %2990 = vmatprep.subr.bf16.mxu0 0
    %2991 = vmatpush1.bf16.msra.mxu0 %v2951
    %2992 = vmatprep.subr.bf16.mxu0 0
    %2993 = vmatpush1.bf16.msra.mxu0 %v2950
    %2994 = vmatprep.subr.bf16.mxu0 0
    %2995 = vmatpush1.bf16.msra.mxu0 %v2949
    %2996 = vmatprep.subr.bf16.mxu0 0
    %2997 = vmatpush1.bf16.msra.mxu0 %v2948
    %2998 = vmatprep.subr.bf16.mxu0 0
    %2999 = vmatpush1.bf16.msra.mxu0 %v2947
    %3000 = vmatprep.subr.bf16.mxu0 0
    %3001 = vmatpush1.bf16.msra.mxu0 %v2946
    %3002 = vmatprep.subr.bf16.mxu0 0
    %3003 = vmatpush2.bf16.msra.mxu0 0
    %3004 = vmatprep.subr.bf16.mxu0 0
    %3005 = vmatpush2.bf16.msra.mxu0 0
    %3006 = vmatprep.subr.bf16.mxu0 0
    %3007 = vmatpush2.bf16.msra.mxu0 %v2959
    %3008 = vmatprep.subr.bf16.mxu0 0
    %3009 = vmatpush2.bf16.msra.mxu0 %v2958
    %3010 = vmatprep.subr.bf16.mxu0 0
    %3011 = vmatpush2.bf16.msra.mxu0 %v2957
    %3012 = vmatprep.subr.bf16.mxu0 0
    %3013 = vmatpush2.bf16.msra.mxu0 %v2956
    %3014 = vmatprep.subr.bf16.mxu0 0
    %3015 = vmatpush2.bf16.msra.mxu0 %v2955
    %3016 = vmatprep.subr.bf16.mxu0 0
    %3017 = vmatpush2.bf16.msra.mxu0 %v2954
    %3018 = vmatprep.mubr.bf16.mxu0 %v2975
    %3019 = vmatmul.mubr.bf16.gmra.mxu0 %v2878
    %v3020 = vpop.f32.mrf.mxu0
    %v3021 = vadd.f32 %v2817, %v3020
    %v3022 = vpop.f32.mrf.mxu0
    %v3023 = vpop.f32.mrf.mxu0
    %v3024 = vadd.f32 %v2822, %v3023
    %v3025 = vpop.f32.mrf.mxu0
    %3026 = vmatprep.mubr.bf16.mxu0 %v2978
    %3027 = vmatmul.mubr.bf16.gmra.mxu0 %v2880
    %v3028 = vpop.f32.mrf.mxu0
    %v3029 = vadd.f32 %v2827, %v3028
    %v3030 = vpop.f32.mrf.mxu0
    %v3031 = vpop.f32.mrf.mxu0
    %v3032 = vadd.f32 %v2832, %v3031
    %v3033 = vpop.f32.mrf.mxu0
    %3034 = vmatprep.mubr.bf16.mxu0 %v2981
    %3035 = vmatmul.mubr.bf16.gmra.mxu0 %v2882
    %v3036 = vpop.f32.mrf.mxu0
    %v3037 = vadd.f32 %v2837, %v3036
    %v3038 = vpop.f32.mrf.mxu0
    %v3039 = vpop.f32.mrf.mxu0
    %v3040 = vadd.f32 %v2842, %v3039
    %v3041 = vpop.f32.mrf.mxu0
    %3042 = vmatprep.mubr.bf16.mxu0 %v2984
    %3043 = vmatmul.mubr.bf16.gmra.mxu0 %v2884
    %v3044 = vpop.f32.mrf.mxu0
    %v3045 = vadd.f32 %v2847, %v3044
    %v3046 = vpop.f32.mrf.mxu0
    %v3047 = vpop.f32.mrf.mxu0
    %v3048 = vadd.f32 %v2852, %v3047
    %v3049 = vpop.f32.mrf.mxu0
    %3050 = vdwg.mxu0
    %v3051 = vpack.c.bf16 %v3024, %v3021
    %v3052 = vpack.c.bf16 %v3032, %v3029
    %v3053 = vpack.c.bf16 %v3040, %v3037
    %v3054 = vpack.c.bf16 %v3048, %v3045
    %v3055 = vtanh.bf16.pop %v3051
    %v3056 = vtanh.bf16.pop %v3052
    %v3057 = vxor.u32 %v3053, 2147516416
    %v3058 = vxor.u32 %v3054, 2147516416
    %v3060 = vmul.bf16 %v3057, 1069105081
    %v3061 = vpow.bf16.pop %v3060
    %v3063 = vmul.bf16 %v3058, 1069105081
    %v3064 = vpow.bf16.pop %v3063
    %v3065 = vadd.bf16 %v3061, 1065369472
    %v3066 = vadd.bf16 %v3064, 1065369472
    %v3067 = vrcp.bf16.pop %v3065
    %v3068 = vmul.bf16 1065369472, %v3067
    %v3069 = vrcp.bf16.pop %v3066
    %v3070 = vmul.bf16 1065369472, %v3069
    %v3071 = vmul.bf16 %v3055, %v3068
    %v3072 = vmul.bf16 %v3056, %v3070
    %s3073 = scalar_lea.vmem %s6, 32
    %v3074 = vld [vmem:[%s3073] sm:$0xf]
    %v3075 = vld [vmem:[%s3073 + $0x4] sm:$0xf]
    %v3076 = vld [vmem:[%s3073 + $0x8] sm:$0xf]
    %v3077 = vld [vmem:[%s3073 + $0xc] sm:$0xf]
    %s3078 = scalar_lea.vmem %s7, 64
    %v3079 = vld [vmem:[%s3078] sm:$0xff]
    %v3080 = vld [vmem:[%s3078 + $0x8] sm:$0xff]
    %v3081 = vld [vmem:[%s3078 + $0x10] sm:$0xff]
    %v3082 = vld [vmem:[%s3078 + $0x18] sm:$0xff]
    %3084 = vset.pattern.permute.xlu0 0
    %3085 = vperm.xlu0 %3084, %v3079
    %v3086 = vpop.permute.xlu0 %3085
    %3089 = vset.pattern.permute.xlu0 0
    %3090 = vperm.xlu0 %3089, %v3080
    %v3091 = vpop.permute.xlu0 %3090
    %3094 = vset.pattern.permute.xlu0 0
    %3095 = vperm.xlu0 %3094, %v3081
    %v3096 = vpop.permute.xlu0 %3095
    %3099 = vset.pattern.permute.xlu0 0
    %3100 = vperm.xlu0 %3099, %v3082
    %v3101 = vpop.permute.xlu0 %3100
    %v3107 = vunpack.c.l.b16 %v3074
    %v3108 = vunpack.c.l.b16 %v3075
    %v3109 = vunpack.c.l.b16 %v3076
    %v3110 = vunpack.c.l.b16 %v3077
    %v3111 = vpack.c.b16 %v3108, %v3107
    %v3112 = vpack.c.b16 %v3110, %v3109
    %v3114 = vsel %vm1106, %v3111, 0
    %v3117 = vsel %vm1106, %v3112, 0
    %3119 = vmatprep.subr.bf16.mxu0 0
    %3120 = vmatpush1.bf16.msra.mxu0 0
    %3121 = vmatprep.subr.bf16.mxu0 0
    %3122 = vmatpush1.bf16.msra.mxu0 0
    %3123 = vmatprep.subr.bf16.mxu0 0
    %3124 = vmatpush1.bf16.msra.mxu0 0
    %3125 = vmatprep.subr.bf16.mxu0 0
    %3126 = vmatpush1.bf16.msra.mxu0 0
    %3127 = vmatprep.subr.bf16.mxu0 0
    %3128 = vmatpush1.bf16.msra.mxu0 0
    %3129 = vmatprep.subr.bf16.mxu0 0
    %3130 = vmatpush1.bf16.msra.mxu0 0
    %3131 = vmatprep.subr.bf16.mxu0 0
    %3132 = vmatpush1.bf16.msra.mxu0 %v3072
    %3133 = vmatprep.subr.bf16.mxu0 0
    %3134 = vmatpush1.bf16.msra.mxu0 %v3071
    %3135 = vmatprep.subr.bf16.mxu0 0
    %3136 = vmatpush2.bf16.msra.mxu0 0
    %3137 = vmatprep.subr.bf16.mxu0 0
    %3138 = vmatpush2.bf16.msra.mxu0 0
    %3139 = vmatprep.subr.bf16.mxu0 0
    %3140 = vmatpush2.bf16.msra.mxu0 0
    %3141 = vmatprep.subr.bf16.mxu0 0
    %3142 = vmatpush2.bf16.msra.mxu0 0
    %3143 = vmatprep.subr.bf16.mxu0 0
    %3144 = vmatpush2.bf16.msra.mxu0 0
    %3145 = vmatprep.subr.bf16.mxu0 0
    %3146 = vmatpush2.bf16.msra.mxu0 0
    %3147 = vmatprep.subr.bf16.mxu0 0
    %3148 = vmatpush2.bf16.msra.mxu0 0
    %3149 = vmatprep.subr.bf16.mxu0 0
    %3150 = vmatpush2.bf16.msra.mxu0 0
    %3151 = vmatprep.mubr.bf16.mxu0 0
    %3152 = vmatmul.mubr.bf16.gmra.mxu0 %v3114
    %v3153 = vpop.f32.mrf.mxu0
    %v3154 = vadd.f32 %v3086, %v3153
    %v3155 = vpop.f32.mrf.mxu0
    %v3156 = vpop.f32.mrf.mxu0
    %v3157 = vadd.f32 %v3091, %v3156
    %v3158 = vpop.f32.mrf.mxu0
    %3159 = vmatprep.mubr.bf16.mxu0 0
    %3160 = vmatmul.mubr.bf16.gmra.mxu0 %v3117
    %v3161 = vpop.f32.mrf.mxu0
    %v3162 = vadd.f32 %v3096, %v3161
    %v3163 = vpop.f32.mrf.mxu0
    %v3164 = vpop.f32.mrf.mxu0
    %v3165 = vadd.f32 %v3101, %v3164
    %v3166 = vpop.f32.mrf.mxu0
    %3167 = vdwg.mxu0
    %3172 = vrot.lane.b32.xlu0 %v2640, 64
    %v3173 = vpop.permute.xlu0 %3172
    %3174 = vrot.lane.b32.xlu0 %v2642, 64
    %v3175 = vpop.permute.xlu0 %3174
    %3176 = vrot.lane.b32.xlu0 %v2644, 64
    %v3177 = vpop.permute.xlu0 %3176
    %3178 = vrot.lane.b32.xlu0 %v2646, 64
    %v3179 = vpop.permute.xlu0 %3178
    %v3184 = vadd.f32 %v3154, %v3173
    %v3185 = vadd.f32 %v3157, %v3175
    %v3186 = vadd.f32 %v3162, %v3177
    %v3187 = vadd.f32 %v3165, %v3179
    %vm3188 = vcmask 64512
    %v3189 = vsel %vm3188, %v3184, 0.0
    %v3190 = vsel %vm3188, %v3185, 0.0
    %v3191 = vadd.f32 %v3189, %v3190
    %v3192 = vsel %vm3188, %v3186, 0.0
    %v3193 = vadd.f32 %v3191, %v3192
    %v3194 = vsel %vm3188, %v3187, 0.0
    %v3195 = vadd.f32 %v3193, %v3194
    %v3196 = vrot.slane %v3195, 4
    %v3197 = vadd.f32 %v3195, %v3196
    %v3198 = vrot.slane %v3197, 2
    %v3199 = vadd.f32 %v3197, %v3198
    %v3200 = vrot.slane %v3199, 1
    %v3201 = vadd.f32 %v3199, %v3200
    %v3202 = vmul.f32 %v3184, %v3184
    %v3203 = vmul.f32 %v3185, %v3185
    %v3204 = vmul.f32 %v3186, %v3186
    %v3205 = vmul.f32 %v3187, %v3187
    %v3206 = vsel %vm3188, %v3202, 0.0
    %v3207 = vsel %vm3188, %v3203, 0.0
    %v3208 = vadd.f32 %v3206, %v3207
    %v3209 = vsel %vm3188, %v3204, 0.0
    %v3210 = vadd.f32 %v3208, %v3209
    %v3211 = vsel %vm3188, %v3205, 0.0
    %v3212 = vadd.f32 %v3210, %v3211
    %v3213 = vrot.slane %v3212, 4
    %v3214 = vadd.f32 %v3212, %v3213
    %v3215 = vrot.slane %v3214, 2
    %v3216 = vadd.f32 %v3214, %v3215
    %v3217 = vrot.slane %v3216, 1
    %v3218 = vadd.f32 %v3216, %v3217
    %v3219 = vld [vmem:[%s1] sm:$0x1]
    %vm3220 = vcmp.eq.s32.totalorder %v3219, 0
    %v3221 = vsel %vm3220, %v3201, 0.0
    %vm3222 = vcmask 57344
    %v3223 = vsel %vm3222, %v3221, 0.0
    %3224 = vadd.xlane.f32.xlu0 %v3223
    %v3225 = vpop.xlane.xlu0 %3224
    %v3226 = vrot.slane %v3225, 4
    %v3227 = vadd.f32 %v3225, %v3226
    %v3228 = vrot.slane %v3227, 2
    %v3229 = vadd.f32 %v3227, %v3228
    %v3230 = vrot.slane %v3229, 1
    %v3231 = vadd.f32 %v3229, %v3230
    %s3232 = vtos %v3231
    %v3233 = vsel %vm3220, %v3218, 0.0
    %v3234 = vsel %vm3222, %v3233, 0.0
    %3235 = vadd.xlane.f32.xlu0 %v3234
    %v3236 = vpop.xlane.xlu0 %3235
    %v3237 = vrot.slane %v3236, 4
    %v3238 = vadd.f32 %v3236, %v3237
    %v3239 = vrot.slane %v3238, 2
    %v3240 = vadd.f32 %v3238, %v3239
    %v3241 = vrot.slane %v3240, 1
    %v3242 = vadd.f32 %v3240, %v3241
    %s3243 = vtos %v3242
    %s3244 = smul.f32 %s3232, 0.0078125
    %v3245 = vstv %s3244
    %v3246 = vsel %vm3220, %v3245, 0.0
    %s3247 = smul.f32 %s3243, 0.0078125
    %v3248 = vstv %s3247
    %v3249 = vsel %vm3220, %v3248, 0.0
    %vm3250 = vcmp.eq.s32.totalorder %v3219, 1
    %v3251 = vsel %vm3250, %v3201, 0.0
    %v3252 = vsel %vm3222, %v3251, 0.0
    %3253 = vadd.xlane.f32.xlu0 %v3252
    %v3254 = vpop.xlane.xlu0 %3253
    %v3255 = vrot.slane %v3254, 4
    %v3256 = vadd.f32 %v3254, %v3255
    %v3257 = vrot.slane %v3256, 2
    %v3258 = vadd.f32 %v3256, %v3257
    %v3259 = vrot.slane %v3258, 1
    %v3260 = vadd.f32 %v3258, %v3259
    %s3261 = vtos %v3260
    %v3262 = vsel %vm3250, %v3218, 0.0
    %v3263 = vsel %vm3222, %v3262, 0.0
    %3264 = vadd.xlane.f32.xlu0 %v3263
    %v3265 = vpop.xlane.xlu0 %3264
    %v3266 = vrot.slane %v3265, 4
    %v3267 = vadd.f32 %v3265, %v3266
    %v3268 = vrot.slane %v3267, 2
    %v3269 = vadd.f32 %v3267, %v3268
    %v3270 = vrot.slane %v3269, 1
    %v3271 = vadd.f32 %v3269, %v3270
    %s3272 = vtos %v3271
    %s3273 = smul.f32 %s3261, 0.0078125
    %v3274 = vstv %s3273
    %v3275 = vsel %vm3250, %v3274, %v3246
    %s3276 = smul.f32 %s3272, 0.0078125
    %v3277 = vstv %s3276
    %v3278 = vsel %vm3250, %v3277, %v3249
    %v3279 = vmul.f32 %v3275, %v3275
    %v3280 = vsub.f32 %v3278, %v3279
    %v3281 = vmax.f32 %v3280, 0.0
    %v3282 = vadd.f32 %v3281, 1e-05
    %v3283 = vrsqrt.pop %v3282
    %v3285 = vlaneseq
    %v3286 = vshrl.u32 %v3285, 7
    %v3287 = vsub.s32 0, %v3286
    %v3288 = vrot.slane %v3275, %v3287
    %v3290 = vsub.f32 %v3184, %v3288
    %v3291 = vsub.f32 %v3185, %v3288
    %v3292 = vsub.f32 %v3186, %v3288
    %v3293 = vsub.f32 %v3187, %v3288
    %v3295 = vlaneseq
    %v3296 = vshrl.u32 %v3295, 7
    %v3297 = vsub.s32 0, %v3296
    %v3298 = vrot.slane %v3283, %v3297
    %v3300 = vmul.f32 %v3290, %v3298
    %v3301 = vmul.f32 %v3291, %v3298
    %v3302 = vmul.f32 %v3292, %v3298
    %v3303 = vmul.f32 %v3293, %v3298
    %v3304 = vld [vmem:[%s8] sm:$0xf]
    %v3305 = vld [vmem:[%s8 + $0x4] sm:$0xf]
    %v3306 = vld [vmem:[%s8 + $0x8] sm:$0xf]
    %v3307 = vld [vmem:[%s8 + $0xc] sm:$0xf]
    %v3308 = vpack.c.bf16 %v3301, %v3300
    %v3309 = vpack.c.bf16 %v3303, %v3302
    %v3310 = vld [vmem:[%s9] sm:$0xff]
    %v3311 = vld [vmem:[%s9 + $0x8] sm:$0xff]
    %v3312 = vld [vmem:[%s9 + $0x10] sm:$0xff]
    %v3313 = vld [vmem:[%s9 + $0x18] sm:$0xff]
    %3315 = vset.pattern.permute.xlu0 0
    %3316 = vperm.xlu0 %3315, %v3310
    %v3317 = vpop.permute.xlu0 %3316
    %3320 = vset.pattern.permute.xlu0 0
    %3321 = vperm.xlu0 %3320, %v3311
    %v3322 = vpop.permute.xlu0 %3321
    %3325 = vset.pattern.permute.xlu0 0
    %3326 = vperm.xlu0 %3325, %v3312
    %v3327 = vpop.permute.xlu0 %3326
    %3330 = vset.pattern.permute.xlu0 0
    %3331 = vperm.xlu0 %3330, %v3313
    %v3332 = vpop.permute.xlu0 %3331
    %v3338 = vunpack.c.l.b16 %v3304
    %v3339 = vunpack.c.l.b16 %v3305
    %v3340 = vunpack.c.l.b16 %v3306
    %v3341 = vunpack.c.l.b16 %v3307
    %v3342 = vpack.c.b16 %v3339, %v3338
    %v3343 = vpack.c.b16 %v3341, %v3340
    %v3345 = vsel %vm1106, %v3342, 0
    %v3348 = vsel %vm1106, %v3343, 0
    %3350 = vmatprep.subr.bf16.mxu0 0
    %3351 = vmatpush1.bf16.msra.mxu0 0
    %3352 = vmatprep.subr.bf16.mxu0 0
    %3353 = vmatpush1.bf16.msra.mxu0 0
    %3354 = vmatprep.subr.bf16.mxu0 0
    %3355 = vmatpush1.bf16.msra.mxu0 0
    %3356 = vmatprep.subr.bf16.mxu0 0
    %3357 = vmatpush1.bf16.msra.mxu0 0
    %3358 = vmatprep.subr.bf16.mxu0 0
    %3359 = vmatpush1.bf16.msra.mxu0 0
    %3360 = vmatprep.subr.bf16.mxu0 0
    %3361 = vmatpush1.bf16.msra.mxu0 0
    %3362 = vmatprep.subr.bf16.mxu0 0
    %3363 = vmatpush1.bf16.msra.mxu0 %v3309
    %3364 = vmatprep.subr.bf16.mxu0 0
    %3365 = vmatpush1.bf16.msra.mxu0 %v3308
    %3366 = vmatprep.subr.bf16.mxu0 0
    %3367 = vmatpush2.bf16.msra.mxu0 0
    %3368 = vmatprep.subr.bf16.mxu0 0
    %3369 = vmatpush2.bf16.msra.mxu0 0
    %3370 = vmatprep.subr.bf16.mxu0 0
    %3371 = vmatpush2.bf16.msra.mxu0 0
    %3372 = vmatprep.subr.bf16.mxu0 0
    %3373 = vmatpush2.bf16.msra.mxu0 0
    %3374 = vmatprep.subr.bf16.mxu0 0
    %3375 = vmatpush2.bf16.msra.mxu0 0
    %3376 = vmatprep.subr.bf16.mxu0 0
    %3377 = vmatpush2.bf16.msra.mxu0 0
    %3378 = vmatprep.subr.bf16.mxu0 0
    %3379 = vmatpush2.bf16.msra.mxu0 0
    %3380 = vmatprep.subr.bf16.mxu0 0
    %3381 = vmatpush2.bf16.msra.mxu0 0
    %3382 = vmatprep.mubr.bf16.mxu0 0
    %3383 = vmatmul.mubr.bf16.gmra.mxu0 %v3345
    %v3384 = vpop.f32.mrf.mxu0
    %v3385 = vadd.f32 %v3317, %v3384
    %v3386 = vpop.f32.mrf.mxu0
    %v3387 = vpop.f32.mrf.mxu0
    %v3388 = vadd.f32 %v3322, %v3387
    %v3389 = vpop.f32.mrf.mxu0
    %3390 = vmatprep.mubr.bf16.mxu0 0
    %3391 = vmatmul.mubr.bf16.gmra.mxu0 %v3348
    %v3392 = vpop.f32.mrf.mxu0
    %v3393 = vadd.f32 %v3327, %v3392
    %v3394 = vpop.f32.mrf.mxu0
    %v3395 = vpop.f32.mrf.mxu0
    %v3396 = vadd.f32 %v3332, %v3395
    %v3397 = vpop.f32.mrf.mxu0
    %3398 = vdwg.mxu0
    %v3399 = vmax.f32 %v3385, 0.0
    %v3400 = vmax.f32 %v3388, 0.0
    %v3401 = vmax.f32 %v3393, 0.0
    %v3402 = vmax.f32 %v3396, 0.0
    %v3403 = vld [vmem:[%s10] sm:$0x1]
    %v3404 = vpack.c.bf16 %v3400, %v3399
    %v3405 = vpack.c.bf16 %v3402, %v3401
    %v3406 = vld [vmem:[#allocation3] sm:$0x1]
    %3408 = vset.pattern.permute.xlu0 0
    %3409 = vperm.xlu0 %3408, %v3406
    %v3410 = vpop.permute.xlu0 %3409
    %v3412 = vlaneseq
    %v3413 = vshrl.u32 %v3412, 7
    %v3414 = vsub.s32 0, %v3413
    %v3415 = vrot.slane %v3410, %v3414
    %v3417 = vsel %vm1106, %v3403, 0
    %3419 = vmatprep.subr.bf16.mxu0 0
    %3420 = vmatpush1.bf16.msra.mxu0 0
    %3421 = vmatprep.subr.bf16.mxu0 0
    %3422 = vmatpush1.bf16.msra.mxu0 0
    %3423 = vmatprep.subr.bf16.mxu0 0
    %3424 = vmatpush1.bf16.msra.mxu0 0
    %3425 = vmatprep.subr.bf16.mxu0 0
    %3426 = vmatpush1.bf16.msra.mxu0 0
    %3427 = vmatprep.subr.bf16.mxu0 0
    %3428 = vmatpush1.bf16.msra.mxu0 0
    %3429 = vmatprep.subr.bf16.mxu0 0
    %3430 = vmatpush1.bf16.msra.mxu0 0
    %3431 = vmatprep.subr.bf16.mxu0 0
    %3432 = vmatpush1.bf16.msra.mxu0 %v3405
    %3433 = vmatprep.subr.bf16.mxu0 0
    %3434 = vmatpush1.bf16.msra.mxu0 %v3404
    %3435 = vmatprep.subr.bf16.mxu0 0
    %3436 = vmatpush2.bf16.msra.mxu0 0
    %3437 = vmatprep.subr.bf16.mxu0 0
    %3438 = vmatpush2.bf16.msra.mxu0 0
    %3439 = vmatprep.subr.bf16.mxu0 0
    %3440 = vmatpush2.bf16.msra.mxu0 0
    %3441 = vmatprep.subr.bf16.mxu0 0
    %3442 = vmatpush2.bf16.msra.mxu0 0
    %3443 = vmatprep.subr.bf16.mxu0 0
    %3444 = vmatpush2.bf16.msra.mxu0 0
    %3445 = vmatprep.subr.bf16.mxu0 0
    %3446 = vmatpush2.bf16.msra.mxu0 0
    %3447 = vmatprep.subr.bf16.mxu0 0
    %3448 = vmatpush2.bf16.msra.mxu0 0
    %3449 = vmatprep.subr.bf16.mxu0 0
    %3450 = vmatpush2.bf16.msra.mxu0 0
    %3451 = vmatprep.mubr.bf16.mxu0 0
    %3452 = vmatmul.mubr.bf16.gmra.mxu0 %v3417
    %v3453 = vpop.f32.mrf.mxu0
    %v3454 = vadd.f32 %v3415, %v3453
    %v3455 = vpop.f32.mrf.mxu0
    %v3456 = vpop.f32.mrf.mxu0
    %v3457 = vpop.f32.mrf.mxu0
    %3458 = vdwg.mxu0
    %3459 = vst.msk [vmem:[#allocation4] sm:$0x1] %vm3222, %v3454
    // Predicated region
    $region50: #{tpu_custom_call.1} parent=1 // pred_check
      _
    $region51: #{tpu_custom_call.1} parent=1 // pred_check_branch
      %3461 = sbr.rel (0) target = $region53
    $region52: #{tpu_custom_call.1} parent=1 // pred_region
      %s3463 = ssub.s32 16, 16
      %3464 = vsyncadd [#allocation5], %s3463
      %s3466 = sshll.u32 [#allocation4], 4
      %s3467 = int_to_ptr.vmem [resolvable:$true] %s3466
      %3469 = dma.vmem_to_hbm [thread:$0]  %s3467, 16, %s12, [#allocation5]
    $region53: #{tpu_custom_call.1} parent=1 // pred_fallthru
      _
    // Predicated region
    $region54: #{tpu_custom_call.1} parent=1 // pred_check
      _
    $region55: #{tpu_custom_call.1} parent=1 // pred_check_branch
      %3471 = sbr.rel (0) target = $region57
    $region56: #{tpu_custom_call.1} parent=1 // pred_region
      %3472 = dma.done [#allocation5], 16
    $region57: #{tpu_custom_call.1} parent=1 // pred_fallthru
      _
    %3473 = vsyncpa [#allocation5], 1

</llo_original>
